<compile_context>
chip_gen: v7x
topology: tpu7x:2x2x1
jax: 0.10.0
libtpu: 0.0.40
codegen_flags: <defaults>
</compile_context>

<pallas_src>
import functools

import jax
import jax.numpy as jnp
from jax import lax
from jax.experimental import pallas as pl
from jax.experimental.pallas import tpu as pltpu


# --------------------------------------------------------------------------
# Fused per-batch kernel.
#
# The wrapper permutes the qk weight columns so every head block is laid out
# as [re_0..re_{hd/2-1} | im_0..im_{hd/2-1}] (an exact no-op on the module's
# output), which makes RoPE pure element-wise math plus one 0/1 swap matmul.
# --------------------------------------------------------------------------
def _mlla_fused_kernel(x_ref, v_ref, wqk_ref, bqk_ref, rsw_ref, cos_ref, sin_ref,
                       sh_ref, us_ref, sblk_ref, acat_ref, eye_ref, w9_ref, b9_ref,
                       o_ref, attn_sc, pad_sc, *, n, c, nh, hd, himg, wimg):
    f32 = jnp.float32
    inv_n = 1.0 / float(n)

    x = x_ref[...].reshape(n, c)                      # (n, c) token-major input
    v3 = v_ref[...].reshape(nh, n, hd)                # module's scrambled v view

    # ---- fused q|k projection + ELU+1 (one MXU pass over x) -----------------
    qk = jnp.dot(x, wqk_ref[...], preferred_element_type=f32) + bqk_ref[...]
    # torch: elu(t) + 1 == t + 1 (t > 0) / exp(t) (t <= 0); clamp untaken branch.
    qk = jnp.where(qk > 0, qk + 1.0, jnp.exp(jnp.minimum(qk, 0.0)))

    # ---- full-width RoPE: partner swap via 0/1 matmul + cos/sin tables ------
    qk_sw = jnp.dot(qk, rsw_ref[...], preferred_element_type=f32)
    qk_rot = qk * cos_ref[...] + qk_sw * sin_ref[...]

    q_act = qk[:, :c]
    k_act = qk[:, c:]
    qr = qk_rot[:, :c]
    kr = qk_rot[:, c:]

    # ---- scrambled z denominator, fully in-kernel ----------------------------
    # ksum[t, d] = sum_g k[t, g*hd + d]
    ksum = jnp.dot(k_act, sh_ref[...], preferred_element_type=f32)           # (n, hd)
    # kmh[g, d]  = mean over the g-th token slab of ksum
    kmh = lax.dot_general(us_ref[...], ksum, (((0,), (0,)), ((), ())),
                          preferred_element_type=f32) * inv_n                # (nh, hd)
    # km_tiled[t, cc] = kmh[slab(t), cc % hd]
    km_tiled = jnp.dot(
        us_ref[...],
        lax.dot_general(kmh, sh_ref[...], (((1,), (1,)), ((), ())),
                        preferred_element_type=f32),
        preferred_element_type=f32)                                           # (n, c)
    # den_tg[t', j'] = sum_d q[t', j'*hd + d] * kmh[slab(t'), d]
    den_tg = jnp.dot(q_act * km_tiled, sblk_ref[...],
                     preferred_element_type=f32)                              # (n, nh)

    # Remap den from its natural (token, block) layout to the (token, channel)
    # layout actually consumed, using exact 0/1 matmuls (no strided relayout):
    #   den_full[t, cc] = den_tg[head(cc)*spt + t//nh, t % nh]
    hmask = lax.dot_general(us_ref[...], sblk_ref[...], (((1,), (1,)), ((), ())),
                            preferred_element_type=f32)                       # (n, c)
    e_cat = jnp.concatenate(
        [den_tg[:, j:j + 1] * hmask for j in range(nh)], axis=0)              # (nh*n, c)
    den_full = jnp.dot(acat_ref[...], e_cat, preferred_element_type=f32)      # (n, c)
    zinv = 1.0 / (den_full + 1e-6)                                            # exact

    # ---- per-head linear attention (re|im merged: one kv + one out matmul) --
    for g in range(nh):
        kv = lax.dot_general(kr[:, g * hd:(g + 1) * hd], v3[g],
                             (((0,), (0,)), ((), ())),
                             preferred_element_type=f32)                      # (hd, hd)
        attn_sc[:, g * hd:(g + 1) * hd] = jnp.dot(
            qr[:, g * hd:(g + 1) * hd], kv, preferred_element_type=f32) * inv_n

    attn_sc[...] = attn_sc[...] * zinv

    # ---- LePE depthwise 3x3 conv (VMEM padded scratch, border-only zeroing) -
    pad_sc[0:1, :, :] = jnp.zeros((1, wimg + 2, c), f32)
    pad_sc[himg + 1:himg + 2, :, :] = jnp.zeros((1, wimg + 2, c), f32)
    pad_sc[:, 0:1, :] = jnp.zeros((himg + 2, 1, c), f32)
    pad_sc[:, wimg + 1:wimg + 2, :] = jnp.zeros((himg + 2, 1, c), f32)
    for y in range(himg):
        pad_sc[y + 1:y + 2, 1:wimg + 1, :] = (
            x[y * wimg:(y + 1) * wimg, :].reshape(1, wimg, c))

    w9 = w9_ref[...]                                                          # (9, 1, c)
    acc = jnp.zeros((himg, wimg, c), f32)
    for dj in range(3):                          # hoist the width shift
        col = pad_sc[:, dj:dj + wimg, :]         # (h+2, w, c)
        for di in range(3):
            acc = acc + col[di:di + himg] * w9[di * 3 + dj]
    lepe = acc + b9_ref[...]                                                  # (h, w, c)

    # ---- residual add + channel-major output (transpose via identity matmul)
    for y in range(himg):
        attn_sc[y * wimg:(y + 1) * wimg, :] = (
            attn_sc[y * wimg:(y + 1) * wimg, :] + lepe[y])
    out_cn = lax.dot_general(eye_ref[...], attn_sc[...], (((1,), (1,)), ((), ())),
                             preferred_element_type=f32)                      # (c, n)
    o_ref[...] = out_cn.reshape(1, c, n)


# --------------------------------------------------------------------------
# Wrapper: only layout plumbing and tiny constant 0/1 matrices in plain JAX.
# --------------------------------------------------------------------------
def mlla_attention_forward(x, params, num_heads=4, rope_base=10000.0):
    b, c, himg, wimg = x.shape
    assert himg == wimg, "RoPE broadcasting in the reference module requires h == w"
    n = himg * wimg
    assert c % num_heads == 0
    hd = c // num_heads
    assert hd % 2 == 0 and n % num_heads == 0
    hd2 = hd // 2
    spt = n // num_heads
    kmax = c // 2
    f32 = jnp.float32

    wqk = params["wqk"].astype(f32)        # (c, 2c)  (= torch weight^T)
    bqk = params["bqk"].astype(f32)        # (2c,)
    lepe_w = params["lepe_w"].astype(f32)  # (c, 1, 3, 3)
    lepe_b = params["lepe_b"].astype(f32)  # (c,)

    # Token-major sequence view (single XLA transpose); the scrambled-v view is
    # a pure metadata reshape of the same array.
    x_seq = x.reshape(b, c, n).transpose(0, 2, 1)          # (b, n, c)
    v_scr = x_seq.reshape(b, num_heads, n, hd)             # module's scrambled v

    # Per-head [re | im] de-interleave of the qk output columns (exact no-op on
    # the module output; makes RoPE contiguous-lane math).
    perm = []
    for h_ in range(num_heads):
        base = h_ * hd
        perm += [base + 2 * j for j in range(hd2)]
        perm += [base + 2 * j + 1 for j in range(hd2)]
    perm = jnp.asarray(perm, jnp.int32)
    wq = wqk[:, :c][:, perm]
    wk = wqk[:, c:][:, perm]
    wqk2 = jnp.concatenate([wq, wk], axis=1)                              # (c, 2c)
    bqk2 = jnp.concatenate([bqk[:c][perm], bqk[c:][perm]])[None, :]       # (1, 2c)

    # RoPE tables (angle indexed by the width coordinate, see module), expanded
    # to full (n, 2c) width with the sign folded into the sin table.
    theta = 1.0 / (rope_base ** (jnp.arange(kmax, dtype=f32) / kmax))
    ang_w = jnp.arange(wimg, dtype=f32)[:, None] * theta[None, :]         # (w, c/2)
    ang = jnp.broadcast_to(ang_w[None], (himg, wimg, kmax)).reshape(n, kmax)
    cos_p, sin_p = jnp.cos(ang), jnp.sin(ang)
    cos_full = jnp.concatenate(
        [jnp.concatenate([cos_p[:, g * hd2:(g + 1) * hd2]] * 2, axis=1)
         for g in range(num_heads)], axis=1)                              # (n, c)
    sin_full = jnp.concatenate(
        [jnp.concatenate([-sin_p[:, g * hd2:(g + 1) * hd2],
                          sin_p[:, g * hd2:(g + 1) * hd2]], axis=1)
         for g in range(num_heads)], axis=1)                              # (n, c)
    cos2 = jnp.concatenate([cos_full, cos_full], axis=1)                  # (n, 2c)
    sin2 = jnp.concatenate([sin_full, sin_full], axis=1)                  # (n, 2c)

    # RoPE partner-swap permutation matrix (same swap in every hd block of q|k).
    col = jnp.arange(2 * c)
    i_in = col % hd
    partner = (col // hd) * hd + jnp.where(i_in < hd2, i_in + hd2, i_in - hd2)
    rsw2 = (jnp.arange(2 * c)[:, None] == partner[None, :]).astype(f32)   # (2c, 2c)

    # Tiny exact 0/1 matrices driving the scrambled z denominator on the MXU.
    sh = (jnp.arange(c)[:, None] % hd == jnp.arange(hd)[None, :]).astype(f32)       # (c, hd)
    uslab = (jnp.arange(n)[:, None] // spt
             == jnp.arange(num_heads)[None, :]).astype(f32)                          # (n, nh)
    sblk = (jnp.arange(c)[:, None] // hd
            == jnp.arange(num_heads)[None, :]).astype(f32)                           # (c, nh)
    tt = jnp.arange(n)
    acat = jnp.concatenate(
        [((tt[:, None] % num_heads == j)
          & (tt[None, :] % spt == tt[:, None] // num_heads)).astype(f32)
         for j in range(num_heads)], axis=1)                                          # (n, nh*n)
    eye_c = jnp.eye(c, dtype=f32)

    w9 = jnp.transpose(lepe_w[:, 0], (1, 2, 0)).reshape(9, 1, c)          # (9, 1, c)
    b9 = lepe_b.reshape(1, c)

    full2 = lambda shp: pl.BlockSpec(shp, lambda i: (0, 0))
    full3 = lambda shp: pl.BlockSpec(shp, lambda i: (0, 0, 0))

    kernel = functools.partial(_mlla_fused_kernel, n=n, c=c, nh=num_heads,
                               hd=hd, himg=himg, wimg=wimg)
    out_cn = pl.pallas_call(
        kernel,
        grid=(b,),
        in_specs=[
            pl.BlockSpec((1, n, c), lambda i: (i, 0, 0)),
            pl.BlockSpec((1, num_heads, n, hd), lambda i: (i, 0, 0, 0)),
            full2((c, 2 * c)),
            full2((1, 2 * c)),
            full2((2 * c, 2 * c)),
            full2((n, 2 * c)),
            full2((n, 2 * c)),
            full2((c, hd)),
            full2((n, num_heads)),
            full2((c, num_heads)),
            full2((n, num_heads * n)),
            full2((c, c)),
            full3((9, 1, c)),
            full2((1, c)),
        ],
        out_specs=pl.BlockSpec((1, c, n), lambda i: (i, 0, 0)),
        out_shape=jax.ShapeDtypeStruct((b, c, n), f32),
        scratch_shapes=[pltpu.VMEM((n, c), f32),
                        pltpu.VMEM((himg + 2, wimg + 2, c), f32)],
        compiler_params=pltpu.CompilerParams(dimension_semantics=("parallel",)),
    )(x_seq, v_scr, wqk2, bqk2, rsw2, cos2, sin2, sh, uslab, sblk, acat,
      eye_c, w9, b9)

    # (b, c, n) -> NCHW is a pure metadata reshape.
    return out_cn.reshape(b, c, himg, wimg)


# --------------------------------------------------------------------------
# Pure-JAX reference (mirrors the PyTorch forward) for a correctness check.
# --------------------------------------------------------------------------
def mlla_attention_reference(x, params, num_heads=4, rope_base=10000.0):
    b, c, h, w = x.shape
    n = h * w
    hd = c // num_heads
    kmax = c // 2
    x_seq = x.reshape(b, c, n).transpose(0, 2, 1)
    qk = x_seq @ params["wqk"] + params["bqk"]
    q = jax.nn.elu(qk[..., :c]) + 1.0
    k = jax.nn.elu(qk[..., c:]) + 1.0
    v = x_seq

    theta = 1.0 / (rope_base ** (jnp.arange(kmax, dtype=jnp.float32) / kmax))
    ang = jnp.arange(w, dtype=jnp.float32)[:, None] * theta[None, :]
    ca, sa = jnp.cos(ang), jnp.sin(ang)

    def rope(t):
        t4 = t.reshape(b, h, w, c)
        re, im = t4[..., 0::2], t4[..., 1::2]
        out = jnp.stack([re * ca - im * sa, re * sa + im * ca], axis=-1)
        return out.reshape(b, h, w, c).reshape(b, n, c)

    qr4 = rope(q).reshape(b, n, num_heads, hd).transpose(0, 2, 1, 3)
    kr4 = rope(k).reshape(b, n, num_heads, hd).transpose(0, 2, 1, 3)
    q4, k4, v4 = [t.reshape(b, num_heads, n, hd) for t in (q, k, v)]

    z = 1.0 / (jnp.einsum("bhnd,bhd->bhn", q4, k4.mean(axis=2)) + 1e-6)[..., None]
    scale = n ** -0.5
    kv = jnp.einsum("bhnd,bhne->bhde", kr4 * scale, v4 * scale)
    out = jnp.einsum("bhnd,bhde->bhne", qr4, kv) * z
    out_img = (out.transpose(0, 2, 1, 3).reshape(b, n, c)
               .transpose(0, 2, 1).reshape(b, c, h, w))

    v_img = v4.reshape(b, h, w, c).transpose(0, 3, 1, 2)
    lepe = lax.conv_general_dilated(
        v_img, params["lepe_w"], (1, 1), ((1, 1), (1, 1)),
        feature_group_count=c, dimension_numbers=("NCHW", "OIHW", "NCHW"))
    lepe = lepe + params["lepe_b"][None, :, None, None]
    return out_img + lepe


if __name__ == "__main__":
    b, c, h, w = 2, 16, 8, 8
    num_heads = 4

    key = jax.random.PRNGKey(0)
    k0, k1, k2, k3, k4 = jax.random.split(key, 5)
    params = {
        "wqk": jax.random.normal(k0, (c, 2 * c), jnp.float32) * 0.1,
        "bqk": jax.random.normal(k1, (2 * c,), jnp.float32) * 0.1,
        "lepe_w": jax.random.normal(k2, (c, 1, 3, 3), jnp.float32) * 0.1,
        "lepe_b": jax.random.normal(k3, (c,), jnp.float32) * 0.1,
    }
    x = jax.random.normal(k4, (b, c, h, w), jnp.float32)

    out = jax.block_until_ready(mlla_attention_forward(x, params, num_heads))
    ref = jax.block_until_ready(mlla_attention_reference(x, params, num_heads))

    assert out.shape == (b, c, h, w), out.shape
    max_err = float(jnp.max(jnp.abs(out - ref)))
    assert jnp.allclose(out, ref, atol=2e-3, rtol=1e-2), f"max_err={max_err}"
    print("KERNEL_OK")
</pallas_src>

<mosaic_0001>
module attributes {stable_mosaic.version = 11 : i64} {
  func.func @_mlla_fused_kernel(%arg0: i32, %arg1: memref<1x64x16xf32, #tpu.memory_space<vmem>>, %arg2: memref<1x4x64x4xf32, #tpu.memory_space<vmem>>, %arg3: memref<16x32xf32, #tpu.memory_space<vmem>>, %arg4: memref<1x32xf32, #tpu.memory_space<vmem>>, %arg5: memref<32x32xf32, #tpu.memory_space<vmem>>, %arg6: memref<64x32xf32, #tpu.memory_space<vmem>>, %arg7: memref<64x32xf32, #tpu.memory_space<vmem>>, %arg8: memref<16x4xf32, #tpu.memory_space<vmem>>, %arg9: memref<64x4xf32, #tpu.memory_space<vmem>>, %arg10: memref<16x4xf32, #tpu.memory_space<vmem>>, %arg11: memref<64x256xf32, #tpu.memory_space<vmem>>, %arg12: memref<16x16xf32, #tpu.memory_space<vmem>>, %arg13: memref<9x1x16xf32, #tpu.memory_space<vmem>>, %arg14: memref<1x16xf32, #tpu.memory_space<vmem>>, %arg15: memref<1x16x64xf32, #tpu.memory_space<vmem>>, %arg16: memref<64x16xf32, #tpu.memory_space<vmem>>, %arg17: memref<10x10x16xf32, #tpu.memory_space<vmem>>) attributes {dimension_semantics = [#tpu.dimension_semantics<parallel>], iteration_bounds = array<i64: 2>, scalar_prefetch = 0 : i64, scratch_operands = 2 : i64, tpu.core_type = #tpu.core_type<tc>, window_params = [{transform_indices = @transform_0, window_bounds = array<i64: 1, 64, 16>}, {transform_indices = @transform_1, window_bounds = array<i64: 1, 4, 64, 4>}, {pipeline_mode = #tpu.pipeline_mode<synchronous>, transform_indices = @transform_2, window_bounds = array<i64: 16, 32>}, {pipeline_mode = #tpu.pipeline_mode<synchronous>, transform_indices = @transform_3, window_bounds = array<i64: 1, 32>}, {pipeline_mode = #tpu.pipeline_mode<synchronous>, transform_indices = @transform_4, window_bounds = array<i64: 32, 32>}, {pipeline_mode = #tpu.pipeline_mode<synchronous>, transform_indices = @transform_5, window_bounds = array<i64: 64, 32>}, {pipeline_mode = #tpu.pipeline_mode<synchronous>, transform_indices = @transform_6, window_bounds = array<i64: 64, 32>}, {pipeline_mode = #tpu.pipeline_mode<synchronous>, transform_indices = @transform_7, window_bounds = array<i64: 16, 4>}, {pipeline_mode = #tpu.pipeline_mode<synchronous>, transform_indices = @transform_8, window_bounds = array<i64: 64, 4>}, {pipeline_mode = #tpu.pipeline_mode<synchronous>, transform_indices = @transform_9, window_bounds = array<i64: 16, 4>}, {pipeline_mode = #tpu.pipeline_mode<synchronous>, transform_indices = @transform_10, window_bounds = array<i64: 64, 256>}, {pipeline_mode = #tpu.pipeline_mode<synchronous>, transform_indices = @transform_11, window_bounds = array<i64: 16, 16>}, {pipeline_mode = #tpu.pipeline_mode<synchronous>, transform_indices = @transform_12, window_bounds = array<i64: 9, 1, 16>}, {pipeline_mode = #tpu.pipeline_mode<synchronous>, transform_indices = @transform_13, window_bounds = array<i64: 1, 16>}, {transform_indices = @transform_14, window_bounds = array<i64: 1, 16, 64>}]} {
    %c0 = arith.constant 0 : index
    %c0_0 = arith.constant 0 : index
    %c0_1 = arith.constant 0 : index
    %0 = vector.load %arg1[%c0, %c0_0, %c0_1] : memref<1x64x16xf32, #tpu.memory_space<vmem>>, vector<1x64x16xf32>
    %1 = vector.shape_cast %0 : vector<1x64x16xf32> to vector<64x16xf32>
    %c0_2 = arith.constant 0 : index
    %c0_3 = arith.constant 0 : index
    %c0_4 = arith.constant 0 : index
    %c0_5 = arith.constant 0 : index
    %2 = vector.load %arg2[%c0_2, %c0_3, %c0_4, %c0_5] : memref<1x4x64x4xf32, #tpu.memory_space<vmem>>, vector<1x4x64x4xf32>
    %3 = vector.shape_cast %2 : vector<1x4x64x4xf32> to vector<4x64x4xf32>
    %c0_6 = arith.constant 0 : index
    %c0_7 = arith.constant 0 : index
    %4 = vector.load %arg3[%c0_6, %c0_7] : memref<16x32xf32, #tpu.memory_space<vmem>>, vector<16x32xf32>
    %cst = arith.constant dense<0.000000e+00> : vector<64x32xf32>
    %5 = tpu.matmul %1, %4, %cst {dimension_numbers = #tpu.dot_dimension_numbers<[1], [0], [0], [1], [0, 0, 1, 1], [], []>} : vector<64x16xf32>, vector<16x32xf32>, vector<64x32xf32> -> vector<64x32xf32>
    %c0_8 = arith.constant 0 : index
    %c0_9 = arith.constant 0 : index
    %6 = vector.load %arg4[%c0_8, %c0_9] : memref<1x32xf32, #tpu.memory_space<vmem>>, vector<1x32xf32>
    %7 = vector.broadcast %6 : vector<1x32xf32> to vector<64x32xf32>
    %8 = arith.addf %5, %7 : vector<64x32xf32>
    %cst_10 = arith.constant 0.000000e+00 : f32
    %9 = vector.broadcast %cst_10 : f32 to vector<64x32xf32>
    %10 = arith.cmpf ogt, %8, %9 : vector<64x32xf32>
    %cst_11 = arith.constant 1.000000e+00 : f32
    %11 = vector.broadcast %cst_11 : f32 to vector<64x32xf32>
    %12 = arith.addf %8, %11 : vector<64x32xf32>
    %cst_12 = arith.constant 0.000000e+00 : f32
    %13 = vector.broadcast %cst_12 : f32 to vector<64x32xf32>
    %14 = arith.minimumf %8, %13 : vector<64x32xf32>
    %15 = math.exp %14 : vector<64x32xf32>
    %16 = arith.select %10, %12, %15 : vector<64x32xi1>, vector<64x32xf32>
    %c0_13 = arith.constant 0 : index
    %c0_14 = arith.constant 0 : index
    %17 = vector.load %arg5[%c0_13, %c0_14] : memref<32x32xf32, #tpu.memory_space<vmem>>, vector<32x32xf32>
    %cst_15 = arith.constant dense<0.000000e+00> : vector<64x32xf32>
    %18 = tpu.matmul %16, %17, %cst_15 {dimension_numbers = #tpu.dot_dimension_numbers<[1], [0], [0], [1], [0, 0, 1, 1], [], []>} : vector<64x32xf32>, vector<32x32xf32>, vector<64x32xf32> -> vector<64x32xf32>
    %c0_16 = arith.constant 0 : index
    %c0_17 = arith.constant 0 : index
    %19 = vector.load %arg6[%c0_16, %c0_17] : memref<64x32xf32, #tpu.memory_space<vmem>>, vector<64x32xf32>
    %20 = arith.mulf %16, %19 : vector<64x32xf32>
    %c0_18 = arith.constant 0 : index
    %c0_19 = arith.constant 0 : index
    %21 = vector.load %arg7[%c0_18, %c0_19] : memref<64x32xf32, #tpu.memory_space<vmem>>, vector<64x32xf32>
    %22 = arith.mulf %18, %21 : vector<64x32xf32>
    %23 = arith.addf %20, %22 : vector<64x32xf32>
    %24 = vector.extract_strided_slice %16 {offsets = [0, 0], sizes = [64, 16], strides = [1, 1]} : vector<64x32xf32> to vector<64x16xf32>
    %25 = vector.extract_strided_slice %16 {offsets = [0, 16], sizes = [64, 16], strides = [1, 1]} : vector<64x32xf32> to vector<64x16xf32>
    %26 = vector.extract_strided_slice %23 {offsets = [0, 0], sizes = [64, 16], strides = [1, 1]} : vector<64x32xf32> to vector<64x16xf32>
    %27 = vector.extract_strided_slice %23 {offsets = [0, 16], sizes = [64, 16], strides = [1, 1]} : vector<64x32xf32> to vector<64x16xf32>
    %c0_20 = arith.constant 0 : index
    %c0_21 = arith.constant 0 : index
    %28 = vector.load %arg8[%c0_20, %c0_21] : memref<16x4xf32, #tpu.memory_space<vmem>>, vector<16x4xf32>
    %cst_22 = arith.constant dense<0.000000e+00> : vector<64x4xf32>
    %29 = tpu.matmul %25, %28, %cst_22 {dimension_numbers = #tpu.dot_dimension_numbers<[1], [0], [0], [1], [0, 0, 1, 1], [], []>} : vector<64x16xf32>, vector<16x4xf32>, vector<64x4xf32> -> vector<64x4xf32>
    %c0_23 = arith.constant 0 : index
    %c0_24 = arith.constant 0 : index
    %30 = vector.load %arg9[%c0_23, %c0_24] : memref<64x4xf32, #tpu.memory_space<vmem>>, vector<64x4xf32>
    %cst_25 = arith.constant dense<0.000000e+00> : vector<4x4xf32>
    %31 = tpu.matmul %30, %29, %cst_25 {dimension_numbers = #tpu.dot_dimension_numbers<[0], [0], [1], [1], [0, 1, 1, 1], [], []>} : vector<64x4xf32>, vector<64x4xf32>, vector<4x4xf32> -> vector<4x4xf32>
    %cst_26 = arith.constant 1.562500e-02 : f32
    %32 = vector.broadcast %cst_26 : f32 to vector<4x4xf32>
    %33 = arith.mulf %31, %32 : vector<4x4xf32>
    %c0_27 = arith.constant 0 : index
    %c0_28 = arith.constant 0 : index
    %34 = vector.load %arg9[%c0_27, %c0_28] : memref<64x4xf32, #tpu.memory_space<vmem>>, vector<64x4xf32>
    %c0_29 = arith.constant 0 : index
    %c0_30 = arith.constant 0 : index
    %35 = vector.load %arg8[%c0_29, %c0_30] : memref<16x4xf32, #tpu.memory_space<vmem>>, vector<16x4xf32>
    %cst_31 = arith.constant dense<0.000000e+00> : vector<4x16xf32>
    %36 = tpu.matmul %33, %35, %cst_31 {dimension_numbers = #tpu.dot_dimension_numbers<[1], [1], [0], [0], [0, 0, 1, 0], [], []>} : vector<4x4xf32>, vector<16x4xf32>, vector<4x16xf32> -> vector<4x16xf32>
    %cst_32 = arith.constant dense<0.000000e+00> : vector<64x16xf32>
    %37 = tpu.matmul %34, %36, %cst_32 {dimension_numbers = #tpu.dot_dimension_numbers<[1], [0], [0], [1], [0, 0, 1, 1], [], []>} : vector<64x4xf32>, vector<4x16xf32>, vector<64x16xf32> -> vector<64x16xf32>
    %38 = arith.mulf %24, %37 : vector<64x16xf32>
    %c0_33 = arith.constant 0 : index
    %c0_34 = arith.constant 0 : index
    %39 = vector.load %arg10[%c0_33, %c0_34] : memref<16x4xf32, #tpu.memory_space<vmem>>, vector<16x4xf32>
    %cst_35 = arith.constant dense<0.000000e+00> : vector<64x4xf32>
    %40 = tpu.matmul %38, %39, %cst_35 {dimension_numbers = #tpu.dot_dimension_numbers<[1], [0], [0], [1], [0, 0, 1, 1], [], []>} : vector<64x16xf32>, vector<16x4xf32>, vector<64x4xf32> -> vector<64x4xf32>
    %c0_36 = arith.constant 0 : index
    %c0_37 = arith.constant 0 : index
    %41 = vector.load %arg9[%c0_36, %c0_37] : memref<64x4xf32, #tpu.memory_space<vmem>>, vector<64x4xf32>
    %c0_38 = arith.constant 0 : index
    %c0_39 = arith.constant 0 : index
    %42 = vector.load %arg10[%c0_38, %c0_39] : memref<16x4xf32, #tpu.memory_space<vmem>>, vector<16x4xf32>
    %cst_40 = arith.constant dense<0.000000e+00> : vector<64x16xf32>
    %43 = tpu.matmul %41, %42, %cst_40 {dimension_numbers = #tpu.dot_dimension_numbers<[1], [1], [0], [0], [0, 0, 1, 0], [], []>} : vector<64x4xf32>, vector<16x4xf32>, vector<64x16xf32> -> vector<64x16xf32>
    %44 = vector.extract_strided_slice %40 {offsets = [0, 0], sizes = [64, 1], strides = [1, 1]} : vector<64x4xf32> to vector<64x1xf32>
    %45 = vector.broadcast %44 : vector<64x1xf32> to vector<64x16xf32>
    %46 = arith.mulf %45, %43 : vector<64x16xf32>
    %47 = vector.extract_strided_slice %40 {offsets = [0, 1], sizes = [64, 1], strides = [1, 1]} : vector<64x4xf32> to vector<64x1xf32>
    %48 = vector.broadcast %47 : vector<64x1xf32> to vector<64x16xf32>
    %49 = arith.mulf %48, %43 : vector<64x16xf32>
    %50 = vector.extract_strided_slice %40 {offsets = [0, 2], sizes = [64, 1], strides = [1, 1]} : vector<64x4xf32> to vector<64x1xf32>
    %51 = vector.broadcast %50 : vector<64x1xf32> to vector<64x16xf32>
    %52 = arith.mulf %51, %43 : vector<64x16xf32>
    %53 = vector.extract_strided_slice %40 {offsets = [0, 3], sizes = [64, 1], strides = [1, 1]} : vector<64x4xf32> to vector<64x1xf32>
    %54 = vector.broadcast %53 : vector<64x1xf32> to vector<64x16xf32>
    %55 = arith.mulf %54, %43 : vector<64x16xf32>
    %56 = tpu.concatenate %46, %49, %52, %55 in 0 : vector<64x16xf32>, vector<64x16xf32>, vector<64x16xf32>, vector<64x16xf32> -> vector<256x16xf32>
    %c0_41 = arith.constant 0 : index
    %c0_42 = arith.constant 0 : index
    %57 = vector.load %arg11[%c0_41, %c0_42] : memref<64x256xf32, #tpu.memory_space<vmem>>, vector<64x256xf32>
    %cst_43 = arith.constant dense<0.000000e+00> : vector<64x16xf32>
    %58 = tpu.matmul %57, %56, %cst_43 {dimension_numbers = #tpu.dot_dimension_numbers<[1], [0], [0], [1], [0, 0, 1, 1], [], []>} : vector<64x256xf32>, vector<256x16xf32>, vector<64x16xf32> -> vector<64x16xf32>
    %cst_44 = arith.constant 9.99999997E-7 : f32
    %59 = vector.broadcast %cst_44 : f32 to vector<64x16xf32>
    %60 = arith.addf %58, %59 : vector<64x16xf32>
    %cst_45 = arith.constant 1.000000e+00 : f32
    %61 = vector.broadcast %cst_45 : f32 to vector<64x16xf32>
    %62 = arith.divf %61, %60 : vector<64x16xf32>
    %63 = vector.extract_strided_slice %27 {offsets = [0, 0], sizes = [64, 4], strides = [1, 1]} : vector<64x16xf32> to vector<64x4xf32>
    %64 = vector.extract_strided_slice %3 {offsets = [0, 0, 0], sizes = [1, 64, 4], strides = [1, 1, 1]} : vector<4x64x4xf32> to vector<1x64x4xf32>
    %65 = vector.shape_cast %64 : vector<1x64x4xf32> to vector<64x4xf32>
    %cst_46 = arith.constant dense<0.000000e+00> : vector<4x4xf32>
    %66 = tpu.matmul %63, %65, %cst_46 {dimension_numbers = #tpu.dot_dimension_numbers<[0], [0], [1], [1], [0, 1, 1, 1], [], []>} : vector<64x4xf32>, vector<64x4xf32>, vector<4x4xf32> -> vector<4x4xf32>
    %67 = vector.extract_strided_slice %26 {offsets = [0, 0], sizes = [64, 4], strides = [1, 1]} : vector<64x16xf32> to vector<64x4xf32>
    %cst_47 = arith.constant dense<0.000000e+00> : vector<64x4xf32>
    %68 = tpu.matmul %67, %66, %cst_47 {dimension_numbers = #tpu.dot_dimension_numbers<[1], [0], [0], [1], [0, 0, 1, 1], [], []>} : vector<64x4xf32>, vector<4x4xf32>, vector<64x4xf32> -> vector<64x4xf32>
    %cst_48 = arith.constant 1.562500e-02 : f32
    %69 = vector.broadcast %cst_48 : f32 to vector<64x4xf32>
    %70 = arith.mulf %68, %69 : vector<64x4xf32>
    %c0_49 = arith.constant 0 : index
    %c0_50 = arith.constant 0 : index
    %71 = vector.load %arg16[%c0_49, %c0_50] : memref<64x16xf32, #tpu.memory_space<vmem>>, vector<64x4xf32>
    tpu.vector_store %arg16[%c0_49, %c0_50], %70 {strides = array<i32>} : memref<64x16xf32, #tpu.memory_space<vmem>>, vector<64x4xf32>,
    %72 = vector.extract_strided_slice %27 {offsets = [0, 4], sizes = [64, 4], strides = [1, 1]} : vector<64x16xf32> to vector<64x4xf32>
    %73 = vector.extract_strided_slice %3 {offsets = [1, 0, 0], sizes = [1, 64, 4], strides = [1, 1, 1]} : vector<4x64x4xf32> to vector<1x64x4xf32>
    %74 = vector.shape_cast %73 : vector<1x64x4xf32> to vector<64x4xf32>
    %cst_51 = arith.constant dense<0.000000e+00> : vector<4x4xf32>
    %75 = tpu.matmul %72, %74, %cst_51 {dimension_numbers = #tpu.dot_dimension_numbers<[0], [0], [1], [1], [0, 1, 1, 1], [], []>} : vector<64x4xf32>, vector<64x4xf32>, vector<4x4xf32> -> vector<4x4xf32>
    %76 = vector.extract_strided_slice %26 {offsets = [0, 4], sizes = [64, 4], strides = [1, 1]} : vector<64x16xf32> to vector<64x4xf32>
    %cst_52 = arith.constant dense<0.000000e+00> : vector<64x4xf32>
    %77 = tpu.matmul %76, %75, %cst_52 {dimension_numbers = #tpu.dot_dimension_numbers<[1], [0], [0], [1], [0, 0, 1, 1], [], []>} : vector<64x4xf32>, vector<4x4xf32>, vector<64x4xf32> -> vector<64x4xf32>
    %cst_53 = arith.constant 1.562500e-02 : f32
    %78 = vector.broadcast %cst_53 : f32 to vector<64x4xf32>
    %79 = arith.mulf %77, %78 : vector<64x4xf32>
    %c0_54 = arith.constant 0 : index
    %c4 = arith.constant 4 : index
    %80 = vector.load %arg16[%c0_54, %c4] : memref<64x16xf32, #tpu.memory_space<vmem>>, vector<64x4xf32>
    tpu.vector_store %arg16[%c0_54, %c4], %79 {strides = array<i32>} : memref<64x16xf32, #tpu.memory_space<vmem>>, vector<64x4xf32>,
    %81 = vector.extract_strided_slice %27 {offsets = [0, 8], sizes = [64, 4], strides = [1, 1]} : vector<64x16xf32> to vector<64x4xf32>
    %82 = vector.extract_strided_slice %3 {offsets = [2, 0, 0], sizes = [1, 64, 4], strides = [1, 1, 1]} : vector<4x64x4xf32> to vector<1x64x4xf32>
    %83 = vector.shape_cast %82 : vector<1x64x4xf32> to vector<64x4xf32>
    %cst_55 = arith.constant dense<0.000000e+00> : vector<4x4xf32>
    %84 = tpu.matmul %81, %83, %cst_55 {dimension_numbers = #tpu.dot_dimension_numbers<[0], [0], [1], [1], [0, 1, 1, 1], [], []>} : vector<64x4xf32>, vector<64x4xf32>, vector<4x4xf32> -> vector<4x4xf32>
    %85 = vector.extract_strided_slice %26 {offsets = [0, 8], sizes = [64, 4], strides = [1, 1]} : vector<64x16xf32> to vector<64x4xf32>
    %cst_56 = arith.constant dense<0.000000e+00> : vector<64x4xf32>
    %86 = tpu.matmul %85, %84, %cst_56 {dimension_numbers = #tpu.dot_dimension_numbers<[1], [0], [0], [1], [0, 0, 1, 1], [], []>} : vector<64x4xf32>, vector<4x4xf32>, vector<64x4xf32> -> vector<64x4xf32>
    %cst_57 = arith.constant 1.562500e-02 : f32
    %87 = vector.broadcast %cst_57 : f32 to vector<64x4xf32>
    %88 = arith.mulf %86, %87 : vector<64x4xf32>
    %c0_58 = arith.constant 0 : index
    %c8 = arith.constant 8 : index
    %89 = vector.load %arg16[%c0_58, %c8] : memref<64x16xf32, #tpu.memory_space<vmem>>, vector<64x4xf32>
    tpu.vector_store %arg16[%c0_58, %c8], %88 {strides = array<i32>} : memref<64x16xf32, #tpu.memory_space<vmem>>, vector<64x4xf32>,
    %90 = vector.extract_strided_slice %27 {offsets = [0, 12], sizes = [64, 4], strides = [1, 1]} : vector<64x16xf32> to vector<64x4xf32>
    %91 = vector.extract_strided_slice %3 {offsets = [3, 0, 0], sizes = [1, 64, 4], strides = [1, 1, 1]} : vector<4x64x4xf32> to vector<1x64x4xf32>
    %92 = vector.shape_cast %91 : vector<1x64x4xf32> to vector<64x4xf32>
    %cst_59 = arith.constant dense<0.000000e+00> : vector<4x4xf32>
    %93 = tpu.matmul %90, %92, %cst_59 {dimension_numbers = #tpu.dot_dimension_numbers<[0], [0], [1], [1], [0, 1, 1, 1], [], []>} : vector<64x4xf32>, vector<64x4xf32>, vector<4x4xf32> -> vector<4x4xf32>
    %94 = vector.extract_strided_slice %26 {offsets = [0, 12], sizes = [64, 4], strides = [1, 1]} : vector<64x16xf32> to vector<64x4xf32>
    %cst_60 = arith.constant dense<0.000000e+00> : vector<64x4xf32>
    %95 = tpu.matmul %94, %93, %cst_60 {dimension_numbers = #tpu.dot_dimension_numbers<[1], [0], [0], [1], [0, 0, 1, 1], [], []>} : vector<64x4xf32>, vector<4x4xf32>, vector<64x4xf32> -> vector<64x4xf32>
    %cst_61 = arith.constant 1.562500e-02 : f32
    %96 = vector.broadcast %cst_61 : f32 to vector<64x4xf32>
    %97 = arith.mulf %95, %96 : vector<64x4xf32>
    %c0_62 = arith.constant 0 : index
    %c12 = arith.constant 12 : index
    %98 = vector.load %arg16[%c0_62, %c12] : memref<64x16xf32, #tpu.memory_space<vmem>>, vector<64x4xf32>
    tpu.vector_store %arg16[%c0_62, %c12], %97 {strides = array<i32>} : memref<64x16xf32, #tpu.memory_space<vmem>>, vector<64x4xf32>,
    %c0_63 = arith.constant 0 : index
    %c0_64 = arith.constant 0 : index
    %99 = vector.load %arg16[%c0_63, %c0_64] : memref<64x16xf32, #tpu.memory_space<vmem>>, vector<64x16xf32>
    %100 = arith.mulf %99, %62 : vector<64x16xf32>
    %c0_65 = arith.constant 0 : index
    %c0_66 = arith.constant 0 : index
    %101 = vector.load %arg16[%c0_65, %c0_66] : memref<64x16xf32, #tpu.memory_space<vmem>>, vector<64x16xf32>
    tpu.vector_store %arg16[%c0_65, %c0_66], %100 {strides = array<i32>} : memref<64x16xf32, #tpu.memory_space<vmem>>, vector<64x16xf32>,
    %cst_67 = arith.constant 0.000000e+00 : f32
    %102 = vector.broadcast %cst_67 : f32 to vector<1x10x16xf32>
    %c0_68 = arith.constant 0 : index
    %c0_69 = arith.constant 0 : index
    %c0_70 = arith.constant 0 : index
    %103 = vector.load %arg17[%c0_68, %c0_69, %c0_70] : memref<10x10x16xf32, #tpu.memory_space<vmem>>, vector<1x10x16xf32>
    tpu.vector_store %arg17[%c0_68, %c0_69, %c0_70], %102 {strides = array<i32>} : memref<10x10x16xf32, #tpu.memory_space<vmem>>, vector<1x10x16xf32>,
    %cst_71 = arith.constant 0.000000e+00 : f32
    %104 = vector.broadcast %cst_71 : f32 to vector<1x10x16xf32>
    %c9 = arith.constant 9 : index
    %c0_72 = arith.constant 0 : index
    %c0_73 = arith.constant 0 : index
    %105 = vector.load %arg17[%c9, %c0_72, %c0_73] : memref<10x10x16xf32, #tpu.memory_space<vmem>>, vector<1x10x16xf32>
    tpu.vector_store %arg17[%c9, %c0_72, %c0_73], %104 {strides = array<i32>} : memref<10x10x16xf32, #tpu.memory_space<vmem>>, vector<1x10x16xf32>,
    %cst_74 = arith.constant 0.000000e+00 : f32
    %106 = vector.broadcast %cst_74 : f32 to vector<10x1x16xf32>
    %c0_75 = arith.constant 0 : index
    %c0_76 = arith.constant 0 : index
    %c0_77 = arith.constant 0 : index
    %107 = vector.load %arg17[%c0_75, %c0_76, %c0_77] : memref<10x10x16xf32, #tpu.memory_space<vmem>>, vector<10x1x16xf32>
    tpu.vector_store %arg17[%c0_75, %c0_76, %c0_77], %106 {strides = array<i32>} : memref<10x10x16xf32, #tpu.memory_space<vmem>>, vector<10x1x16xf32>,
    %cst_78 = arith.constant 0.000000e+00 : f32
    %108 = vector.broadcast %cst_78 : f32 to vector<10x1x16xf32>
    %c0_79 = arith.constant 0 : index
    %c9_80 = arith.constant 9 : index
    %c0_81 = arith.constant 0 : index
    %109 = vector.load %arg17[%c0_79, %c9_80, %c0_81] : memref<10x10x16xf32, #tpu.memory_space<vmem>>, vector<10x1x16xf32>
    tpu.vector_store %arg17[%c0_79, %c9_80, %c0_81], %108 {strides = array<i32>} : memref<10x10x16xf32, #tpu.memory_space<vmem>>, vector<10x1x16xf32>,
    %110 = vector.extract_strided_slice %1 {offsets = [0, 0], sizes = [8, 16], strides = [1, 1]} : vector<64x16xf32> to vector<8x16xf32>
    %111 = vector.shape_cast %110 : vector<8x16xf32> to vector<1x8x16xf32>
    %c1 = arith.constant 1 : index
    %c1_82 = arith.constant 1 : index
    %c0_83 = arith.constant 0 : index
    %112 = vector.load %arg17[%c1, %c1_82, %c0_83] : memref<10x10x16xf32, #tpu.memory_space<vmem>>, vector<1x8x16xf32>
    tpu.vector_store %arg17[%c1, %c1_82, %c0_83], %111 {strides = array<i32>} : memref<10x10x16xf32, #tpu.memory_space<vmem>>, vector<1x8x16xf32>,
    %113 = vector.extract_strided_slice %1 {offsets = [8, 0], sizes = [8, 16], strides = [1, 1]} : vector<64x16xf32> to vector<8x16xf32>
    %114 = vector.shape_cast %113 : vector<8x16xf32> to vector<1x8x16xf32>
    %c2 = arith.constant 2 : index
    %c1_84 = arith.constant 1 : index
    %c0_85 = arith.constant 0 : index
    %115 = vector.load %arg17[%c2, %c1_84, %c0_85] : memref<10x10x16xf32, #tpu.memory_space<vmem>>, vector<1x8x16xf32>
    tpu.vector_store %arg17[%c2, %c1_84, %c0_85], %114 {strides = array<i32>} : memref<10x10x16xf32, #tpu.memory_space<vmem>>, vector<1x8x16xf32>,
    %116 = vector.extract_strided_slice %1 {offsets = [16, 0], sizes = [8, 16], strides = [1, 1]} : vector<64x16xf32> to vector<8x16xf32>
    %117 = vector.shape_cast %116 : vector<8x16xf32> to vector<1x8x16xf32>
    %c3 = arith.constant 3 : index
    %c1_86 = arith.constant 1 : index
    %c0_87 = arith.constant 0 : index
    %118 = vector.load %arg17[%c3, %c1_86, %c0_87] : memref<10x10x16xf32, #tpu.memory_space<vmem>>, vector<1x8x16xf32>
    tpu.vector_store %arg17[%c3, %c1_86, %c0_87], %117 {strides = array<i32>} : memref<10x10x16xf32, #tpu.memory_space<vmem>>, vector<1x8x16xf32>,
    %119 = vector.extract_strided_slice %1 {offsets = [24, 0], sizes = [8, 16], strides = [1, 1]} : vector<64x16xf32> to vector<8x16xf32>
    %120 = vector.shape_cast %119 : vector<8x16xf32> to vector<1x8x16xf32>
    %c4_88 = arith.constant 4 : index
    %c1_89 = arith.constant 1 : index
    %c0_90 = arith.constant 0 : index
    %121 = vector.load %arg17[%c4_88, %c1_89, %c0_90] : memref<10x10x16xf32, #tpu.memory_space<vmem>>, vector<1x8x16xf32>
    tpu.vector_store %arg17[%c4_88, %c1_89, %c0_90], %120 {strides = array<i32>} : memref<10x10x16xf32, #tpu.memory_space<vmem>>, vector<1x8x16xf32>,
    %122 = vector.extract_strided_slice %1 {offsets = [32, 0], sizes = [8, 16], strides = [1, 1]} : vector<64x16xf32> to vector<8x16xf32>
    %123 = vector.shape_cast %122 : vector<8x16xf32> to vector<1x8x16xf32>
    %c5 = arith.constant 5 : index
    %c1_91 = arith.constant 1 : index
    %c0_92 = arith.constant 0 : index
    %124 = vector.load %arg17[%c5, %c1_91, %c0_92] : memref<10x10x16xf32, #tpu.memory_space<vmem>>, vector<1x8x16xf32>
    tpu.vector_store %arg17[%c5, %c1_91, %c0_92], %123 {strides = array<i32>} : memref<10x10x16xf32, #tpu.memory_space<vmem>>, vector<1x8x16xf32>,
    %125 = vector.extract_strided_slice %1 {offsets = [40, 0], sizes = [8, 16], strides = [1, 1]} : vector<64x16xf32> to vector<8x16xf32>
    %126 = vector.shape_cast %125 : vector<8x16xf32> to vector<1x8x16xf32>
    %c6 = arith.constant 6 : index
    %c1_93 = arith.constant 1 : index
    %c0_94 = arith.constant 0 : index
    %127 = vector.load %arg17[%c6, %c1_93, %c0_94] : memref<10x10x16xf32, #tpu.memory_space<vmem>>, vector<1x8x16xf32>
    tpu.vector_store %arg17[%c6, %c1_93, %c0_94], %126 {strides = array<i32>} : memref<10x10x16xf32, #tpu.memory_space<vmem>>, vector<1x8x16xf32>,
    %128 = vector.extract_strided_slice %1 {offsets = [48, 0], sizes = [8, 16], strides = [1, 1]} : vector<64x16xf32> to vector<8x16xf32>
    %129 = vector.shape_cast %128 : vector<8x16xf32> to vector<1x8x16xf32>
    %c7 = arith.constant 7 : index
    %c1_95 = arith.constant 1 : index
    %c0_96 = arith.constant 0 : index
    %130 = vector.load %arg17[%c7, %c1_95, %c0_96] : memref<10x10x16xf32, #tpu.memory_space<vmem>>, vector<1x8x16xf32>
    tpu.vector_store %arg17[%c7, %c1_95, %c0_96], %129 {strides = array<i32>} : memref<10x10x16xf32, #tpu.memory_space<vmem>>, vector<1x8x16xf32>,
    %131 = vector.extract_strided_slice %1 {offsets = [56, 0], sizes = [8, 16], strides = [1, 1]} : vector<64x16xf32> to vector<8x16xf32>
    %132 = vector.shape_cast %131 : vector<8x16xf32> to vector<1x8x16xf32>
    %c8_97 = arith.constant 8 : index
    %c1_98 = arith.constant 1 : index
    %c0_99 = arith.constant 0 : index
    %133 = vector.load %arg17[%c8_97, %c1_98, %c0_99] : memref<10x10x16xf32, #tpu.memory_space<vmem>>, vector<1x8x16xf32>
    tpu.vector_store %arg17[%c8_97, %c1_98, %c0_99], %132 {strides = array<i32>} : memref<10x10x16xf32, #tpu.memory_space<vmem>>, vector<1x8x16xf32>,
    %c0_100 = arith.constant 0 : index
    %c0_101 = arith.constant 0 : index
    %c0_102 = arith.constant 0 : index
    %134 = vector.load %arg13[%c0_100, %c0_101, %c0_102] : memref<9x1x16xf32, #tpu.memory_space<vmem>>, vector<9x1x16xf32>
    %cst_103 = arith.constant 0.000000e+00 : f32
    %135 = vector.broadcast %cst_103 : f32 to vector<8x8x16xf32>
    %c0_104 = arith.constant 0 : index
    %c0_105 = arith.constant 0 : index
    %c0_106 = arith.constant 0 : index
    %136 = vector.load %arg17[%c0_104, %c0_105, %c0_106] : memref<10x10x16xf32, #tpu.memory_space<vmem>>, vector<10x8x16xf32>
    %137 = vector.extract_strided_slice %136 {offsets = [0, 0, 0], sizes = [8, 8, 16], strides = [1, 1, 1]} : vector<10x8x16xf32> to vector<8x8x16xf32>
    %138 = vector.extract_strided_slice %134 {offsets = [0, 0, 0], sizes = [1, 1, 16], strides = [1, 1, 1]} : vector<9x1x16xf32> to vector<1x1x16xf32>
    %139 = vector.shape_cast %138 : vector<1x1x16xf32> to vector<1x16xf32>
    %140 = vector.shape_cast %139 : vector<1x16xf32> to vector<1x1x16xf32>
    %141 = vector.broadcast %140 : vector<1x1x16xf32> to vector<8x8x16xf32>
    %142 = arith.mulf %137, %141 : vector<8x8x16xf32>
    %143 = arith.addf %135, %142 : vector<8x8x16xf32>
    %144 = vector.extract_strided_slice %136 {offsets = [1, 0, 0], sizes = [8, 8, 16], strides = [1, 1, 1]} : vector<10x8x16xf32> to vector<8x8x16xf32>
    %145 = vector.extract_strided_slice %134 {offsets = [3, 0, 0], sizes = [1, 1, 16], strides = [1, 1, 1]} : vector<9x1x16xf32> to vector<1x1x16xf32>
    %146 = vector.shape_cast %145 : vector<1x1x16xf32> to vector<1x16xf32>
    %147 = vector.shape_cast %146 : vector<1x16xf32> to vector<1x1x16xf32>
    %148 = vector.broadcast %147 : vector<1x1x16xf32> to vector<8x8x16xf32>
    %149 = arith.mulf %144, %148 : vector<8x8x16xf32>
    %150 = arith.addf %143, %149 : vector<8x8x16xf32>
    %151 = vector.extract_strided_slice %136 {offsets = [2, 0, 0], sizes = [8, 8, 16], strides = [1, 1, 1]} : vector<10x8x16xf32> to vector<8x8x16xf32>
    %152 = vector.extract_strided_slice %134 {offsets = [6, 0, 0], sizes = [1, 1, 16], strides = [1, 1, 1]} : vector<9x1x16xf32> to vector<1x1x16xf32>
    %153 = vector.shape_cast %152 : vector<1x1x16xf32> to vector<1x16xf32>
    %154 = vector.shape_cast %153 : vector<1x16xf32> to vector<1x1x16xf32>
    %155 = vector.broadcast %154 : vector<1x1x16xf32> to vector<8x8x16xf32>
    %156 = arith.mulf %151, %155 : vector<8x8x16xf32>
    %157 = arith.addf %150, %156 : vector<8x8x16xf32>
    %c0_107 = arith.constant 0 : index
    %c1_108 = arith.constant 1 : index
    %c0_109 = arith.constant 0 : index
    %158 = vector.load %arg17[%c0_107, %c1_108, %c0_109] : memref<10x10x16xf32, #tpu.memory_space<vmem>>, vector<10x8x16xf32>
    %159 = vector.extract_strided_slice %158 {offsets = [0, 0, 0], sizes = [8, 8, 16], strides = [1, 1, 1]} : vector<10x8x16xf32> to vector<8x8x16xf32>
    %160 = vector.extract_strided_slice %134 {offsets = [1, 0, 0], sizes = [1, 1, 16], strides = [1, 1, 1]} : vector<9x1x16xf32> to vector<1x1x16xf32>
    %161 = vector.shape_cast %160 : vector<1x1x16xf32> to vector<1x16xf32>
    %162 = vector.shape_cast %161 : vector<1x16xf32> to vector<1x1x16xf32>
    %163 = vector.broadcast %162 : vector<1x1x16xf32> to vector<8x8x16xf32>
    %164 = arith.mulf %159, %163 : vector<8x8x16xf32>
    %165 = arith.addf %157, %164 : vector<8x8x16xf32>
    %166 = vector.extract_strided_slice %158 {offsets = [1, 0, 0], sizes = [8, 8, 16], strides = [1, 1, 1]} : vector<10x8x16xf32> to vector<8x8x16xf32>
    %167 = vector.extract_strided_slice %134 {offsets = [4, 0, 0], sizes = [1, 1, 16], strides = [1, 1, 1]} : vector<9x1x16xf32> to vector<1x1x16xf32>
    %168 = vector.shape_cast %167 : vector<1x1x16xf32> to vector<1x16xf32>
    %169 = vector.shape_cast %168 : vector<1x16xf32> to vector<1x1x16xf32>
    %170 = vector.broadcast %169 : vector<1x1x16xf32> to vector<8x8x16xf32>
    %171 = arith.mulf %166, %170 : vector<8x8x16xf32>
    %172 = arith.addf %165, %171 : vector<8x8x16xf32>
    %173 = vector.extract_strided_slice %158 {offsets = [2, 0, 0], sizes = [8, 8, 16], strides = [1, 1, 1]} : vector<10x8x16xf32> to vector<8x8x16xf32>
    %174 = vector.extract_strided_slice %134 {offsets = [7, 0, 0], sizes = [1, 1, 16], strides = [1, 1, 1]} : vector<9x1x16xf32> to vector<1x1x16xf32>
    %175 = vector.shape_cast %174 : vector<1x1x16xf32> to vector<1x16xf32>
    %176 = vector.shape_cast %175 : vector<1x16xf32> to vector<1x1x16xf32>
    %177 = vector.broadcast %176 : vector<1x1x16xf32> to vector<8x8x16xf32>
    %178 = arith.mulf %173, %177 : vector<8x8x16xf32>
    %179 = arith.addf %172, %178 : vector<8x8x16xf32>
    %c0_110 = arith.constant 0 : index
    %c2_111 = arith.constant 2 : index
    %c0_112 = arith.constant 0 : index
    %180 = vector.load %arg17[%c0_110, %c2_111, %c0_112] : memref<10x10x16xf32, #tpu.memory_space<vmem>>, vector<10x8x16xf32>
    %181 = vector.extract_strided_slice %180 {offsets = [0, 0, 0], sizes = [8, 8, 16], strides = [1, 1, 1]} : vector<10x8x16xf32> to vector<8x8x16xf32>
    %182 = vector.extract_strided_slice %134 {offsets = [2, 0, 0], sizes = [1, 1, 16], strides = [1, 1, 1]} : vector<9x1x16xf32> to vector<1x1x16xf32>
    %183 = vector.shape_cast %182 : vector<1x1x16xf32> to vector<1x16xf32>
    %184 = vector.shape_cast %183 : vector<1x16xf32> to vector<1x1x16xf32>
    %185 = vector.broadcast %184 : vector<1x1x16xf32> to vector<8x8x16xf32>
    %186 = arith.mulf %181, %185 : vector<8x8x16xf32>
    %187 = arith.addf %179, %186 : vector<8x8x16xf32>
    %188 = vector.extract_strided_slice %180 {offsets = [1, 0, 0], sizes = [8, 8, 16], strides = [1, 1, 1]} : vector<10x8x16xf32> to vector<8x8x16xf32>
    %189 = vector.extract_strided_slice %134 {offsets = [5, 0, 0], sizes = [1, 1, 16], strides = [1, 1, 1]} : vector<9x1x16xf32> to vector<1x1x16xf32>
    %190 = vector.shape_cast %189 : vector<1x1x16xf32> to vector<1x16xf32>
    %191 = vector.shape_cast %190 : vector<1x16xf32> to vector<1x1x16xf32>
    %192 = vector.broadcast %191 : vector<1x1x16xf32> to vector<8x8x16xf32>
    %193 = arith.mulf %188, %192 : vector<8x8x16xf32>
    %194 = arith.addf %187, %193 : vector<8x8x16xf32>
    %195 = vector.extract_strided_slice %180 {offsets = [2, 0, 0], sizes = [8, 8, 16], strides = [1, 1, 1]} : vector<10x8x16xf32> to vector<8x8x16xf32>
    %196 = vector.extract_strided_slice %134 {offsets = [8, 0, 0], sizes = [1, 1, 16], strides = [1, 1, 1]} : vector<9x1x16xf32> to vector<1x1x16xf32>
    %197 = vector.shape_cast %196 : vector<1x1x16xf32> to vector<1x16xf32>
    %198 = vector.shape_cast %197 : vector<1x16xf32> to vector<1x1x16xf32>
    %199 = vector.broadcast %198 : vector<1x1x16xf32> to vector<8x8x16xf32>
    %200 = arith.mulf %195, %199 : vector<8x8x16xf32>
    %201 = arith.addf %194, %200 : vector<8x8x16xf32>
    %c0_113 = arith.constant 0 : index
    %c0_114 = arith.constant 0 : index
    %202 = vector.load %arg14[%c0_113, %c0_114] : memref<1x16xf32, #tpu.memory_space<vmem>>, vector<1x16xf32>
    %203 = vector.shape_cast %202 : vector<1x16xf32> to vector<1x1x16xf32>
    %204 = vector.broadcast %203 : vector<1x1x16xf32> to vector<8x8x16xf32>
    %205 = arith.addf %201, %204 : vector<8x8x16xf32>
    %c0_115 = arith.constant 0 : index
    %c0_116 = arith.constant 0 : index
    %206 = vector.load %arg16[%c0_115, %c0_116] : memref<64x16xf32, #tpu.memory_space<vmem>>, vector<8x16xf32>
    %207 = vector.extract_strided_slice %205 {offsets = [0, 0, 0], sizes = [1, 8, 16], strides = [1, 1, 1]} : vector<8x8x16xf32> to vector<1x8x16xf32>
    %208 = vector.shape_cast %207 : vector<1x8x16xf32> to vector<8x16xf32>
    %209 = arith.addf %206, %208 : vector<8x16xf32>
    %c0_117 = arith.constant 0 : index
    %c0_118 = arith.constant 0 : index
    %210 = vector.load %arg16[%c0_117, %c0_118] : memref<64x16xf32, #tpu.memory_space<vmem>>, vector<8x16xf32>
    tpu.vector_store %arg16[%c0_117, %c0_118], %209 {strides = array<i32>} : memref<64x16xf32, #tpu.memory_space<vmem>>, vector<8x16xf32>,
    %c8_119 = arith.constant 8 : index
    %c0_120 = arith.constant 0 : index
    %211 = vector.load %arg16[%c8_119, %c0_120] : memref<64x16xf32, #tpu.memory_space<vmem>>, vector<8x16xf32>
    %212 = vector.extract_strided_slice %205 {offsets = [1, 0, 0], sizes = [1, 8, 16], strides = [1, 1, 1]} : vector<8x8x16xf32> to vector<1x8x16xf32>
    %213 = vector.shape_cast %212 : vector<1x8x16xf32> to vector<8x16xf32>
    %214 = arith.addf %211, %213 : vector<8x16xf32>
    %c8_121 = arith.constant 8 : index
    %c0_122 = arith.constant 0 : index
    %215 = vector.load %arg16[%c8_121, %c0_122] : memref<64x16xf32, #tpu.memory_space<vmem>>, vector<8x16xf32>
    tpu.vector_store %arg16[%c8_121, %c0_122], %214 {strides = array<i32>} : memref<64x16xf32, #tpu.memory_space<vmem>>, vector<8x16xf32>,
    %c16 = arith.constant 16 : index
    %c0_123 = arith.constant 0 : index
    %216 = vector.load %arg16[%c16, %c0_123] : memref<64x16xf32, #tpu.memory_space<vmem>>, vector<8x16xf32>
    %217 = vector.extract_strided_slice %205 {offsets = [2, 0, 0], sizes = [1, 8, 16], strides = [1, 1, 1]} : vector<8x8x16xf32> to vector<1x8x16xf32>
    %218 = vector.shape_cast %217 : vector<1x8x16xf32> to vector<8x16xf32>
    %219 = arith.addf %216, %218 : vector<8x16xf32>
    %c16_124 = arith.constant 16 : index
    %c0_125 = arith.constant 0 : index
    %220 = vector.load %arg16[%c16_124, %c0_125] : memref<64x16xf32, #tpu.memory_space<vmem>>, vector<8x16xf32>
    tpu.vector_store %arg16[%c16_124, %c0_125], %219 {strides = array<i32>} : memref<64x16xf32, #tpu.memory_space<vmem>>, vector<8x16xf32>,
    %c24 = arith.constant 24 : index
    %c0_126 = arith.constant 0 : index
    %221 = vector.load %arg16[%c24, %c0_126] : memref<64x16xf32, #tpu.memory_space<vmem>>, vector<8x16xf32>
    %222 = vector.extract_strided_slice %205 {offsets = [3, 0, 0], sizes = [1, 8, 16], strides = [1, 1, 1]} : vector<8x8x16xf32> to vector<1x8x16xf32>
    %223 = vector.shape_cast %222 : vector<1x8x16xf32> to vector<8x16xf32>
    %224 = arith.addf %221, %223 : vector<8x16xf32>
    %c24_127 = arith.constant 24 : index
    %c0_128 = arith.constant 0 : index
    %225 = vector.load %arg16[%c24_127, %c0_128] : memref<64x16xf32, #tpu.memory_space<vmem>>, vector<8x16xf32>
    tpu.vector_store %arg16[%c24_127, %c0_128], %224 {strides = array<i32>} : memref<64x16xf32, #tpu.memory_space<vmem>>, vector<8x16xf32>,
    %c32 = arith.constant 32 : index
    %c0_129 = arith.constant 0 : index
    %226 = vector.load %arg16[%c32, %c0_129] : memref<64x16xf32, #tpu.memory_space<vmem>>, vector<8x16xf32>
    %227 = vector.extract_strided_slice %205 {offsets = [4, 0, 0], sizes = [1, 8, 16], strides = [1, 1, 1]} : vector<8x8x16xf32> to vector<1x8x16xf32>
    %228 = vector.shape_cast %227 : vector<1x8x16xf32> to vector<8x16xf32>
    %229 = arith.addf %226, %228 : vector<8x16xf32>
    %c32_130 = arith.constant 32 : index
    %c0_131 = arith.constant 0 : index
    %230 = vector.load %arg16[%c32_130, %c0_131] : memref<64x16xf32, #tpu.memory_space<vmem>>, vector<8x16xf32>
    tpu.vector_store %arg16[%c32_130, %c0_131], %229 {strides = array<i32>} : memref<64x16xf32, #tpu.memory_space<vmem>>, vector<8x16xf32>,
    %c40 = arith.constant 40 : index
    %c0_132 = arith.constant 0 : index
    %231 = vector.load %arg16[%c40, %c0_132] : memref<64x16xf32, #tpu.memory_space<vmem>>, vector<8x16xf32>
    %232 = vector.extract_strided_slice %205 {offsets = [5, 0, 0], sizes = [1, 8, 16], strides = [1, 1, 1]} : vector<8x8x16xf32> to vector<1x8x16xf32>
    %233 = vector.shape_cast %232 : vector<1x8x16xf32> to vector<8x16xf32>
    %234 = arith.addf %231, %233 : vector<8x16xf32>
    %c40_133 = arith.constant 40 : index
    %c0_134 = arith.constant 0 : index
    %235 = vector.load %arg16[%c40_133, %c0_134] : memref<64x16xf32, #tpu.memory_space<vmem>>, vector<8x16xf32>
    tpu.vector_store %arg16[%c40_133, %c0_134], %234 {strides = array<i32>} : memref<64x16xf32, #tpu.memory_space<vmem>>, vector<8x16xf32>,
    %c48 = arith.constant 48 : index
    %c0_135 = arith.constant 0 : index
    %236 = vector.load %arg16[%c48, %c0_135] : memref<64x16xf32, #tpu.memory_space<vmem>>, vector<8x16xf32>
    %237 = vector.extract_strided_slice %205 {offsets = [6, 0, 0], sizes = [1, 8, 16], strides = [1, 1, 1]} : vector<8x8x16xf32> to vector<1x8x16xf32>
    %238 = vector.shape_cast %237 : vector<1x8x16xf32> to vector<8x16xf32>
    %239 = arith.addf %236, %238 : vector<8x16xf32>
    %c48_136 = arith.constant 48 : index
    %c0_137 = arith.constant 0 : index
    %240 = vector.load %arg16[%c48_136, %c0_137] : memref<64x16xf32, #tpu.memory_space<vmem>>, vector<8x16xf32>
    tpu.vector_store %arg16[%c48_136, %c0_137], %239 {strides = array<i32>} : memref<64x16xf32, #tpu.memory_space<vmem>>, vector<8x16xf32>,
    %c56 = arith.constant 56 : index
    %c0_138 = arith.constant 0 : index
    %241 = vector.load %arg16[%c56, %c0_138] : memref<64x16xf32, #tpu.memory_space<vmem>>, vector<8x16xf32>
    %242 = vector.extract_strided_slice %205 {offsets = [7, 0, 0], sizes = [1, 8, 16], strides = [1, 1, 1]} : vector<8x8x16xf32> to vector<1x8x16xf32>
    %243 = vector.shape_cast %242 : vector<1x8x16xf32> to vector<8x16xf32>
    %244 = arith.addf %241, %243 : vector<8x16xf32>
    %c56_139 = arith.constant 56 : index
    %c0_140 = arith.constant 0 : index
    %245 = vector.load %arg16[%c56_139, %c0_140] : memref<64x16xf32, #tpu.memory_space<vmem>>, vector<8x16xf32>
    tpu.vector_store %arg16[%c56_139, %c0_140], %244 {strides = array<i32>} : memref<64x16xf32, #tpu.memory_space<vmem>>, vector<8x16xf32>,
    %c0_141 = arith.constant 0 : index
    %c0_142 = arith.constant 0 : index
    %246 = vector.load %arg12[%c0_141, %c0_142] : memref<16x16xf32, #tpu.memory_space<vmem>>, vector<16x16xf32>
    %c0_143 = arith.constant 0 : index
    %c0_144 = arith.constant 0 : index
    %247 = vector.load %arg16[%c0_143, %c0_144] : memref<64x16xf32, #tpu.memory_space<vmem>>, vector<64x16xf32>
    %cst_145 = arith.constant dense<0.000000e+00> : vector<16x64xf32>
    %248 = tpu.matmul %246, %247, %cst_145 {dimension_numbers = #tpu.dot_dimension_numbers<[1], [1], [0], [0], [0, 0, 1, 0], [], []>} : vector<16x16xf32>, vector<64x16xf32>, vector<16x64xf32> -> vector<16x64xf32>
    %249 = vector.shape_cast %248 : vector<16x64xf32> to vector<1x16x64xf32>
    %c0_146 = arith.constant 0 : index
    %c0_147 = arith.constant 0 : index
    %c0_148 = arith.constant 0 : index
    %250 = vector.load %arg15[%c0_146, %c0_147, %c0_148] : memref<1x16x64xf32, #tpu.memory_space<vmem>>, vector<1x16x64xf32>
    tpu.vector_store %arg15[%c0_146, %c0_147, %c0_148], %249 {strides = array<i32>} : memref<1x16x64xf32, #tpu.memory_space<vmem>>, vector<1x16x64xf32>,
    return
  }
  func.func @transform_0(%arg0: i32) -> (i32, i32, i32) {
    %c0_i32 = arith.constant 0 : i32
    %c0_i32_0 = arith.constant 0 : i32
    %c0_i32_1 = arith.constant 0 : i32
    return %arg0, %c0_i32, %c0_i32_0 : i32, i32, i32
  }
  func.func @transform_1(%arg0: i32) -> (i32, i32, i32, i32) {
    %c0_i32 = arith.constant 0 : i32
    %c0_i32_0 = arith.constant 0 : i32
    %c0_i32_1 = arith.constant 0 : i32
    %c0_i32_2 = arith.constant 0 : i32
    return %arg0, %c0_i32, %c0_i32_0, %c0_i32_1 : i32, i32, i32, i32
  }
  func.func @transform_2(%arg0: i32) -> (i32, i32) {
    %c0_i32 = arith.constant 0 : i32
    %c0_i32_0 = arith.constant 0 : i32
    %c0_i32_1 = arith.constant 0 : i32
    return %c0_i32, %c0_i32_0 : i32, i32
  }
  func.func @transform_3(%arg0: i32) -> (i32, i32) {
    %c0_i32 = arith.constant 0 : i32
    %c0_i32_0 = arith.constant 0 : i32
    %c0_i32_1 = arith.constant 0 : i32
    return %c0_i32, %c0_i32_0 : i32, i32
  }
  func.func @transform_4(%arg0: i32) -> (i32, i32) {
    %c0_i32 = arith.constant 0 : i32
    %c0_i32_0 = arith.constant 0 : i32
    %c0_i32_1 = arith.constant 0 : i32
    return %c0_i32, %c0_i32_0 : i32, i32
  }
  func.func @transform_5(%arg0: i32) -> (i32, i32) {
    %c0_i32 = arith.constant 0 : i32
    %c0_i32_0 = arith.constant 0 : i32
    %c0_i32_1 = arith.constant 0 : i32
    return %c0_i32, %c0_i32_0 : i32, i32
  }
  func.func @transform_6(%arg0: i32) -> (i32, i32) {
    %c0_i32 = arith.constant 0 : i32
    %c0_i32_0 = arith.constant 0 : i32
    %c0_i32_1 = arith.constant 0 : i32
    return %c0_i32, %c0_i32_0 : i32, i32
  }
  func.func @transform_7(%arg0: i32) -> (i32, i32) {
    %c0_i32 = arith.constant 0 : i32
    %c0_i32_0 = arith.constant 0 : i32
    %c0_i32_1 = arith.constant 0 : i32
    return %c0_i32, %c0_i32_0 : i32, i32
  }
  func.func @transform_8(%arg0: i32) -> (i32, i32) {
    %c0_i32 = arith.constant 0 : i32
    %c0_i32_0 = arith.constant 0 : i32
    %c0_i32_1 = arith.constant 0 : i32
    return %c0_i32, %c0_i32_0 : i32, i32
  }
  func.func @transform_9(%arg0: i32) -> (i32, i32) {
    %c0_i32 = arith.constant 0 : i32
    %c0_i32_0 = arith.constant 0 : i32
    %c0_i32_1 = arith.constant 0 : i32
    return %c0_i32, %c0_i32_0 : i32, i32
  }
  func.func @transform_10(%arg0: i32) -> (i32, i32) {
    %c0_i32 = arith.constant 0 : i32
    %c0_i32_0 = arith.constant 0 : i32
    %c0_i32_1 = arith.constant 0 : i32
    return %c0_i32, %c0_i32_0 : i32, i32
  }
  func.func @transform_11(%arg0: i32) -> (i32, i32) {
    %c0_i32 = arith.constant 0 : i32
    %c0_i32_0 = arith.constant 0 : i32
    %c0_i32_1 = arith.constant 0 : i32
    return %c0_i32, %c0_i32_0 : i32, i32
  }
  func.func @transform_12(%arg0: i32) -> (i32, i32, i32) {
    %c0_i32 = arith.constant 0 : i32
    %c0_i32_0 = arith.constant 0 : i32
    %c0_i32_1 = arith.constant 0 : i32
    %c0_i32_2 = arith.constant 0 : i32
    return %c0_i32, %c0_i32_0, %c0_i32_1 : i32, i32, i32
  }
  func.func @transform_13(%arg0: i32) -> (i32, i32) {
    %c0_i32 = arith.constant 0 : i32
    %c0_i32_0 = arith.constant 0 : i32
    %c0_i32_1 = arith.constant 0 : i32
    return %c0_i32, %c0_i32_0 : i32, i32
  }
  func.func @transform_14(%arg0: i32) -> (i32, i32, i32) {
    %c0_i32 = arith.constant 0 : i32
    %c0_i32_0 = arith.constant 0 : i32
    %c0_i32_1 = arith.constant 0 : i32
    return %arg0, %c0_i32, %c0_i32_0 : i32, i32, i32
  }
}

</mosaic_0001>

<llo_original>
// kernel: tpu_custom_call.1
$region0: #{tpu_custom_call.1}
  #allocation0 [shape = 'u32[]', space=smem, size = 0x4, offset = 0x4, fixed_abs, tag = 'smem constant byte address 0x4 - core index']
  #allocation1 [shape = 'u32[144,128]{1,0:T(1,128)}', space=vmem, size = 0x12000, scoped, tag = 'internal scratch']
  #allocation2 [shape = 'f32[64,16]{1,0:T(8,128)}', space=vmem, size = 0x8000, scoped, tag = 'scratch operand']
  #allocation3 [shape = 'f32[10,10,16]{2,1,0:T(8,128)}', space=vmem, size = 0x14000, scoped, tag = 'scratch operand']
  %s0 = inlined_call_operand.vmem [shape: f32[2,64,16], index: 0, kind: input, shape index: {}]
  %s1 = inlined_call_operand.vmem [shape: f32[2,4,64,4], index: 1, kind: input, shape index: {}]
  %s2 = inlined_call_operand.vmem [shape: f32[16,32], index: 2, kind: input, shape index: {}]
  %s3 = inlined_call_operand.vmem [shape: f32[1,32], index: 3, kind: input, shape index: {}]
  %s4 = inlined_call_operand.vmem [shape: f32[32,32], index: 4, kind: input, shape index: {}]
  %s5 = inlined_call_operand.vmem [shape: f32[64,32], index: 5, kind: input, shape index: {}]
  %s6 = inlined_call_operand.vmem [shape: f32[64,32], index: 6, kind: input, shape index: {}]
  %s7 = inlined_call_operand.vmem [shape: f32[16,4], index: 7, kind: input, shape index: {}]
  %s8 = inlined_call_operand.vmem [shape: f32[64,4], index: 8, kind: input, shape index: {}]
  %s9 = inlined_call_operand.vmem [shape: f32[16,4], index: 9, kind: input, shape index: {}]
  %s10 = inlined_call_operand.vmem [shape: f32[64,256], index: 10, kind: input, shape index: {}]
  %s11 = inlined_call_operand.vmem [shape: f32[16,16], index: 11, kind: input, shape index: {}]
  %s12 = inlined_call_operand.vmem [shape: f32[9,1,16], index: 12, kind: input, shape index: {}]
  %s13 = inlined_call_operand.vmem [shape: f32[1,16], index: 13, kind: input, shape index: {}]
  %s14 = inlined_call_operand.hbm [shape: f32[2,16,64], index: 14, kind: output, shape index: {}]
  %s15 = sld [smem:[#allocation0]]
  $region89: #{tpu_custom_call.1} parent=0
    _
  %s17 = ssub.s32 1, %s15
  %s18 = scalar_select 0, %s17, %s15
  $region1: #{tpu_custom_call.1} parent=0
    #allocation4 [shape = 'u8[16384]{0}', space=vmem, size = 0x4000, scoped, tag = 'output window, operand 0']
    #allocation5 [shape = 's32[2]{0}', space=sflag, size = 0x8, scoped, tag = 'scoped memory for tpu_custom_call.1']
    %19 = vsyncpa [#allocation5], 0
    %s20 = scalar_lea.sflag [#allocation5], 1
    %21 = vsyncpa %s20, 0
    loop: start=0, step=1, limit=4
    $region2: #{tpu_custom_call.1} parent=1 // loop_pre_header
      _
    $region3: #{tpu_custom_call.1} parent=1 // loop_header
      %s23 = sphi 0, %s27
      %p24 = scmp.ge.s32.totalorder %s23, 4
      %s33 = sphi 0, %s35
      %s36 = sphi 0, %s33
      %s37 = sphi 0, %s36
      %s53 = sphi 0, %s37
      %s59 = sphi 0, %s61
      %s62 = sphi 0, %s59
      %s63 = sphi 0, %s62
      %s79 = sphi 0, %s63
      %s83 = sphi 0, %s83
      %s85 = sphi 0, %s83
      %s86 = sphi 0, %s85
      %s100 = sphi 0, %s86
      %s104 = sphi 0, %s104
      %s106 = sphi 0, %s104
      %s107 = sphi 0, %s106
      %s121 = sphi 0, %s107
      %s125 = sphi 0, %s125
      %s127 = sphi 0, %s125
      %s128 = sphi 0, %s127
      %s142 = sphi 0, %s128
      %s146 = sphi 0, %s146
      %s148 = sphi 0, %s146
      %s149 = sphi 0, %s148
      %s163 = sphi 0, %s149
      %s167 = sphi 0, %s167
      %s169 = sphi 0, %s167
      %s170 = sphi 0, %s169
      %s184 = sphi 0, %s170
      %s188 = sphi 0, %s188
      %s190 = sphi 0, %s188
      %s191 = sphi 0, %s190
      %s205 = sphi 0, %s191
      %s209 = sphi 0, %s209
      %s211 = sphi 0, %s209
      %s212 = sphi 0, %s211
      %s226 = sphi 0, %s212
      %s230 = sphi 0, %s230
      %s232 = sphi 0, %s230
      %s233 = sphi 0, %s232
      %s247 = sphi 0, %s233
      %s251 = sphi 0, %s251
      %s253 = sphi 0, %s251
      %s254 = sphi 0, %s253
      %s268 = sphi 0, %s254
      %s272 = sphi 0, %s272
      %s274 = sphi 0, %s272
      %s275 = sphi 0, %s274
      %s289 = sphi 0, %s275
      %s293 = sphi 0, %s293
      %s295 = sphi 0, %s293
      %s296 = sphi 0, %s295
      %s310 = sphi 0, %s296
      %s314 = sphi 0, %s314
      %s316 = sphi 0, %s314
      %s317 = sphi 0, %s316
      %s331 = sphi 0, %s317
      %s337 = sphi 0, %s339
      %s340 = sphi 0, %s337
      %s341 = sphi 0, %s340
      %s357 = sphi 0, %s341
    $region4: #{tpu_custom_call.1} parent=1 // loop_header_branch
      %26 = sbr.rel (%p24) target = $region8
    $region5: #{tpu_custom_call.1} parent=1 // loop_body
      %s28 = ssub.s32 %s23, 1
      %s29 = ssub.s32 %s23, 2
      %s30 = sadd.s32 %s23, 1
      %s31 = ssub.s32 %s23, %s30
      %p32 = scmp.eq.s32.totalorder %s31, 0
      %s34 = sadd.s32 %s33, 1
      %s35 = scalar_select %p32, %s33, %s34
      %p38 = pneg %p32
      %p39 = scmp.eq.s32.totalorder %s23, 1
      %p40 = por %p38, %p39
      %p41 = scmp.ne.s32.totalorder %s33, %s36
      %p42 = scmp.eq.s32.totalorder %s23, 0
      %p43 = por %p41, %p42
      %p44 = scmp.ne.s32.totalorder %s33, %s36
      %p45 = scmp.eq.s32.totalorder %s28, 1
      %p46 = por %p44, %p45
      %p47 = scmp.ne.s32.totalorder %s36, %s37
      %p48 = scmp.eq.s32.totalorder %s28, 0
      %p49 = por %p47, %p48
      %p50 = scmp.ne.s32.totalorder %s36, %s37
      %p51 = scmp.eq.s32.totalorder %s29, 1
      %p52 = por %p50, %p51
      %p54 = scmp.ne.s32.totalorder %s37, %s53
      %p55 = scmp.eq.s32.totalorder %s29, 0
      %p56 = por %p54, %p55
      %s57 = ssub.s32 %s23, %s30
      %p58 = scmp.eq.s32.totalorder %s57, 0
      %s60 = sadd.s32 %s59, 1
      %s61 = scalar_select %p58, %s59, %s60
      %p64 = pneg %p58
      %p65 = scmp.eq.s32.totalorder %s23, 1
      %p66 = por %p64, %p65
      %p67 = scmp.ne.s32.totalorder %s59, %s62
      %p68 = scmp.eq.s32.totalorder %s23, 0
      %p69 = por %p67, %p68
      %p70 = scmp.ne.s32.totalorder %s59, %s62
      %p71 = scmp.eq.s32.totalorder %s28, 1
      %p72 = por %p70, %p71
      %p73 = scmp.ne.s32.totalorder %s62, %s63
      %p74 = scmp.eq.s32.totalorder %s28, 0
      %p75 = por %p73, %p74
      %p76 = scmp.ne.s32.totalorder %s62, %s63
      %p77 = scmp.eq.s32.totalorder %s29, 1
      %p78 = por %p76, %p77
      %p80 = scmp.ne.s32.totalorder %s63, %s79
      %p81 = scmp.eq.s32.totalorder %s29, 0
      %p82 = por %p80, %p81
      %s84 = sadd.s32 %s83, 1
      %p87 = scmp.eq.s32.totalorder %s23, 1
      %p88 = scmp.ne.s32.totalorder %s83, %s85
      %p89 = scmp.eq.s32.totalorder %s23, 0
      %p90 = por %p88, %p89
      %p91 = scmp.ne.s32.totalorder %s83, %s85
      %p92 = scmp.eq.s32.totalorder %s28, 1
      %p93 = por %p91, %p92
      %p94 = scmp.ne.s32.totalorder %s85, %s86
      %p95 = scmp.eq.s32.totalorder %s28, 0
      %p96 = por %p94, %p95
      %p97 = scmp.ne.s32.totalorder %s85, %s86
      %p98 = scmp.eq.s32.totalorder %s29, 1
      %p99 = por %p97, %p98
      %p101 = scmp.ne.s32.totalorder %s86, %s100
      %p102 = scmp.eq.s32.totalorder %s29, 0
      %p103 = por %p101, %p102
      %s105 = sadd.s32 %s104, 1
      %p108 = scmp.eq.s32.totalorder %s23, 1
      %p109 = scmp.ne.s32.totalorder %s104, %s106
      %p110 = scmp.eq.s32.totalorder %s23, 0
      %p111 = por %p109, %p110
      %p112 = scmp.ne.s32.totalorder %s104, %s106
      %p113 = scmp.eq.s32.totalorder %s28, 1
      %p114 = por %p112, %p113
      %p115 = scmp.ne.s32.totalorder %s106, %s107
      %p116 = scmp.eq.s32.totalorder %s28, 0
      %p117 = por %p115, %p116
      %p118 = scmp.ne.s32.totalorder %s106, %s107
      %p119 = scmp.eq.s32.totalorder %s29, 1
      %p120 = por %p118, %p119
      %p122 = scmp.ne.s32.totalorder %s107, %s121
      %p123 = scmp.eq.s32.totalorder %s29, 0
      %p124 = por %p122, %p123
      %s126 = sadd.s32 %s125, 1
      %p129 = scmp.eq.s32.totalorder %s23, 1
      %p130 = scmp.ne.s32.totalorder %s125, %s127
      %p131 = scmp.eq.s32.totalorder %s23, 0
      %p132 = por %p130, %p131
      %p133 = scmp.ne.s32.totalorder %s125, %s127
      %p134 = scmp.eq.s32.totalorder %s28, 1
      %p135 = por %p133, %p134
      %p136 = scmp.ne.s32.totalorder %s127, %s128
      %p137 = scmp.eq.s32.totalorder %s28, 0
      %p138 = por %p136, %p137
      %p139 = scmp.ne.s32.totalorder %s127, %s128
      %p140 = scmp.eq.s32.totalorder %s29, 1
      %p141 = por %p139, %p140
      %p143 = scmp.ne.s32.totalorder %s128, %s142
      %p144 = scmp.eq.s32.totalorder %s29, 0
      %p145 = por %p143, %p144
      %s147 = sadd.s32 %s146, 1
      %p150 = scmp.eq.s32.totalorder %s23, 1
      %p151 = scmp.ne.s32.totalorder %s146, %s148
      %p152 = scmp.eq.s32.totalorder %s23, 0
      %p153 = por %p151, %p152
      %p154 = scmp.ne.s32.totalorder %s146, %s148
      %p155 = scmp.eq.s32.totalorder %s28, 1
      %p156 = por %p154, %p155
      %p157 = scmp.ne.s32.totalorder %s148, %s149
      %p158 = scmp.eq.s32.totalorder %s28, 0
      %p159 = por %p157, %p158
      %p160 = scmp.ne.s32.totalorder %s148, %s149
      %p161 = scmp.eq.s32.totalorder %s29, 1
      %p162 = por %p160, %p161
      %p164 = scmp.ne.s32.totalorder %s149, %s163
      %p165 = scmp.eq.s32.totalorder %s29, 0
      %p166 = por %p164, %p165
      %s168 = sadd.s32 %s167, 1
      %p171 = scmp.eq.s32.totalorder %s23, 1
      %p172 = scmp.ne.s32.totalorder %s167, %s169
      %p173 = scmp.eq.s32.totalorder %s23, 0
      %p174 = por %p172, %p173
      %p175 = scmp.ne.s32.totalorder %s167, %s169
      %p176 = scmp.eq.s32.totalorder %s28, 1
      %p177 = por %p175, %p176
      %p178 = scmp.ne.s32.totalorder %s169, %s170
      %p179 = scmp.eq.s32.totalorder %s28, 0
      %p180 = por %p178, %p179
      %p181 = scmp.ne.s32.totalorder %s169, %s170
      %p182 = scmp.eq.s32.totalorder %s29, 1
      %p183 = por %p181, %p182
      %p185 = scmp.ne.s32.totalorder %s170, %s184
      %p186 = scmp.eq.s32.totalorder %s29, 0
      %p187 = por %p185, %p186
      %s189 = sadd.s32 %s188, 1
      %p192 = scmp.eq.s32.totalorder %s23, 1
      %p193 = scmp.ne.s32.totalorder %s188, %s190
      %p194 = scmp.eq.s32.totalorder %s23, 0
      %p195 = por %p193, %p194
      %p196 = scmp.ne.s32.totalorder %s188, %s190
      %p197 = scmp.eq.s32.totalorder %s28, 1
      %p198 = por %p196, %p197
      %p199 = scmp.ne.s32.totalorder %s190, %s191
      %p200 = scmp.eq.s32.totalorder %s28, 0
      %p201 = por %p199, %p200
      %p202 = scmp.ne.s32.totalorder %s190, %s191
      %p203 = scmp.eq.s32.totalorder %s29, 1
      %p204 = por %p202, %p203
      %p206 = scmp.ne.s32.totalorder %s191, %s205
      %p207 = scmp.eq.s32.totalorder %s29, 0
      %p208 = por %p206, %p207
      %s210 = sadd.s32 %s209, 1
      %p213 = scmp.eq.s32.totalorder %s23, 1
      %p214 = scmp.ne.s32.totalorder %s209, %s211
      %p215 = scmp.eq.s32.totalorder %s23, 0
      %p216 = por %p214, %p215
      %p217 = scmp.ne.s32.totalorder %s209, %s211
      %p218 = scmp.eq.s32.totalorder %s28, 1
      %p219 = por %p217, %p218
      %p220 = scmp.ne.s32.totalorder %s211, %s212
      %p221 = scmp.eq.s32.totalorder %s28, 0
      %p222 = por %p220, %p221
      %p223 = scmp.ne.s32.totalorder %s211, %s212
      %p224 = scmp.eq.s32.totalorder %s29, 1
      %p225 = por %p223, %p224
      %p227 = scmp.ne.s32.totalorder %s212, %s226
      %p228 = scmp.eq.s32.totalorder %s29, 0
      %p229 = por %p227, %p228
      %s231 = sadd.s32 %s230, 1
      %p234 = scmp.eq.s32.totalorder %s23, 1
      %p235 = scmp.ne.s32.totalorder %s230, %s232
      %p236 = scmp.eq.s32.totalorder %s23, 0
      %p237 = por %p235, %p236
      %p238 = scmp.ne.s32.totalorder %s230, %s232
      %p239 = scmp.eq.s32.totalorder %s28, 1
      %p240 = por %p238, %p239
      %p241 = scmp.ne.s32.totalorder %s232, %s233
      %p242 = scmp.eq.s32.totalorder %s28, 0
      %p243 = por %p241, %p242
      %p244 = scmp.ne.s32.totalorder %s232, %s233
      %p245 = scmp.eq.s32.totalorder %s29, 1
      %p246 = por %p244, %p245
      %p248 = scmp.ne.s32.totalorder %s233, %s247
      %p249 = scmp.eq.s32.totalorder %s29, 0
      %p250 = por %p248, %p249
      %s252 = sadd.s32 %s251, 1
      %p255 = scmp.eq.s32.totalorder %s23, 1
      %p256 = scmp.ne.s32.totalorder %s251, %s253
      %p257 = scmp.eq.s32.totalorder %s23, 0
      %p258 = por %p256, %p257
      %p259 = scmp.ne.s32.totalorder %s251, %s253
      %p260 = scmp.eq.s32.totalorder %s28, 1
      %p261 = por %p259, %p260
      %p262 = scmp.ne.s32.totalorder %s253, %s254
      %p263 = scmp.eq.s32.totalorder %s28, 0
      %p264 = por %p262, %p263
      %p265 = scmp.ne.s32.totalorder %s253, %s254
      %p266 = scmp.eq.s32.totalorder %s29, 1
      %p267 = por %p265, %p266
      %p269 = scmp.ne.s32.totalorder %s254, %s268
      %p270 = scmp.eq.s32.totalorder %s29, 0
      %p271 = por %p269, %p270
      %s273 = sadd.s32 %s272, 1
      %p276 = scmp.eq.s32.totalorder %s23, 1
      %p277 = scmp.ne.s32.totalorder %s272, %s274
      %p278 = scmp.eq.s32.totalorder %s23, 0
      %p279 = por %p277, %p278
      %p280 = scmp.ne.s32.totalorder %s272, %s274
      %p281 = scmp.eq.s32.totalorder %s28, 1
      %p282 = por %p280, %p281
      %p283 = scmp.ne.s32.totalorder %s274, %s275
      %p284 = scmp.eq.s32.totalorder %s28, 0
      %p285 = por %p283, %p284
      %p286 = scmp.ne.s32.totalorder %s274, %s275
      %p287 = scmp.eq.s32.totalorder %s29, 1
      %p288 = por %p286, %p287
      %p290 = scmp.ne.s32.totalorder %s275, %s289
      %p291 = scmp.eq.s32.totalorder %s29, 0
      %p292 = por %p290, %p291
      %s294 = sadd.s32 %s293, 1
      %p297 = scmp.eq.s32.totalorder %s23, 1
      %p298 = scmp.ne.s32.totalorder %s293, %s295
      %p299 = scmp.eq.s32.totalorder %s23, 0
      %p300 = por %p298, %p299
      %p301 = scmp.ne.s32.totalorder %s293, %s295
      %p302 = scmp.eq.s32.totalorder %s28, 1
      %p303 = por %p301, %p302
      %p304 = scmp.ne.s32.totalorder %s295, %s296
      %p305 = scmp.eq.s32.totalorder %s28, 0
      %p306 = por %p304, %p305
      %p307 = scmp.ne.s32.totalorder %s295, %s296
      %p308 = scmp.eq.s32.totalorder %s29, 1
      %p309 = por %p307, %p308
      %p311 = scmp.ne.s32.totalorder %s296, %s310
      %p312 = scmp.eq.s32.totalorder %s29, 0
      %p313 = por %p311, %p312
      %s315 = sadd.s32 %s314, 1
      %p318 = scmp.eq.s32.totalorder %s23, 1
      %p319 = scmp.ne.s32.totalorder %s314, %s316
      %p320 = scmp.eq.s32.totalorder %s23, 0
      %p321 = por %p319, %p320
      %p322 = scmp.ne.s32.totalorder %s314, %s316
      %p323 = scmp.eq.s32.totalorder %s28, 1
      %p324 = por %p322, %p323
      %p325 = scmp.ne.s32.totalorder %s316, %s317
      %p326 = scmp.eq.s32.totalorder %s28, 0
      %p327 = por %p325, %p326
      %p328 = scmp.ne.s32.totalorder %s316, %s317
      %p329 = scmp.eq.s32.totalorder %s29, 1
      %p330 = por %p328, %p329
      %p332 = scmp.ne.s32.totalorder %s317, %s331
      %p333 = scmp.eq.s32.totalorder %s29, 0
      %p334 = por %p332, %p333
      %s335 = ssub.s32 %s23, %s30
      %p336 = scmp.eq.s32.totalorder %s335, 0
      %s338 = sadd.s32 %s337, 1
      %s339 = scalar_select %p336, %s337, %s338
      %p342 = pneg %p336
      %p343 = scmp.eq.s32.totalorder %s23, 1
      %p344 = por %p342, %p343
      %p345 = scmp.ne.s32.totalorder %s337, %s340
      %p346 = scmp.eq.s32.totalorder %s23, 0
      %p347 = por %p345, %p346
      %p348 = scmp.ne.s32.totalorder %s337, %s340
      %p349 = scmp.eq.s32.totalorder %s28, 1
      %p350 = por %p348, %p349
      %p351 = scmp.ne.s32.totalorder %s340, %s341
      %p352 = scmp.eq.s32.totalorder %s28, 0
      %p353 = por %p351, %p352
      %p354 = scmp.ne.s32.totalorder %s340, %s341
      %p355 = scmp.eq.s32.totalorder %s29, 1
      %p356 = por %p354, %p355
      %p358 = scmp.ne.s32.totalorder %s341, %s357
      %p359 = scmp.eq.s32.totalorder %s29, 0
      %p360 = por %p358, %p359
      %p361 = scmp.le.s32.totalorder 1, %s23
      %p362 = scmp.lt.s32.totalorder %s23, 3
      %p363 = pnand %p361, %p362
      %p364 = pneg %p363
      // Predicated region
      $region9: #{tpu_custom_call.1} parent=5 // pred_check
        _
      $region10: #{tpu_custom_call.1} parent=5 // pred_check_branch
        %366 = sbr.rel (%p363) target = $region12
      $region11: #{tpu_custom_call.1} parent=5 // pred_region
        %s367 = ssub.s32 %s23, 1
        // Predicated region
        $region13: #{tpu_custom_call.1} parent=11 // pred_check
          %p368 = pneg %p96
        $region14: #{tpu_custom_call.1} parent=11 // pred_check_branch
          %370 = sbr.rel (%p368) target = $region16
        $region15: #{tpu_custom_call.1} parent=11 // pred_region
          _
        $region16: #{tpu_custom_call.1} parent=11 // pred_fallthru
          _
        // Predicated region
        $region17: #{tpu_custom_call.1} parent=11 // pred_check
          %p371 = pneg %p117
        $region18: #{tpu_custom_call.1} parent=11 // pred_check_branch
          %373 = sbr.rel (%p371) target = $region20
        $region19: #{tpu_custom_call.1} parent=11 // pred_region
          _
        $region20: #{tpu_custom_call.1} parent=11 // pred_fallthru
          _
        // Predicated region
        $region21: #{tpu_custom_call.1} parent=11 // pred_check
          %p374 = pneg %p138
        $region22: #{tpu_custom_call.1} parent=11 // pred_check_branch
          %376 = sbr.rel (%p374) target = $region24
        $region23: #{tpu_custom_call.1} parent=11 // pred_region
          _
        $region24: #{tpu_custom_call.1} parent=11 // pred_fallthru
          _
        // Predicated region
        $region25: #{tpu_custom_call.1} parent=11 // pred_check
          %p377 = pneg %p159
        $region26: #{tpu_custom_call.1} parent=11 // pred_check_branch
          %379 = sbr.rel (%p377) target = $region28
        $region27: #{tpu_custom_call.1} parent=11 // pred_region
          _
        $region28: #{tpu_custom_call.1} parent=11 // pred_fallthru
          _
        // Predicated region
        $region29: #{tpu_custom_call.1} parent=11 // pred_check
          %p380 = pneg %p180
        $region30: #{tpu_custom_call.1} parent=11 // pred_check_branch
          %382 = sbr.rel (%p380) target = $region32
        $region31: #{tpu_custom_call.1} parent=11 // pred_region
          _
        $region32: #{tpu_custom_call.1} parent=11 // pred_fallthru
          _
        // Predicated region
        $region33: #{tpu_custom_call.1} parent=11 // pred_check
          %p383 = pneg %p201
        $region34: #{tpu_custom_call.1} parent=11 // pred_check_branch
          %385 = sbr.rel (%p383) target = $region36
        $region35: #{tpu_custom_call.1} parent=11 // pred_region
          _
        $region36: #{tpu_custom_call.1} parent=11 // pred_fallthru
          _
        // Predicated region
        $region37: #{tpu_custom_call.1} parent=11 // pred_check
          %p386 = pneg %p222
        $region38: #{tpu_custom_call.1} parent=11 // pred_check_branch
          %388 = sbr.rel (%p386) target = $region40
        $region39: #{tpu_custom_call.1} parent=11 // pred_region
          _
        $region40: #{tpu_custom_call.1} parent=11 // pred_fallthru
          _
        // Predicated region
        $region41: #{tpu_custom_call.1} parent=11 // pred_check
          %p389 = pneg %p243
        $region42: #{tpu_custom_call.1} parent=11 // pred_check_branch
          %391 = sbr.rel (%p389) target = $region44
        $region43: #{tpu_custom_call.1} parent=11 // pred_region
          _
        $region44: #{tpu_custom_call.1} parent=11 // pred_fallthru
          _
        // Predicated region
        $region45: #{tpu_custom_call.1} parent=11 // pred_check
          %p392 = pneg %p264
        $region46: #{tpu_custom_call.1} parent=11 // pred_check_branch
          %394 = sbr.rel (%p392) target = $region48
        $region47: #{tpu_custom_call.1} parent=11 // pred_region
          _
        $region48: #{tpu_custom_call.1} parent=11 // pred_fallthru
          _
        // Predicated region
        $region49: #{tpu_custom_call.1} parent=11 // pred_check
          %p395 = pneg %p285
        $region50: #{tpu_custom_call.1} parent=11 // pred_check_branch
          %397 = sbr.rel (%p395) target = $region52
        $region51: #{tpu_custom_call.1} parent=11 // pred_region
          _
        $region52: #{tpu_custom_call.1} parent=11 // pred_fallthru
          _
        // Predicated region
        $region53: #{tpu_custom_call.1} parent=11 // pred_check
          %p398 = pneg %p306
        $region54: #{tpu_custom_call.1} parent=11 // pred_check_branch
          %400 = sbr.rel (%p398) target = $region56
        $region55: #{tpu_custom_call.1} parent=11 // pred_region
          _
        $region56: #{tpu_custom_call.1} parent=11 // pred_fallthru
          _
        // Predicated region
        $region57: #{tpu_custom_call.1} parent=11 // pred_check
          %p401 = pneg %p327
        $region58: #{tpu_custom_call.1} parent=11 // pred_check_branch
          %403 = sbr.rel (%p401) target = $region60
        $region59: #{tpu_custom_call.1} parent=11 // pred_region
          _
        $region60: #{tpu_custom_call.1} parent=11 // pred_fallthru
          _
      $region12: #{tpu_custom_call.1} parent=5 // pred_fallthru
        _
      %p404 = scmp.lt.s32.totalorder %s23, 2
      // Predicated region
      $region61: #{tpu_custom_call.1} parent=5 // pred_check
        %p405 = pneg %p404
      $region62: #{tpu_custom_call.1} parent=5 // pred_check_branch
        %407 = sbr.rel (%p405) target = $region64
      $region63: #{tpu_custom_call.1} parent=5 // pred_region
        // Predicated region
        $region65: #{tpu_custom_call.1} parent=63 // pred_check
          %p408 = pneg %p43
        $region66: #{tpu_custom_call.1} parent=63 // pred_check_branch
          %410 = sbr.rel (%p408) target = $region68
        $region67: #{tpu_custom_call.1} parent=63 // pred_region
          %p411 = scmp.lt.s32.totalorder %s23, 1
          %s412 = scalar_select %p411, %s23, 1
          %s413 = smul.addr %s412, 8
          %s414 = smul.addr %s413, 8
          %s415 = scalar_lea.vmem %s0, %s414
        $region68: #{tpu_custom_call.1} parent=63 // pred_fallthru
          _
        // Predicated region
        $region69: #{tpu_custom_call.1} parent=63 // pred_check
          %p416 = pneg %p69
        $region70: #{tpu_custom_call.1} parent=63 // pred_check_branch
          %418 = sbr.rel (%p416) target = $region72
        $region71: #{tpu_custom_call.1} parent=63 // pred_region
          %p419 = scmp.lt.s32.totalorder %s23, 1
          %s420 = scalar_select %p419, %s23, 1
          %s421 = smul.addr %s420, 32
          %s422 = smul.addr %s421, 8
          %s423 = scalar_lea.vmem %s1, %s422
        $region72: #{tpu_custom_call.1} parent=63 // pred_fallthru
          _
      $region64: #{tpu_custom_call.1} parent=5 // pred_fallthru
        _
      %p424 = scmp.le.s32.totalorder 1, %s23
      %p425 = scmp.lt.s32.totalorder %s23, 3
      %p426 = pnand %p424, %p425
      %p427 = pneg %p426
      // Predicated region
      $region73: #{tpu_custom_call.1} parent=5 // pred_check
        _
      $region74: #{tpu_custom_call.1} parent=5 // pred_check_branch
        %429 = sbr.rel (%p426) target = $region76
      $region75: #{tpu_custom_call.1} parent=5 // pred_region
        %s430 = ssub.s32 %s23, 1
        %p431 = scmp.lt.s32.totalorder %s28, 1
        %s432 = scalar_select %p431, %s28, 1
        %s433 = smul.addr %s432, 8
        %s434 = smul.addr %s433, 8
        %s435 = scalar_lea.vmem %s0, %s434
        %p436 = pneg %p49
        %p437 = pneg %p46
        %p438 = scmp.lt.s32.totalorder %s28, 1
        %s439 = scalar_select %p438, %s28, 1
        %s440 = smul.addr %s439, 32
        %s441 = smul.addr %s440, 8
        %s442 = scalar_lea.vmem %s1, %s441
        %p443 = pneg %p75
        %p444 = pneg %p72
        %p445 = pneg %p96
        %p446 = pneg %p93
        %p447 = pneg %p117
        %p448 = pneg %p114
        %p449 = pneg %p138
        %p450 = pneg %p135
        %p451 = pneg %p159
        %p452 = pneg %p156
        %p453 = pneg %p180
        %p454 = pneg %p177
        %p455 = pneg %p201
        %p456 = pneg %p198
        %p457 = pneg %p222
        %p458 = pneg %p219
        %p459 = pneg %p243
        %p460 = pneg %p240
        %p461 = pneg %p264
        %p462 = pneg %p261
        %p463 = pneg %p285
        %p464 = pneg %p282
        %p465 = pneg %p306
        %p466 = pneg %p303
        %p467 = pneg %p327
        %p468 = pneg %p324
        %p469 = pneg %p353
        %p470 = pneg %p350
        %s471 = sand.u32 %s340, 1
        %s472 = scalar_lea.sflag [#allocation5], %s471
        %s473 = sand.u32 %s340, 1
        %s474 = smul.addr %s473, 16
        %s475 = scalar_lea.vmem [#allocation4], %s474
        %p476 = scmp.lt.s32.totalorder %s28, 1
        %s477 = scalar_select %p476, %s28, 1
        %s478 = smul.addr %s477, 8
        %s479 = smul.addr %s478, 8
        %s480 = scalar_lea.vmem %s0, %s479
        %p481 = scmp.lt.s32.totalorder %s28, 1
        %s482 = scalar_select %p481, %s28, 1
        %s483 = smul.addr %s482, 32
        %s484 = smul.addr %s483, 8
        %s485 = scalar_lea.vmem %s1, %s484
        %v486 = vld [vmem:[%s480] sm:$0xff]
        %v487 = vld [vmem:[%s480 + $0x8] sm:$0xff]
        %v488 = vld [vmem:[%s480 + $0x10] sm:$0xff]
        %v489 = vld [vmem:[%s480 + $0x18] sm:$0xff]
        %v490 = vld [vmem:[%s480 + $0x20] sm:$0xff]
        %v491 = vld [vmem:[%s480 + $0x28] sm:$0xff]
        %v492 = vld [vmem:[%s480 + $0x30] sm:$0xff]
        %v493 = vld [vmem:[%s480 + $0x38] sm:$0xff]
        %v494 = vld [vmem:[%s485] sm:$0xff]
        %v495 = vld [vmem:[%s485 + $0x8] sm:$0xff]
        %v496 = vld [vmem:[%s485 + $0x10] sm:$0xff]
        %v497 = vld [vmem:[%s485 + $0x18] sm:$0xff]
        %v498 = vld [vmem:[%s485 + $0x20] sm:$0xff]
        %v499 = vld [vmem:[%s485 + $0x28] sm:$0xff]
        %v500 = vld [vmem:[%s485 + $0x30] sm:$0xff]
        %v501 = vld [vmem:[%s485 + $0x38] sm:$0xff]
        %v502 = vld [vmem:[%s485 + $0x40] sm:$0xff]
        %v503 = vld [vmem:[%s485 + $0x48] sm:$0xff]
        %v504 = vld [vmem:[%s485 + $0x50] sm:$0xff]
        %v505 = vld [vmem:[%s485 + $0x58] sm:$0xff]
        %v506 = vld [vmem:[%s485 + $0x60] sm:$0xff]
        %v507 = vld [vmem:[%s485 + $0x68] sm:$0xff]
        %v508 = vld [vmem:[%s485 + $0x70] sm:$0xff]
        %v509 = vld [vmem:[%s485 + $0x78] sm:$0xff]
        %v510 = vld [vmem:[%s485 + $0x80] sm:$0xff]
        %v511 = vld [vmem:[%s485 + $0x88] sm:$0xff]
        %v512 = vld [vmem:[%s485 + $0x90] sm:$0xff]
        %v513 = vld [vmem:[%s485 + $0x98] sm:$0xff]
        %v514 = vld [vmem:[%s485 + $0xa0] sm:$0xff]
        %v515 = vld [vmem:[%s485 + $0xa8] sm:$0xff]
        %v516 = vld [vmem:[%s485 + $0xb0] sm:$0xff]
        %v517 = vld [vmem:[%s485 + $0xb8] sm:$0xff]
        %v518 = vld [vmem:[%s485 + $0xc0] sm:$0xff]
        %v519 = vld [vmem:[%s485 + $0xc8] sm:$0xff]
        %v520 = vld [vmem:[%s485 + $0xd0] sm:$0xff]
        %v521 = vld [vmem:[%s485 + $0xd8] sm:$0xff]
        %v522 = vld [vmem:[%s485 + $0xe0] sm:$0xff]
        %v523 = vld [vmem:[%s485 + $0xe8] sm:$0xff]
        %v524 = vld [vmem:[%s485 + $0xf0] sm:$0xff]
        %v525 = vld [vmem:[%s485 + $0xf8] sm:$0xff]
        %v526 = vld [vmem:[%s2] sm:$0xff]
        %v527 = vld [vmem:[%s2 + $0x8] sm:$0xff]
        %v528 = vld [vmem:[%s3] sm:$0x1]
        %v530 = vlaneseq
        %v531 = vshrl.u32 %v530, 7
        %v532 = vsub.s32 0, %v531
        %v533 = vrot.slane %v528, %v532
        %vm535 = vcmask 130048
        %v537 = vsel %vm535, %v486, 0
        %v540 = vsel %vm535, %v487, 0
        %v543 = vsel %vm535, %v488, 0
        %v546 = vsel %vm535, %v489, 0
        %v549 = vsel %vm535, %v490, 0
        %v552 = vsel %vm535, %v491, 0
        %v555 = vsel %vm535, %v492, 0
        %v558 = vsel %vm535, %v493, 0
        %560 = vmatprep.subr.mxu0 0.0
        %561 = vmatpush1.msra.mxu0 %v526
        %562 = vmatprep.subr.mxu0 0.0
        %563 = vmatpush1.msra.mxu0 %v527
        %564 = vmatprep.subr.mxu0 0.0
        %565 = vmatpush1.msra.mxu0 0.0
        %566 = vmatprep.subr.mxu0 0.0
        %567 = vmatpush1.msra.mxu0 0.0
        %568 = vmatprep.subr.mxu0 0.0
        %569 = vmatpush1.msra.mxu0 0.0
        %570 = vmatprep.subr.mxu0 0.0
        %571 = vmatpush1.msra.mxu0 0.0
        %572 = vmatprep.subr.mxu0 0.0
        %573 = vmatpush1.msra.mxu0 0.0
        %574 = vmatprep.subr.mxu0 0.0
        %575 = vmatpush1.msra.mxu0 0.0
        %576 = vmatprep.subr.mxu0 0.0
        %577 = vmatpush1.msra.mxu0 0.0
        %578 = vmatprep.subr.mxu0 0.0
        %579 = vmatpush1.msra.mxu0 0.0
        %580 = vmatprep.subr.mxu0 0.0
        %581 = vmatpush1.msra.mxu0 0.0
        %582 = vmatprep.subr.mxu0 0.0
        %583 = vmatpush1.msra.mxu0 0.0
        %584 = vmatprep.subr.mxu0 0.0
        %585 = vmatpush1.msra.mxu0 0.0
        %586 = vmatprep.subr.mxu0 0.0
        %587 = vmatpush1.msra.mxu0 0.0
        %588 = vmatprep.subr.mxu0 0.0
        %589 = vmatpush1.msra.mxu0 0.0
        %590 = vmatprep.subr.mxu0 0.0
        %591 = vmatpush1.msra.mxu0 0.0
        %592 = vmatprep.subr.mxu0 0.0
        %593 = vmatpush1.msra.mxu0 0.0
        %594 = vmatprep.subr.mxu0 0.0
        %595 = vmatpush1.msra.mxu0 0.0
        %596 = vmatprep.subr.mxu0 0.0
        %597 = vmatpush1.msra.mxu0 0.0
        %598 = vmatprep.subr.mxu0 0.0
        %599 = vmatpush1.msra.mxu0 0.0
        %600 = vmatprep.subr.mxu0 0.0
        %601 = vmatpush1.msra.mxu0 0.0
        %602 = vmatprep.subr.mxu0 0.0
        %603 = vmatpush1.msra.mxu0 0.0
        %604 = vmatprep.subr.mxu0 0.0
        %605 = vmatpush1.msra.mxu0 0.0
        %606 = vmatprep.subr.mxu0 0.0
        %607 = vmatpush1.msra.mxu0 0.0
        %608 = vmatprep.subr.mxu0 0.0
        %609 = vmatpush1.msra.mxu0 0.0
        %610 = vmatprep.subr.mxu0 0.0
        %611 = vmatpush1.msra.mxu0 0.0
        %612 = vmatprep.subr.mxu0 0.0
        %613 = vmatpush1.msra.mxu0 0.0
        %614 = vmatprep.subr.mxu0 0.0
        %615 = vmatpush1.msra.mxu0 0.0
        %616 = vmatprep.subr.mxu0 0.0
        %617 = vmatpush1.msra.mxu0 0.0
        %618 = vmatprep.subr.mxu0 0.0
        %619 = vmatpush1.msra.mxu0 0.0
        %620 = vmatprep.subr.mxu0 0.0
        %621 = vmatpush1.msra.mxu0 0.0
        %622 = vmatprep.subr.mxu0 0.0
        %623 = vmatpush1.msra.mxu0 0.0
        %624 = vmatprep.mubr.f32.mxu0 0.0
        %625 = vmatmul.mubr.f32.gmra.mrb[0].mxu0 %v537
        %v626 = vpop.f32.mrb[0].mxu0
        %v627 = vadd.f32 %v533, %v626
        %v628 = vpop.f32.mrb[0].mxu0
        %629 = vmatprep.mubr.f32.mxu0 0.0
        %630 = vmatmul.mubr.f32.gmra.mrb[0].mxu0 %v540
        %v631 = vpop.f32.mrb[0].mxu0
        %v632 = vadd.f32 %v533, %v631
        %v633 = vpop.f32.mrb[0].mxu0
        %634 = vmatprep.mubr.f32.mxu0 0.0
        %635 = vmatmul.mubr.f32.gmra.mrb[0].mxu0 %v543
        %v636 = vpop.f32.mrb[0].mxu0
        %v637 = vadd.f32 %v533, %v636
        %v638 = vpop.f32.mrb[0].mxu0
        %639 = vmatprep.mubr.f32.mxu0 0.0
        %640 = vmatmul.mubr.f32.gmra.mrb[0].mxu0 %v546
        %v641 = vpop.f32.mrb[0].mxu0
        %v642 = vadd.f32 %v533, %v641
        %v643 = vpop.f32.mrb[0].mxu0
        %644 = vmatprep.mubr.f32.mxu0 0.0
        %645 = vmatmul.mubr.f32.gmra.mrb[0].mxu0 %v549
        %v646 = vpop.f32.mrb[0].mxu0
        %v647 = vadd.f32 %v533, %v646
        %v648 = vpop.f32.mrb[0].mxu0
        %649 = vmatprep.mubr.f32.mxu0 0.0
        %650 = vmatmul.mubr.f32.gmra.mrb[0].mxu0 %v552
        %v651 = vpop.f32.mrb[0].mxu0
        %v652 = vadd.f32 %v533, %v651
        %v653 = vpop.f32.mrb[0].mxu0
        %654 = vmatprep.mubr.f32.mxu0 0.0
        %655 = vmatmul.mubr.f32.gmra.mrb[0].mxu0 %v555
        %v656 = vpop.f32.mrb[0].mxu0
        %v657 = vadd.f32 %v533, %v656
        %v658 = vpop.f32.mrb[0].mxu0
        %659 = vmatprep.mubr.f32.mxu0 0.0
        %660 = vmatmul.mubr.f32.gmra.mrb[0].mxu0 %v558
        %v661 = vpop.f32.mrb[0].mxu0
        %v662 = vadd.f32 %v533, %v661
        %v663 = vpop.f32.mrb[0].mxu0
        %664 = vdwg.mxu0
        %vm665 = vcmp.gt.f32.partialorder %v627, 0.0
        %vm666 = vcmp.gt.f32.partialorder %v632, 0.0
        %vm667 = vcmp.gt.f32.partialorder %v637, 0.0
        %vm668 = vcmp.gt.f32.partialorder %v642, 0.0
        %vm669 = vcmp.gt.f32.partialorder %v647, 0.0
        %vm670 = vcmp.gt.f32.partialorder %v652, 0.0
        %vm671 = vcmp.gt.f32.partialorder %v657, 0.0
        %vm672 = vcmp.gt.f32.partialorder %v662, 0.0
        %v673 = vadd.f32 %v627, 1.0
        %v674 = vadd.f32 %v632, 1.0
        %v675 = vadd.f32 %v637, 1.0
        %v676 = vadd.f32 %v642, 1.0
        %v677 = vadd.f32 %v647, 1.0
        %v678 = vadd.f32 %v652, 1.0
        %v679 = vadd.f32 %v657, 1.0
        %v680 = vadd.f32 %v662, 1.0
        %v681 = vmin.f32 %v627, 0.0
        %v682 = vmin.f32 %v632, 0.0
        %v683 = vmin.f32 %v637, 0.0
        %v684 = vmin.f32 %v642, 0.0
        %v685 = vmin.f32 %v647, 0.0
        %v686 = vmin.f32 %v652, 0.0
        %v687 = vmin.f32 %v657, 0.0
        %v688 = vmin.f32 %v662, 0.0
        %v689 = vmul.f32 %v681, 1.442695
        %v690 = vpow.pop %v689
        %v691 = vmul.f32 %v682, 1.442695
        %v692 = vpow.pop %v691
        %v693 = vmul.f32 %v683, 1.442695
        %v694 = vpow.pop %v693
        %v695 = vmul.f32 %v684, 1.442695
        %v696 = vpow.pop %v695
        %v697 = vmul.f32 %v685, 1.442695
        %v698 = vpow.pop %v697
        %v699 = vmul.f32 %v686, 1.442695
        %v700 = vpow.pop %v699
        %v701 = vmul.f32 %v687, 1.442695
        %v702 = vpow.pop %v701
        %v703 = vmul.f32 %v688, 1.442695
        %v704 = vpow.pop %v703
        %v705 = vsel %vm665, %v673, %v690
        %v706 = vsel %vm666, %v674, %v692
        %v707 = vsel %vm667, %v675, %v694
        %v708 = vsel %vm668, %v676, %v696
        %v709 = vsel %vm669, %v677, %v698
        %v710 = vsel %vm670, %v678, %v700
        %v711 = vsel %vm671, %v679, %v702
        %v712 = vsel %vm672, %v680, %v704
        %v713 = vld [vmem:[%s4] sm:$0xff]
        %v714 = vld [vmem:[%s4 + $0x8] sm:$0xff]
        %v715 = vld [vmem:[%s4 + $0x10] sm:$0xff]
        %v716 = vld [vmem:[%s4 + $0x18] sm:$0xff]
        %vm717 = vcmask 261120
        %v719 = vsel %vm717, %v705, 0
        %v722 = vsel %vm717, %v706, 0
        %v725 = vsel %vm717, %v707, 0
        %v728 = vsel %vm717, %v708, 0
        %v731 = vsel %vm717, %v709, 0
        %v734 = vsel %vm717, %v710, 0
        %v737 = vsel %vm717, %v711, 0
        %v740 = vsel %vm717, %v712, 0
        %742 = vmatprep.subr.mxu0 0.0
        %743 = vmatpush1.msra.mxu0 %v713
        %744 = vmatprep.subr.mxu0 0.0
        %745 = vmatpush1.msra.mxu0 %v714
        %746 = vmatprep.subr.mxu0 0.0
        %747 = vmatpush1.msra.mxu0 %v715
        %748 = vmatprep.subr.mxu0 0.0
        %749 = vmatpush1.msra.mxu0 %v716
        %750 = vmatprep.subr.mxu0 0.0
        %751 = vmatpush1.msra.mxu0 0.0
        %752 = vmatprep.subr.mxu0 0.0
        %753 = vmatpush1.msra.mxu0 0.0
        %754 = vmatprep.subr.mxu0 0.0
        %755 = vmatpush1.msra.mxu0 0.0
        %756 = vmatprep.subr.mxu0 0.0
        %757 = vmatpush1.msra.mxu0 0.0
        %758 = vmatprep.subr.mxu0 0.0
        %759 = vmatpush1.msra.mxu0 0.0
        %760 = vmatprep.subr.mxu0 0.0
        %761 = vmatpush1.msra.mxu0 0.0
        %762 = vmatprep.subr.mxu0 0.0
        %763 = vmatpush1.msra.mxu0 0.0
        %764 = vmatprep.subr.mxu0 0.0
        %765 = vmatpush1.msra.mxu0 0.0
        %766 = vmatprep.subr.mxu0 0.0
        %767 = vmatpush1.msra.mxu0 0.0
        %768 = vmatprep.subr.mxu0 0.0
        %769 = vmatpush1.msra.mxu0 0.0
        %770 = vmatprep.subr.mxu0 0.0
        %771 = vmatpush1.msra.mxu0 0.0
        %772 = vmatprep.subr.mxu0 0.0
        %773 = vmatpush1.msra.mxu0 0.0
        %774 = vmatprep.subr.mxu0 0.0
        %775 = vmatpush1.msra.mxu0 0.0
        %776 = vmatprep.subr.mxu0 0.0
        %777 = vmatpush1.msra.mxu0 0.0
        %778 = vmatprep.subr.mxu0 0.0
        %779 = vmatpush1.msra.mxu0 0.0
        %780 = vmatprep.subr.mxu0 0.0
        %781 = vmatpush1.msra.mxu0 0.0
        %782 = vmatprep.subr.mxu0 0.0
        %783 = vmatpush1.msra.mxu0 0.0
        %784 = vmatprep.subr.mxu0 0.0
        %785 = vmatpush1.msra.mxu0 0.0
        %786 = vmatprep.subr.mxu0 0.0
        %787 = vmatpush1.msra.mxu0 0.0
        %788 = vmatprep.subr.mxu0 0.0
        %789 = vmatpush1.msra.mxu0 0.0
        %790 = vmatprep.subr.mxu0 0.0
        %791 = vmatpush1.msra.mxu0 0.0
        %792 = vmatprep.subr.mxu0 0.0
        %793 = vmatpush1.msra.mxu0 0.0
        %794 = vmatprep.subr.mxu0 0.0
        %795 = vmatpush1.msra.mxu0 0.0
        %796 = vmatprep.subr.mxu0 0.0
        %797 = vmatpush1.msra.mxu0 0.0
        %798 = vmatprep.subr.mxu0 0.0
        %799 = vmatpush1.msra.mxu0 0.0
        %800 = vmatprep.subr.mxu0 0.0
        %801 = vmatpush1.msra.mxu0 0.0
        %802 = vmatprep.subr.mxu0 0.0
        %803 = vmatpush1.msra.mxu0 0.0
        %804 = vmatprep.subr.mxu0 0.0
        %805 = vmatpush1.msra.mxu0 0.0
        %806 = vmatprep.mubr.f32.mxu0 0.0
        %807 = vmatmul.mubr.f32.gmra.mrb[0].mxu0 %v719
        %v808 = vpop.f32.mrb[0].mxu0
        %v809 = vadd.f32 0.0, %v808
        %v810 = vpop.f32.mrb[0].mxu0
        %811 = vmatprep.mubr.f32.mxu0 0.0
        %812 = vmatmul.mubr.f32.gmra.mrb[0].mxu0 %v722
        %v813 = vpop.f32.mrb[0].mxu0
        %v814 = vadd.f32 0.0, %v813
        %v815 = vpop.f32.mrb[0].mxu0
        %816 = vmatprep.mubr.f32.mxu0 0.0
        %817 = vmatmul.mubr.f32.gmra.mrb[0].mxu0 %v725
        %v818 = vpop.f32.mrb[0].mxu0
        %v819 = vadd.f32 0.0, %v818
        %v820 = vpop.f32.mrb[0].mxu0
        %821 = vmatprep.mubr.f32.mxu0 0.0
        %822 = vmatmul.mubr.f32.gmra.mrb[0].mxu0 %v728
        %v823 = vpop.f32.mrb[0].mxu0
        %v824 = vadd.f32 0.0, %v823
        %v825 = vpop.f32.mrb[0].mxu0
        %826 = vmatprep.mubr.f32.mxu0 0.0
        %827 = vmatmul.mubr.f32.gmra.mrb[0].mxu0 %v731
        %v828 = vpop.f32.mrb[0].mxu0
        %v829 = vadd.f32 0.0, %v828
        %v830 = vpop.f32.mrb[0].mxu0
        %831 = vmatprep.mubr.f32.mxu0 0.0
        %832 = vmatmul.mubr.f32.gmra.mrb[0].mxu0 %v734
        %v833 = vpop.f32.mrb[0].mxu0
        %v834 = vadd.f32 0.0, %v833
        %v835 = vpop.f32.mrb[0].mxu0
        %836 = vmatprep.mubr.f32.mxu0 0.0
        %837 = vmatmul.mubr.f32.gmra.mrb[0].mxu0 %v737
        %v838 = vpop.f32.mrb[0].mxu0
        %v839 = vadd.f32 0.0, %v838
        %v840 = vpop.f32.mrb[0].mxu0
        %841 = vmatprep.mubr.f32.mxu0 0.0
        %842 = vmatmul.mubr.f32.gmra.mrb[0].mxu0 %v740
        %v843 = vpop.f32.mrb[0].mxu0
        %v844 = vadd.f32 0.0, %v843
        %v845 = vpop.f32.mrb[0].mxu0
        %846 = vdwg.mxu0
        %v847 = vld [vmem:[%s5] sm:$0xff]
        %v848 = vld [vmem:[%s5 + $0x8] sm:$0xff]
        %v849 = vld [vmem:[%s5 + $0x10] sm:$0xff]
        %v850 = vld [vmem:[%s5 + $0x18] sm:$0xff]
        %v851 = vld [vmem:[%s5 + $0x20] sm:$0xff]
        %v852 = vld [vmem:[%s5 + $0x28] sm:$0xff]
        %v853 = vld [vmem:[%s5 + $0x30] sm:$0xff]
        %v854 = vld [vmem:[%s5 + $0x38] sm:$0xff]
        %v855 = vmul.f32 %v705, %v847
        %v856 = vmul.f32 %v706, %v848
        %v857 = vmul.f32 %v707, %v849
        %v858 = vmul.f32 %v708, %v850
        %v859 = vmul.f32 %v709, %v851
        %v860 = vmul.f32 %v710, %v852
        %v861 = vmul.f32 %v711, %v853
        %v862 = vmul.f32 %v712, %v854
        %v863 = vld [vmem:[%s6] sm:$0xff]
        %v864 = vld [vmem:[%s6 + $0x8] sm:$0xff]
        %v865 = vld [vmem:[%s6 + $0x10] sm:$0xff]
        %v866 = vld [vmem:[%s6 + $0x18] sm:$0xff]
        %v867 = vld [vmem:[%s6 + $0x20] sm:$0xff]
        %v868 = vld [vmem:[%s6 + $0x28] sm:$0xff]
        %v869 = vld [vmem:[%s6 + $0x30] sm:$0xff]
        %v870 = vld [vmem:[%s6 + $0x38] sm:$0xff]
        %v871 = vmul.f32 %v809, %v863
        %v872 = vmul.f32 %v814, %v864
        %v873 = vmul.f32 %v819, %v865
        %v874 = vmul.f32 %v824, %v866
        %v875 = vmul.f32 %v829, %v867
        %v876 = vmul.f32 %v834, %v868
        %v877 = vmul.f32 %v839, %v869
        %v878 = vmul.f32 %v844, %v870
        %v879 = vadd.f32 %v855, %v871
        %v880 = vadd.f32 %v856, %v872
        %v881 = vadd.f32 %v857, %v873
        %v882 = vadd.f32 %v858, %v874
        %v883 = vadd.f32 %v859, %v875
        %v884 = vadd.f32 %v860, %v876
        %v885 = vadd.f32 %v861, %v877
        %v886 = vadd.f32 %v862, %v878
        %v887 = vld [vmem:[%s7] sm:$0xff]
        %v888 = vld [vmem:[%s7 + $0x8] sm:$0xff]
        %889 = vrot.lane.b32.xlu0 %v705, 112
        %v890 = vpop.permute.xlu0 %889
        %891 = vrot.lane.b32.xlu0 %v706, 112
        %v892 = vpop.permute.xlu0 %891
        %893 = vrot.lane.b32.xlu0 %v707, 112
        %v894 = vpop.permute.xlu0 %893
        %895 = vrot.lane.b32.xlu0 %v708, 112
        %v896 = vpop.permute.xlu0 %895
        %897 = vrot.lane.b32.xlu0 %v709, 112
        %v898 = vpop.permute.xlu0 %897
        %899 = vrot.lane.b32.xlu0 %v710, 112
        %v900 = vpop.permute.xlu0 %899
        %901 = vrot.lane.b32.xlu0 %v711, 112
        %v902 = vpop.permute.xlu0 %901
        %903 = vrot.lane.b32.xlu0 %v712, 112
        %v904 = vpop.permute.xlu0 %903
        %v905 = vsel %vm535, %v890, 0
        %v907 = vsel %vm535, %v892, 0
        %v909 = vsel %vm535, %v894, 0
        %v911 = vsel %vm535, %v896, 0
        %v913 = vsel %vm535, %v898, 0
        %v915 = vsel %vm535, %v900, 0
        %v917 = vsel %vm535, %v902, 0
        %v919 = vsel %vm535, %v904, 0
        %921 = vmatprep.subr.mxu0 0.0
        %922 = vmatpush1.msra.mxu0 %v887
        %923 = vmatprep.subr.mxu0 0.0
        %924 = vmatpush1.msra.mxu0 %v888
        %925 = vmatprep.subr.mxu0 0.0
        %926 = vmatpush1.msra.mxu0 0.0
        %927 = vmatprep.subr.mxu0 0.0
        %928 = vmatpush1.msra.mxu0 0.0
        %929 = vmatprep.subr.mxu0 0.0
        %930 = vmatpush1.msra.mxu0 0.0
        %931 = vmatprep.subr.mxu0 0.0
        %932 = vmatpush1.msra.mxu0 0.0
        %933 = vmatprep.subr.mxu0 0.0
        %934 = vmatpush1.msra.mxu0 0.0
        %935 = vmatprep.subr.mxu0 0.0
        %936 = vmatpush1.msra.mxu0 0.0
        %937 = vmatprep.subr.mxu0 0.0
        %938 = vmatpush1.msra.mxu0 0.0
        %939 = vmatprep.subr.mxu0 0.0
        %940 = vmatpush1.msra.mxu0 0.0
        %941 = vmatprep.subr.mxu0 0.0
        %942 = vmatpush1.msra.mxu0 0.0
        %943 = vmatprep.subr.mxu0 0.0
        %944 = vmatpush1.msra.mxu0 0.0
        %945 = vmatprep.subr.mxu0 0.0
        %946 = vmatpush1.msra.mxu0 0.0
        %947 = vmatprep.subr.mxu0 0.0
        %948 = vmatpush1.msra.mxu0 0.0
        %949 = vmatprep.subr.mxu0 0.0
        %950 = vmatpush1.msra.mxu0 0.0
        %951 = vmatprep.subr.mxu0 0.0
        %952 = vmatpush1.msra.mxu0 0.0
        %953 = vmatprep.subr.mxu0 0.0
        %954 = vmatpush1.msra.mxu0 0.0
        %955 = vmatprep.subr.mxu0 0.0
        %956 = vmatpush1.msra.mxu0 0.0
        %957 = vmatprep.subr.mxu0 0.0
        %958 = vmatpush1.msra.mxu0 0.0
        %959 = vmatprep.subr.mxu0 0.0
        %960 = vmatpush1.msra.mxu0 0.0
        %961 = vmatprep.subr.mxu0 0.0
        %962 = vmatpush1.msra.mxu0 0.0
        %963 = vmatprep.subr.mxu0 0.0
        %964 = vmatpush1.msra.mxu0 0.0
        %965 = vmatprep.subr.mxu0 0.0
        %966 = vmatpush1.msra.mxu0 0.0
        %967 = vmatprep.subr.mxu0 0.0
        %968 = vmatpush1.msra.mxu0 0.0
        %969 = vmatprep.subr.mxu0 0.0
        %970 = vmatpush1.msra.mxu0 0.0
        %971 = vmatprep.subr.mxu0 0.0
        %972 = vmatpush1.msra.mxu0 0.0
        %973 = vmatprep.subr.mxu0 0.0
        %974 = vmatpush1.msra.mxu0 0.0
        %975 = vmatprep.subr.mxu0 0.0
        %976 = vmatpush1.msra.mxu0 0.0
        %977 = vmatprep.subr.mxu0 0.0
        %978 = vmatpush1.msra.mxu0 0.0
        %979 = vmatprep.subr.mxu0 0.0
        %980 = vmatpush1.msra.mxu0 0.0
        %981 = vmatprep.subr.mxu0 0.0
        %982 = vmatpush1.msra.mxu0 0.0
        %983 = vmatprep.subr.mxu0 0.0
        %984 = vmatpush1.msra.mxu0 0.0
        %985 = vmatprep.mubr.f32.mxu0 0.0
        %986 = vmatmul.mubr.f32.gmra.mrb[0].mxu0 %v905
        %v987 = vpop.f32.mrb[0].mxu0
        %v988 = vadd.f32 0.0, %v987
        %v989 = vpop.f32.mrb[0].mxu0
        %990 = vmatprep.mubr.f32.mxu0 0.0
        %991 = vmatmul.mubr.f32.gmra.mrb[0].mxu0 %v907
        %v992 = vpop.f32.mrb[0].mxu0
        %v993 = vadd.f32 0.0, %v992
        %v994 = vpop.f32.mrb[0].mxu0
        %995 = vmatprep.mubr.f32.mxu0 0.0
        %996 = vmatmul.mubr.f32.gmra.mrb[0].mxu0 %v909
        %v997 = vpop.f32.mrb[0].mxu0
        %v998 = vadd.f32 0.0, %v997
        %v999 = vpop.f32.mrb[0].mxu0
        %1000 = vmatprep.mubr.f32.mxu0 0.0
        %1001 = vmatmul.mubr.f32.gmra.mrb[0].mxu0 %v911
        %v1002 = vpop.f32.mrb[0].mxu0
        %v1003 = vadd.f32 0.0, %v1002
        %v1004 = vpop.f32.mrb[0].mxu0
        %1005 = vmatprep.mubr.f32.mxu0 0.0
        %1006 = vmatmul.mubr.f32.gmra.mrb[0].mxu0 %v913
        %v1007 = vpop.f32.mrb[0].mxu0
        %v1008 = vadd.f32 0.0, %v1007
        %v1009 = vpop.f32.mrb[0].mxu0
        %1010 = vmatprep.mubr.f32.mxu0 0.0
        %1011 = vmatmul.mubr.f32.gmra.mrb[0].mxu0 %v915
        %v1012 = vpop.f32.mrb[0].mxu0
        %v1013 = vadd.f32 0.0, %v1012
        %v1014 = vpop.f32.mrb[0].mxu0
        %1015 = vmatprep.mubr.f32.mxu0 0.0
        %1016 = vmatmul.mubr.f32.gmra.mrb[0].mxu0 %v917
        %v1017 = vpop.f32.mrb[0].mxu0
        %v1018 = vadd.f32 0.0, %v1017
        %v1019 = vpop.f32.mrb[0].mxu0
        %1020 = vmatprep.mubr.f32.mxu0 0.0
        %1021 = vmatmul.mubr.f32.gmra.mrb[0].mxu0 %v919
        %v1022 = vpop.f32.mrb[0].mxu0
        %v1023 = vadd.f32 0.0, %v1022
        %v1024 = vpop.f32.mrb[0].mxu0
        %1025 = vdwg.mxu0
        %v1026 = vld [vmem:[%s8] sm:$0xff]
        %v1027 = vld [vmem:[%s8 + $0x8] sm:$0xff]
        %v1028 = vld [vmem:[%s8 + $0x10] sm:$0xff]
        %v1029 = vld [vmem:[%s8 + $0x18] sm:$0xff]
        %v1030 = vld [vmem:[%s8 + $0x20] sm:$0xff]
        %v1031 = vld [vmem:[%s8 + $0x28] sm:$0xff]
        %v1032 = vld [vmem:[%s8 + $0x30] sm:$0xff]
        %v1033 = vld [vmem:[%s8 + $0x38] sm:$0xff]
        %1034 = vxpose.xlu0.b32.start [1/16] %v1026, 128
        %1035 = vxpose.xlu0.b32.cont [2/16] %v1027, 128
        %1036 = vxpose.xlu0.b32.cont [3/16] %v1028, 128
        %1037 = vxpose.xlu0.b32.cont [4/16] %v1029, 128
        %1038 = vxpose.xlu0.b32.cont [5/16] %v1030, 128
        %1039 = vxpose.xlu0.b32.cont [6/16] %v1031, 128
        %1040 = vxpose.xlu0.b32.cont [7/16] %v1032, 128
        %1041 = vxpose.xlu0.b32.cont [8/16] %v1033, 128
        %1042 = vxpose.xlu0.b32.cont [9/16] 0.0, 128
        %1043 = vxpose.xlu0.b32.cont [10/16] 0.0, 128
        %1044 = vxpose.xlu0.b32.cont [11/16] 0.0, 128
        %1045 = vxpose.xlu0.b32.cont [12/16] 0.0, 128
        %1046 = vxpose.xlu0.b32.cont [13/16] 0.0, 128
        %1047 = vxpose.xlu0.b32.cont [14/16] 0.0, 128
        %1048 = vxpose.xlu0.b32.cont [15/16] 0.0, 128
        %1049 = vxpose.xlu0.b32.end [16/16] 0.0, 128
        %v1050 = vpop.trf.xlu0
        %v1051 = vpop.trf.xlu0
        %v1052 = vpop.trf.xlu0
        %v1053 = vpop.trf.xlu0
        %v1054 = vpop.trf.xlu0
        %v1055 = vpop.trf.xlu0
        %v1056 = vpop.trf.xlu0
        %v1057 = vpop.trf.xlu0
        %v1058 = vpop.trf.xlu0
        %v1059 = vpop.trf.xlu0
        %v1060 = vpop.trf.xlu0
        %v1061 = vpop.trf.xlu0
        %v1062 = vpop.trf.xlu0
        %v1063 = vpop.trf.xlu0
        %v1064 = vpop.trf.xlu0
        %v1065 = vpop.trf.xlu0
        %vm1066 = vcmask 523264
        %v1068 = vsel %vm1066, %v1050, 0
        %1070 = vmatprep.subr.mxu0 0.0
        %1071 = vmatpush1.msra.mxu0 %v988
        %1072 = vmatprep.subr.mxu0 0.0
        %1073 = vmatpush1.msra.mxu0 %v993
        %1074 = vmatprep.subr.mxu0 0.0
        %1075 = vmatpush1.msra.mxu0 %v998
        %1076 = vmatprep.subr.mxu0 0.0
        %1077 = vmatpush1.msra.mxu0 %v1003
        %1078 = vmatprep.subr.mxu0 0.0
        %1079 = vmatpush1.msra.mxu0 %v1008
        %1080 = vmatprep.subr.mxu0 0.0
        %1081 = vmatpush1.msra.mxu0 %v1013
        %1082 = vmatprep.subr.mxu0 0.0
        %1083 = vmatpush1.msra.mxu0 %v1018
        %1084 = vmatprep.subr.mxu0 0.0
        %1085 = vmatpush1.msra.mxu0 %v1023
        %1086 = vmatprep.subr.mxu0 0.0
        %1087 = vmatpush1.msra.mxu0 0.0
        %1088 = vmatprep.subr.mxu0 0.0
        %1089 = vmatpush1.msra.mxu0 0.0
        %1090 = vmatprep.subr.mxu0 0.0
        %1091 = vmatpush1.msra.mxu0 0.0
        %1092 = vmatprep.subr.mxu0 0.0
        %1093 = vmatpush1.msra.mxu0 0.0
        %1094 = vmatprep.subr.mxu0 0.0
        %1095 = vmatpush1.msra.mxu0 0.0
        %1096 = vmatprep.subr.mxu0 0.0
        %1097 = vmatpush1.msra.mxu0 0.0
        %1098 = vmatprep.subr.mxu0 0.0
        %1099 = vmatpush1.msra.mxu0 0.0
        %1100 = vmatprep.subr.mxu0 0.0
        %1101 = vmatpush1.msra.mxu0 0.0
        %1102 = vmatprep.subr.mxu0 0.0
        %1103 = vmatpush1.msra.mxu0 0.0
        %1104 = vmatprep.subr.mxu0 0.0
        %1105 = vmatpush1.msra.mxu0 0.0
        %1106 = vmatprep.subr.mxu0 0.0
        %1107 = vmatpush1.msra.mxu0 0.0
        %1108 = vmatprep.subr.mxu0 0.0
        %1109 = vmatpush1.msra.mxu0 0.0
        %1110 = vmatprep.subr.mxu0 0.0
        %1111 = vmatpush1.msra.mxu0 0.0
        %1112 = vmatprep.subr.mxu0 0.0
        %1113 = vmatpush1.msra.mxu0 0.0
        %1114 = vmatprep.subr.mxu0 0.0
        %1115 = vmatpush1.msra.mxu0 0.0
        %1116 = vmatprep.subr.mxu0 0.0
        %1117 = vmatpush1.msra.mxu0 0.0
        %1118 = vmatprep.subr.mxu0 0.0
        %1119 = vmatpush1.msra.mxu0 0.0
        %1120 = vmatprep.subr.mxu0 0.0
        %1121 = vmatpush1.msra.mxu0 0.0
        %1122 = vmatprep.subr.mxu0 0.0
        %1123 = vmatpush1.msra.mxu0 0.0
        %1124 = vmatprep.subr.mxu0 0.0
        %1125 = vmatpush1.msra.mxu0 0.0
        %1126 = vmatprep.subr.mxu0 0.0
        %1127 = vmatpush1.msra.mxu0 0.0
        %1128 = vmatprep.subr.mxu0 0.0
        %1129 = vmatpush1.msra.mxu0 0.0
        %1130 = vmatprep.subr.mxu0 0.0
        %1131 = vmatpush1.msra.mxu0 0.0
        %1132 = vmatprep.subr.mxu0 0.0
        %1133 = vmatpush1.msra.mxu0 0.0
        %1134 = vmatprep.mubr.f32.mxu0 0.0
        %1135 = vmatmul.mubr.f32.gmra.mrb[0].mxu0 %v1068
        %v1136 = vpop.f32.mrb[0].mxu0
        %v1137 = vadd.f32 0.0, %v1136
        %v1138 = vpop.f32.mrb[0].mxu0
        %1139 = vdwg.mxu0
        %v1140 = vmul.f32 %v1137, 0.015625
        %vm1141 = vcmask 31744
        %v1143 = vsel %vm1141, %v1140, 0
        %v1146 = vsel %vm1141, %v887, 0
        %v1149 = vsel %vm1141, %v888, 0
        %1151 = vmatprep.subr.mxu0 0.0
        %1152 = vmatpush1.xpose.msra.mxu0 %v1146
        %1153 = vmatprep.subr.mxu0 0.0
        %1154 = vmatpush1.xpose.msra.mxu0 %v1149
        %1155 = vmatprep.subr.mxu0 0.0
        %1156 = vmatpush1.xpose.msra.mxu0 0.0
        %1157 = vmatprep.subr.mxu0 0.0
        %1158 = vmatpush1.xpose.msra.mxu0 0.0
        %1159 = vmatprep.subr.mxu0 0.0
        %1160 = vmatpush1.xpose.msra.mxu0 0.0
        %1161 = vmatprep.subr.mxu0 0.0
        %1162 = vmatpush1.xpose.msra.mxu0 0.0
        %1163 = vmatprep.subr.mxu0 0.0
        %1164 = vmatpush1.xpose.msra.mxu0 0.0
        %1165 = vmatprep.subr.mxu0 0.0
        %1166 = vmatpush1.xpose.msra.mxu0 0.0
        %1167 = vmatprep.subr.mxu0 0.0
        %1168 = vmatpush1.xpose.msra.mxu0 0.0
        %1169 = vmatprep.subr.mxu0 0.0
        %1170 = vmatpush1.xpose.msra.mxu0 0.0
        %1171 = vmatprep.subr.mxu0 0.0
        %1172 = vmatpush1.xpose.msra.mxu0 0.0
        %1173 = vmatprep.subr.mxu0 0.0
        %1174 = vmatpush1.xpose.msra.mxu0 0.0
        %1175 = vmatprep.subr.mxu0 0.0
        %1176 = vmatpush1.xpose.msra.mxu0 0.0
        %1177 = vmatprep.subr.mxu0 0.0
        %1178 = vmatpush1.xpose.msra.mxu0 0.0
        %1179 = vmatprep.subr.mxu0 0.0
        %1180 = vmatpush1.xpose.msra.mxu0 0.0
        %1181 = vmatprep.subr.mxu0 0.0
        %1182 = vmatpush1.xpose.msra.mxu0 0.0
        %1183 = vmatprep.subr.mxu0 0.0
        %1184 = vmatpush1.xpose.msra.mxu0 0.0
        %1185 = vmatprep.subr.mxu0 0.0
        %1186 = vmatpush1.xpose.msra.mxu0 0.0
        %1187 = vmatprep.subr.mxu0 0.0
        %1188 = vmatpush1.xpose.msra.mxu0 0.0
        %1189 = vmatprep.subr.mxu0 0.0
        %1190 = vmatpush1.xpose.msra.mxu0 0.0
        %1191 = vmatprep.subr.mxu0 0.0
        %1192 = vmatpush1.xpose.msra.mxu0 0.0
        %1193 = vmatprep.subr.mxu0 0.0
        %1194 = vmatpush1.xpose.msra.mxu0 0.0
        %1195 = vmatprep.subr.mxu0 0.0
        %1196 = vmatpush1.xpose.msra.mxu0 0.0
        %1197 = vmatprep.subr.mxu0 0.0
        %1198 = vmatpush1.xpose.msra.mxu0 0.0
        %1199 = vmatprep.subr.mxu0 0.0
        %1200 = vmatpush1.xpose.msra.mxu0 0.0
        %1201 = vmatprep.subr.mxu0 0.0
        %1202 = vmatpush1.xpose.msra.mxu0 0.0
        %1203 = vmatprep.subr.mxu0 0.0
        %1204 = vmatpush1.xpose.msra.mxu0 0.0
        %1205 = vmatprep.subr.mxu0 0.0
        %1206 = vmatpush1.xpose.msra.mxu0 0.0
        %1207 = vmatprep.subr.mxu0 0.0
        %1208 = vmatpush1.xpose.msra.mxu0 0.0
        %1209 = vmatprep.subr.mxu0 0.0
        %1210 = vmatpush1.xpose.msra.mxu0 0.0
        %1211 = vmatprep.subr.mxu0 0.0
        %1212 = vmatpush1.xpose.msra.mxu0 0.0
        %1213 = vmatprep.subr.mxu0 0.0
        %1214 = vmatpush1.xpose.msra.mxu0 0.0
        %1215 = vmatprep.mubr.f32.mxu0 0.0
        %1216 = vmatmul.mubr.f32.gmra.mrb[0].mxu0 %v1143
        %v1217 = vpop.f32.mrb[0].mxu0
        %v1218 = vadd.f32 0.0, %v1217
        %v1219 = vpop.f32.mrb[0].mxu0
        %1220 = vdwg.mxu0
        %v1222 = vsel %vm1141, %v1026, 0
        %v1225 = vsel %vm1141, %v1027, 0
        %v1228 = vsel %vm1141, %v1028, 0
        %v1231 = vsel %vm1141, %v1029, 0
        %v1234 = vsel %vm1141, %v1030, 0
        %v1237 = vsel %vm1141, %v1031, 0
        %v1240 = vsel %vm1141, %v1032, 0
        %v1243 = vsel %vm1141, %v1033, 0
        %vm1245 = vcmask 1043456
        %v1247 = vsel %vm1245, %v1218, 0
        %1249 = vmatprep.subr.mxu0 0.0
        %1250 = vmatpush1.msra.mxu0 %v1247
        %1251 = vmatprep.subr.mxu0 0.0
        %1252 = vmatpush1.msra.mxu0 0.0
        %1253 = vmatprep.subr.mxu0 0.0
        %1254 = vmatpush1.msra.mxu0 0.0
        %1255 = vmatprep.subr.mxu0 0.0
        %1256 = vmatpush1.msra.mxu0 0.0
        %1257 = vmatprep.subr.mxu0 0.0
        %1258 = vmatpush1.msra.mxu0 0.0
        %1259 = vmatprep.subr.mxu0 0.0
        %1260 = vmatpush1.msra.mxu0 0.0
        %1261 = vmatprep.subr.mxu0 0.0
        %1262 = vmatpush1.msra.mxu0 0.0
        %1263 = vmatprep.subr.mxu0 0.0
        %1264 = vmatpush1.msra.mxu0 0.0
        %1265 = vmatprep.subr.mxu0 0.0
        %1266 = vmatpush1.msra.mxu0 0.0
        %1267 = vmatprep.subr.mxu0 0.0
        %1268 = vmatpush1.msra.mxu0 0.0
        %1269 = vmatprep.subr.mxu0 0.0
        %1270 = vmatpush1.msra.mxu0 0.0
        %1271 = vmatprep.subr.mxu0 0.0
        %1272 = vmatpush1.msra.mxu0 0.0
        %1273 = vmatprep.subr.mxu0 0.0
        %1274 = vmatpush1.msra.mxu0 0.0
        %1275 = vmatprep.subr.mxu0 0.0
        %1276 = vmatpush1.msra.mxu0 0.0
        %1277 = vmatprep.subr.mxu0 0.0
        %1278 = vmatpush1.msra.mxu0 0.0
        %1279 = vmatprep.subr.mxu0 0.0
        %1280 = vmatpush1.msra.mxu0 0.0
        %1281 = vmatprep.subr.mxu0 0.0
        %1282 = vmatpush1.msra.mxu0 0.0
        %1283 = vmatprep.subr.mxu0 0.0
        %1284 = vmatpush1.msra.mxu0 0.0
        %1285 = vmatprep.subr.mxu0 0.0
        %1286 = vmatpush1.msra.mxu0 0.0
        %1287 = vmatprep.subr.mxu0 0.0
        %1288 = vmatpush1.msra.mxu0 0.0
        %1289 = vmatprep.subr.mxu0 0.0
        %1290 = vmatpush1.msra.mxu0 0.0
        %1291 = vmatprep.subr.mxu0 0.0
        %1292 = vmatpush1.msra.mxu0 0.0
        %1293 = vmatprep.subr.mxu0 0.0
        %1294 = vmatpush1.msra.mxu0 0.0
        %1295 = vmatprep.subr.mxu0 0.0
        %1296 = vmatpush1.msra.mxu0 0.0
        %1297 = vmatprep.subr.mxu0 0.0
        %1298 = vmatpush1.msra.mxu0 0.0
        %1299 = vmatprep.subr.mxu0 0.0
        %1300 = vmatpush1.msra.mxu0 0.0
        %1301 = vmatprep.subr.mxu0 0.0
        %1302 = vmatpush1.msra.mxu0 0.0
        %1303 = vmatprep.subr.mxu0 0.0
        %1304 = vmatpush1.msra.mxu0 0.0
        %1305 = vmatprep.subr.mxu0 0.0
        %1306 = vmatpush1.msra.mxu0 0.0
        %1307 = vmatprep.subr.mxu0 0.0
        %1308 = vmatpush1.msra.mxu0 0.0
        %1309 = vmatprep.subr.mxu0 0.0
        %1310 = vmatpush1.msra.mxu0 0.0
        %1311 = vmatprep.subr.mxu0 0.0
        %1312 = vmatpush1.msra.mxu0 0.0
        %1313 = vmatprep.mubr.f32.mxu0 0.0
        %1314 = vmatmul.mubr.f32.gmra.mrb[0].mxu0 %v1222
        %v1315 = vpop.f32.mrb[0].mxu0
        %v1316 = vadd.f32 0.0, %v1315
        %v1317 = vpop.f32.mrb[0].mxu0
        %1318 = vmatprep.mubr.f32.mxu0 0.0
        %1319 = vmatmul.mubr.f32.gmra.mrb[0].mxu0 %v1225
        %v1320 = vpop.f32.mrb[0].mxu0
        %v1321 = vadd.f32 0.0, %v1320
        %v1322 = vpop.f32.mrb[0].mxu0
        %1323 = vmatprep.mubr.f32.mxu0 0.0
        %1324 = vmatmul.mubr.f32.gmra.mrb[0].mxu0 %v1228
        %v1325 = vpop.f32.mrb[0].mxu0
        %v1326 = vadd.f32 0.0, %v1325
        %v1327 = vpop.f32.mrb[0].mxu0
        %1328 = vmatprep.mubr.f32.mxu0 0.0
        %1329 = vmatmul.mubr.f32.gmra.mrb[0].mxu0 %v1231
        %v1330 = vpop.f32.mrb[0].mxu0
        %v1331 = vadd.f32 0.0, %v1330
        %v1332 = vpop.f32.mrb[0].mxu0
        %1333 = vmatprep.mubr.f32.mxu0 0.0
        %1334 = vmatmul.mubr.f32.gmra.mrb[0].mxu0 %v1234
        %v1335 = vpop.f32.mrb[0].mxu0
        %v1336 = vadd.f32 0.0, %v1335
        %v1337 = vpop.f32.mrb[0].mxu0
        %1338 = vmatprep.mubr.f32.mxu0 0.0
        %1339 = vmatmul.mubr.f32.gmra.mrb[0].mxu0 %v1237
        %v1340 = vpop.f32.mrb[0].mxu0
        %v1341 = vadd.f32 0.0, %v1340
        %v1342 = vpop.f32.mrb[0].mxu0
        %1343 = vmatprep.mubr.f32.mxu0 0.0
        %1344 = vmatmul.mubr.f32.gmra.mrb[0].mxu0 %v1240
        %v1345 = vpop.f32.mrb[0].mxu0
        %v1346 = vadd.f32 0.0, %v1345
        %v1347 = vpop.f32.mrb[0].mxu0
        %1348 = vmatprep.mubr.f32.mxu0 0.0
        %1349 = vmatmul.mubr.f32.gmra.mrb[0].mxu0 %v1243
        %v1350 = vpop.f32.mrb[0].mxu0
        %v1351 = vadd.f32 0.0, %v1350
        %v1352 = vpop.f32.mrb[0].mxu0
        %1353 = vdwg.mxu0
        %v1354 = vmul.f32 %v705, %v1316
        %v1355 = vmul.f32 %v706, %v1321
        %v1356 = vmul.f32 %v707, %v1326
        %v1357 = vmul.f32 %v708, %v1331
        %v1358 = vmul.f32 %v709, %v1336
        %v1359 = vmul.f32 %v710, %v1341
        %v1360 = vmul.f32 %v711, %v1346
        %v1361 = vmul.f32 %v712, %v1351
        %v1362 = vld [vmem:[%s9] sm:$0xff]
        %v1363 = vld [vmem:[%s9 + $0x8] sm:$0xff]
        %v1365 = vsel %vm535, %v1354, 0
        %v1368 = vsel %vm535, %v1355, 0
        %v1371 = vsel %vm535, %v1356, 0
        %v1374 = vsel %vm535, %v1357, 0
        %v1377 = vsel %vm535, %v1358, 0
        %v1380 = vsel %vm535, %v1359, 0
        %v1383 = vsel %vm535, %v1360, 0
        %v1386 = vsel %vm535, %v1361, 0
        %1388 = vmatprep.subr.mxu0 0.0
        %1389 = vmatpush1.msra.mxu0 %v1362
        %1390 = vmatprep.subr.mxu0 0.0
        %1391 = vmatpush1.msra.mxu0 %v1363
        %1392 = vmatprep.subr.mxu0 0.0
        %1393 = vmatpush1.msra.mxu0 0.0
        %1394 = vmatprep.subr.mxu0 0.0
        %1395 = vmatpush1.msra.mxu0 0.0
        %1396 = vmatprep.subr.mxu0 0.0
        %1397 = vmatpush1.msra.mxu0 0.0
        %1398 = vmatprep.subr.mxu0 0.0
        %1399 = vmatpush1.msra.mxu0 0.0
        %1400 = vmatprep.subr.mxu0 0.0
        %1401 = vmatpush1.msra.mxu0 0.0
        %1402 = vmatprep.subr.mxu0 0.0
        %1403 = vmatpush1.msra.mxu0 0.0
        %1404 = vmatprep.subr.mxu0 0.0
        %1405 = vmatpush1.msra.mxu0 0.0
        %1406 = vmatprep.subr.mxu0 0.0
        %1407 = vmatpush1.msra.mxu0 0.0
        %1408 = vmatprep.subr.mxu0 0.0
        %1409 = vmatpush1.msra.mxu0 0.0
        %1410 = vmatprep.subr.mxu0 0.0
        %1411 = vmatpush1.msra.mxu0 0.0
        %1412 = vmatprep.subr.mxu0 0.0
        %1413 = vmatpush1.msra.mxu0 0.0
        %1414 = vmatprep.subr.mxu0 0.0
        %1415 = vmatpush1.msra.mxu0 0.0
        %1416 = vmatprep.subr.mxu0 0.0
        %1417 = vmatpush1.msra.mxu0 0.0
        %1418 = vmatprep.subr.mxu0 0.0
        %1419 = vmatpush1.msra.mxu0 0.0
        %1420 = vmatprep.subr.mxu0 0.0
        %1421 = vmatpush1.msra.mxu0 0.0
        %1422 = vmatprep.subr.mxu0 0.0
        %1423 = vmatpush1.msra.mxu0 0.0
        %1424 = vmatprep.subr.mxu0 0.0
        %1425 = vmatpush1.msra.mxu0 0.0
        %1426 = vmatprep.subr.mxu0 0.0
        %1427 = vmatpush1.msra.mxu0 0.0
        %1428 = vmatprep.subr.mxu0 0.0
        %1429 = vmatpush1.msra.mxu0 0.0
        %1430 = vmatprep.subr.mxu0 0.0
        %1431 = vmatpush1.msra.mxu0 0.0
        %1432 = vmatprep.subr.mxu0 0.0
        %1433 = vmatpush1.msra.mxu0 0.0
        %1434 = vmatprep.subr.mxu0 0.0
        %1435 = vmatpush1.msra.mxu0 0.0
        %1436 = vmatprep.subr.mxu0 0.0
        %1437 = vmatpush1.msra.mxu0 0.0
        %1438 = vmatprep.subr.mxu0 0.0
        %1439 = vmatpush1.msra.mxu0 0.0
        %1440 = vmatprep.subr.mxu0 0.0
        %1441 = vmatpush1.msra.mxu0 0.0
        %1442 = vmatprep.subr.mxu0 0.0
        %1443 = vmatpush1.msra.mxu0 0.0
        %1444 = vmatprep.subr.mxu0 0.0
        %1445 = vmatpush1.msra.mxu0 0.0
        %1446 = vmatprep.subr.mxu0 0.0
        %1447 = vmatpush1.msra.mxu0 0.0
        %1448 = vmatprep.subr.mxu0 0.0
        %1449 = vmatpush1.msra.mxu0 0.0
        %1450 = vmatprep.subr.mxu0 0.0
        %1451 = vmatpush1.msra.mxu0 0.0
        %1452 = vmatprep.mubr.f32.mxu0 0.0
        %1453 = vmatmul.mubr.f32.gmra.mrb[0].mxu0 %v1365
        %v1454 = vpop.f32.mrb[0].mxu0
        %v1455 = vadd.f32 0.0, %v1454
        %v1456 = vpop.f32.mrb[0].mxu0
        %1457 = vmatprep.mubr.f32.mxu0 0.0
        %1458 = vmatmul.mubr.f32.gmra.mrb[0].mxu0 %v1368
        %v1459 = vpop.f32.mrb[0].mxu0
        %v1460 = vadd.f32 0.0, %v1459
        %v1461 = vpop.f32.mrb[0].mxu0
        %1462 = vmatprep.mubr.f32.mxu0 0.0
        %1463 = vmatmul.mubr.f32.gmra.mrb[0].mxu0 %v1371
        %v1464 = vpop.f32.mrb[0].mxu0
        %v1465 = vadd.f32 0.0, %v1464
        %v1466 = vpop.f32.mrb[0].mxu0
        %1467 = vmatprep.mubr.f32.mxu0 0.0
        %1468 = vmatmul.mubr.f32.gmra.mrb[0].mxu0 %v1374
        %v1469 = vpop.f32.mrb[0].mxu0
        %v1470 = vadd.f32 0.0, %v1469
        %v1471 = vpop.f32.mrb[0].mxu0
        %1472 = vmatprep.mubr.f32.mxu0 0.0
        %1473 = vmatmul.mubr.f32.gmra.mrb[0].mxu0 %v1377
        %v1474 = vpop.f32.mrb[0].mxu0
        %v1475 = vadd.f32 0.0, %v1474
        %v1476 = vpop.f32.mrb[0].mxu0
        %1477 = vmatprep.mubr.f32.mxu0 0.0
        %1478 = vmatmul.mubr.f32.gmra.mrb[0].mxu0 %v1380
        %v1479 = vpop.f32.mrb[0].mxu0
        %v1480 = vadd.f32 0.0, %v1479
        %v1481 = vpop.f32.mrb[0].mxu0
        %1482 = vmatprep.mubr.f32.mxu0 0.0
        %1483 = vmatmul.mubr.f32.gmra.mrb[0].mxu0 %v1383
        %v1484 = vpop.f32.mrb[0].mxu0
        %v1485 = vadd.f32 0.0, %v1484
        %v1486 = vpop.f32.mrb[0].mxu0
        %1487 = vmatprep.mubr.f32.mxu0 0.0
        %1488 = vmatmul.mubr.f32.gmra.mrb[0].mxu0 %v1386
        %v1489 = vpop.f32.mrb[0].mxu0
        %v1490 = vadd.f32 0.0, %v1489
        %v1491 = vpop.f32.mrb[0].mxu0
        %1492 = vdwg.mxu0
        %v1494 = vsel %vm1141, %v1362, 0
        %v1497 = vsel %vm1141, %v1363, 0
        %1499 = vmatprep.subr.mxu0 0.0
        %1500 = vmatpush1.xpose.msra.mxu0 %v1494
        %1501 = vmatprep.subr.mxu0 0.0
        %1502 = vmatpush1.xpose.msra.mxu0 %v1497
        %1503 = vmatprep.subr.mxu0 0.0
        %1504 = vmatpush1.xpose.msra.mxu0 0.0
        %1505 = vmatprep.subr.mxu0 0.0
        %1506 = vmatpush1.xpose.msra.mxu0 0.0
        %1507 = vmatprep.subr.mxu0 0.0
        %1508 = vmatpush1.xpose.msra.mxu0 0.0
        %1509 = vmatprep.subr.mxu0 0.0
        %1510 = vmatpush1.xpose.msra.mxu0 0.0
        %1511 = vmatprep.subr.mxu0 0.0
        %1512 = vmatpush1.xpose.msra.mxu0 0.0
        %1513 = vmatprep.subr.mxu0 0.0
        %1514 = vmatpush1.xpose.msra.mxu0 0.0
        %1515 = vmatprep.subr.mxu0 0.0
        %1516 = vmatpush1.xpose.msra.mxu0 0.0
        %1517 = vmatprep.subr.mxu0 0.0
        %1518 = vmatpush1.xpose.msra.mxu0 0.0
        %1519 = vmatprep.subr.mxu0 0.0
        %1520 = vmatpush1.xpose.msra.mxu0 0.0
        %1521 = vmatprep.subr.mxu0 0.0
        %1522 = vmatpush1.xpose.msra.mxu0 0.0
        %1523 = vmatprep.subr.mxu0 0.0
        %1524 = vmatpush1.xpose.msra.mxu0 0.0
        %1525 = vmatprep.subr.mxu0 0.0
        %1526 = vmatpush1.xpose.msra.mxu0 0.0
        %1527 = vmatprep.subr.mxu0 0.0
        %1528 = vmatpush1.xpose.msra.mxu0 0.0
        %1529 = vmatprep.subr.mxu0 0.0
        %1530 = vmatpush1.xpose.msra.mxu0 0.0
        %1531 = vmatprep.subr.mxu0 0.0
        %1532 = vmatpush1.xpose.msra.mxu0 0.0
        %1533 = vmatprep.subr.mxu0 0.0
        %1534 = vmatpush1.xpose.msra.mxu0 0.0
        %1535 = vmatprep.subr.mxu0 0.0
        %1536 = vmatpush1.xpose.msra.mxu0 0.0
        %1537 = vmatprep.subr.mxu0 0.0
        %1538 = vmatpush1.xpose.msra.mxu0 0.0
        %1539 = vmatprep.subr.mxu0 0.0
        %1540 = vmatpush1.xpose.msra.mxu0 0.0
        %1541 = vmatprep.subr.mxu0 0.0
        %1542 = vmatpush1.xpose.msra.mxu0 0.0
        %1543 = vmatprep.subr.mxu0 0.0
        %1544 = vmatpush1.xpose.msra.mxu0 0.0
        %1545 = vmatprep.subr.mxu0 0.0
        %1546 = vmatpush1.xpose.msra.mxu0 0.0
        %1547 = vmatprep.subr.mxu0 0.0
        %1548 = vmatpush1.xpose.msra.mxu0 0.0
        %1549 = vmatprep.subr.mxu0 0.0
        %1550 = vmatpush1.xpose.msra.mxu0 0.0
        %1551 = vmatprep.subr.mxu0 0.0
        %1552 = vmatpush1.xpose.msra.mxu0 0.0
        %1553 = vmatprep.subr.mxu0 0.0
        %1554 = vmatpush1.xpose.msra.mxu0 0.0
        %1555 = vmatprep.subr.mxu0 0.0
        %1556 = vmatpush1.xpose.msra.mxu0 0.0
        %1557 = vmatprep.subr.mxu0 0.0
        %1558 = vmatpush1.xpose.msra.mxu0 0.0
        %1559 = vmatprep.subr.mxu0 0.0
        %1560 = vmatpush1.xpose.msra.mxu0 0.0
        %1561 = vmatprep.subr.mxu0 0.0
        %1562 = vmatpush1.xpose.msra.mxu0 0.0
        %1563 = vmatprep.mubr.f32.mxu0 0.0
        %1564 = vmatmul.mubr.f32.gmra.mrb[0].mxu0 %v1222
        %v1565 = vpop.f32.mrb[0].mxu0
        %v1566 = vadd.f32 0.0, %v1565
        %v1567 = vpop.f32.mrb[0].mxu0
        %1568 = vmatprep.mubr.f32.mxu0 0.0
        %1569 = vmatmul.mubr.f32.gmra.mrb[0].mxu0 %v1225
        %v1570 = vpop.f32.mrb[0].mxu0
        %v1571 = vadd.f32 0.0, %v1570
        %v1572 = vpop.f32.mrb[0].mxu0
        %1573 = vmatprep.mubr.f32.mxu0 0.0
        %1574 = vmatmul.mubr.f32.gmra.mrb[0].mxu0 %v1228
        %v1575 = vpop.f32.mrb[0].mxu0
        %v1576 = vadd.f32 0.0, %v1575
        %v1577 = vpop.f32.mrb[0].mxu0
        %1578 = vmatprep.mubr.f32.mxu0 0.0
        %1579 = vmatmul.mubr.f32.gmra.mrb[0].mxu0 %v1231
        %v1580 = vpop.f32.mrb[0].mxu0
        %v1581 = vadd.f32 0.0, %v1580
        %v1582 = vpop.f32.mrb[0].mxu0
        %1583 = vmatprep.mubr.f32.mxu0 0.0
        %1584 = vmatmul.mubr.f32.gmra.mrb[0].mxu0 %v1234
        %v1585 = vpop.f32.mrb[0].mxu0
        %v1586 = vadd.f32 0.0, %v1585
        %v1587 = vpop.f32.mrb[0].mxu0
        %1588 = vmatprep.mubr.f32.mxu0 0.0
        %1589 = vmatmul.mubr.f32.gmra.mrb[0].mxu0 %v1237
        %v1590 = vpop.f32.mrb[0].mxu0
        %v1591 = vadd.f32 0.0, %v1590
        %v1592 = vpop.f32.mrb[0].mxu0
        %1593 = vmatprep.mubr.f32.mxu0 0.0
        %1594 = vmatmul.mubr.f32.gmra.mrb[0].mxu0 %v1240
        %v1595 = vpop.f32.mrb[0].mxu0
        %v1596 = vadd.f32 0.0, %v1595
        %v1597 = vpop.f32.mrb[0].mxu0
        %1598 = vmatprep.mubr.f32.mxu0 0.0
        %1599 = vmatmul.mubr.f32.gmra.mrb[0].mxu0 %v1243
        %v1600 = vpop.f32.mrb[0].mxu0
        %v1601 = vadd.f32 0.0, %v1600
        %v1602 = vpop.f32.mrb[0].mxu0
        %1603 = vdwg.mxu0
        %1605 = vset.pattern.permute.xlu0 0
        %1606 = vperm.xlu0 %1605, %v1455
        %v1607 = vpop.permute.xlu0 %1606
        %1610 = vset.pattern.permute.xlu0 0
        %1611 = vperm.xlu0 %1610, %v1460
        %v1612 = vpop.permute.xlu0 %1611
        %1615 = vset.pattern.permute.xlu0 0
        %1616 = vperm.xlu0 %1615, %v1465
        %v1617 = vpop.permute.xlu0 %1616
        %1620 = vset.pattern.permute.xlu0 0
        %1621 = vperm.xlu0 %1620, %v1470
        %v1622 = vpop.permute.xlu0 %1621
        %1625 = vset.pattern.permute.xlu0 0
        %1626 = vperm.xlu0 %1625, %v1475
        %v1627 = vpop.permute.xlu0 %1626
        %1630 = vset.pattern.permute.xlu0 0
        %1631 = vperm.xlu0 %1630, %v1480
        %v1632 = vpop.permute.xlu0 %1631
        %1635 = vset.pattern.permute.xlu0 0
        %1636 = vperm.xlu0 %1635, %v1485
        %v1637 = vpop.permute.xlu0 %1636
        %1640 = vset.pattern.permute.xlu0 0
        %1641 = vperm.xlu0 %1640, %v1490
        %v1642 = vpop.permute.xlu0 %1641
        %v1644 = vmul.f32 %v1607, %v1566
        %v1645 = vmul.f32 %v1612, %v1571
        %v1646 = vmul.f32 %v1617, %v1576
        %v1647 = vmul.f32 %v1622, %v1581
        %v1648 = vmul.f32 %v1627, %v1586
        %v1649 = vmul.f32 %v1632, %v1591
        %v1650 = vmul.f32 %v1637, %v1596
        %v1651 = vmul.f32 %v1642, %v1601
        %1652 = vset.pattern.permute.xlu0 1
        %1653 = vperm.xlu0 %1652, %v1455
        %v1654 = vpop.permute.xlu0 %1653
        %1656 = vset.pattern.permute.xlu0 1
        %1657 = vperm.xlu0 %1656, %v1460
        %v1658 = vpop.permute.xlu0 %1657
        %1660 = vset.pattern.permute.xlu0 1
        %1661 = vperm.xlu0 %1660, %v1465
        %v1662 = vpop.permute.xlu0 %1661
        %1664 = vset.pattern.permute.xlu0 1
        %1665 = vperm.xlu0 %1664, %v1470
        %v1666 = vpop.permute.xlu0 %1665
        %1668 = vset.pattern.permute.xlu0 1
        %1669 = vperm.xlu0 %1668, %v1475
        %v1670 = vpop.permute.xlu0 %1669
        %1672 = vset.pattern.permute.xlu0 1
        %1673 = vperm.xlu0 %1672, %v1480
        %v1674 = vpop.permute.xlu0 %1673
        %1676 = vset.pattern.permute.xlu0 1
        %1677 = vperm.xlu0 %1676, %v1485
        %v1678 = vpop.permute.xlu0 %1677
        %1680 = vset.pattern.permute.xlu0 1
        %1681 = vperm.xlu0 %1680, %v1490
        %v1682 = vpop.permute.xlu0 %1681
        %v1684 = vmul.f32 %v1654, %v1566
        %v1685 = vmul.f32 %v1658, %v1571
        %v1686 = vmul.f32 %v1662, %v1576
        %v1687 = vmul.f32 %v1666, %v1581
        %v1688 = vmul.f32 %v1670, %v1586
        %v1689 = vmul.f32 %v1674, %v1591
        %v1690 = vmul.f32 %v1678, %v1596
        %v1691 = vmul.f32 %v1682, %v1601
        %1692 = vset.pattern.permute.xlu0 2
        %1693 = vperm.xlu0 %1692, %v1455
        %v1694 = vpop.permute.xlu0 %1693
        %1696 = vset.pattern.permute.xlu0 2
        %1697 = vperm.xlu0 %1696, %v1460
        %v1698 = vpop.permute.xlu0 %1697
        %1700 = vset.pattern.permute.xlu0 2
        %1701 = vperm.xlu0 %1700, %v1465
        %v1702 = vpop.permute.xlu0 %1701
        %1704 = vset.pattern.permute.xlu0 2
        %1705 = vperm.xlu0 %1704, %v1470
        %v1706 = vpop.permute.xlu0 %1705
        %1708 = vset.pattern.permute.xlu0 2
        %1709 = vperm.xlu0 %1708, %v1475
        %v1710 = vpop.permute.xlu0 %1709
        %1712 = vset.pattern.permute.xlu0 2
        %1713 = vperm.xlu0 %1712, %v1480
        %v1714 = vpop.permute.xlu0 %1713
        %1716 = vset.pattern.permute.xlu0 2
        %1717 = vperm.xlu0 %1716, %v1485
        %v1718 = vpop.permute.xlu0 %1717
        %1720 = vset.pattern.permute.xlu0 2
        %1721 = vperm.xlu0 %1720, %v1490
        %v1722 = vpop.permute.xlu0 %1721
        %v1724 = vmul.f32 %v1694, %v1566
        %v1725 = vmul.f32 %v1698, %v1571
        %v1726 = vmul.f32 %v1702, %v1576
        %v1727 = vmul.f32 %v1706, %v1581
        %v1728 = vmul.f32 %v1710, %v1586
        %v1729 = vmul.f32 %v1714, %v1591
        %v1730 = vmul.f32 %v1718, %v1596
        %v1731 = vmul.f32 %v1722, %v1601
        %1732 = vset.pattern.permute.xlu0 3
        %1733 = vperm.xlu0 %1732, %v1455
        %v1734 = vpop.permute.xlu0 %1733
        %1736 = vset.pattern.permute.xlu0 3
        %1737 = vperm.xlu0 %1736, %v1460
        %v1738 = vpop.permute.xlu0 %1737
        %1740 = vset.pattern.permute.xlu0 3
        %1741 = vperm.xlu0 %1740, %v1465
        %v1742 = vpop.permute.xlu0 %1741
        %1744 = vset.pattern.permute.xlu0 3
        %1745 = vperm.xlu0 %1744, %v1470
        %v1746 = vpop.permute.xlu0 %1745
        %1748 = vset.pattern.permute.xlu0 3
        %1749 = vperm.xlu0 %1748, %v1475
        %v1750 = vpop.permute.xlu0 %1749
        %1752 = vset.pattern.permute.xlu0 3
        %1753 = vperm.xlu0 %1752, %v1480
        %v1754 = vpop.permute.xlu0 %1753
        %1756 = vset.pattern.permute.xlu0 3
        %1757 = vperm.xlu0 %1756, %v1485
        %v1758 = vpop.permute.xlu0 %1757
        %1760 = vset.pattern.permute.xlu0 3
        %1761 = vperm.xlu0 %1760, %v1490
        %v1762 = vpop.permute.xlu0 %1761
        %v1764 = vmul.f32 %v1734, %v1566
        %v1765 = vmul.f32 %v1738, %v1571
        %v1766 = vmul.f32 %v1742, %v1576
        %v1767 = vmul.f32 %v1746, %v1581
        %v1768 = vmul.f32 %v1750, %v1586
        %v1769 = vmul.f32 %v1754, %v1591
        %v1770 = vmul.f32 %v1758, %v1596
        %v1771 = vmul.f32 %v1762, %v1601
        %v1772 = vld [vmem:[%s10] sm:$0xff]
        %v1773 = vld [vmem:[%s10 + $0x8] sm:$0xff]
        %v1774 = vld [vmem:[%s10 + $0x10] sm:$0xff]
        %v1775 = vld [vmem:[%s10 + $0x18] sm:$0xff]
        %v1776 = vld [vmem:[%s10 + $0x20] sm:$0xff]
        %v1777 = vld [vmem:[%s10 + $0x28] sm:$0xff]
        %v1778 = vld [vmem:[%s10 + $0x30] sm:$0xff]
        %v1779 = vld [vmem:[%s10 + $0x38] sm:$0xff]
        %v1780 = vld [vmem:[%s10 + $0x40] sm:$0xff]
        %v1781 = vld [vmem:[%s10 + $0x48] sm:$0xff]
        %v1782 = vld [vmem:[%s10 + $0x50] sm:$0xff]
        %v1783 = vld [vmem:[%s10 + $0x58] sm:$0xff]
        %v1784 = vld [vmem:[%s10 + $0x60] sm:$0xff]
        %v1785 = vld [vmem:[%s10 + $0x68] sm:$0xff]
        %v1786 = vld [vmem:[%s10 + $0x70] sm:$0xff]
        %v1787 = vld [vmem:[%s10 + $0x78] sm:$0xff]
        %1788 = vmatprep.subr.mxu0 0.0
        %1789 = vmatpush1.msra.mxu0 %v1644
        %1790 = vmatprep.subr.mxu0 0.0
        %1791 = vmatpush1.msra.mxu0 %v1645
        %1792 = vmatprep.subr.mxu0 0.0
        %1793 = vmatpush1.msra.mxu0 %v1646
        %1794 = vmatprep.subr.mxu0 0.0
        %1795 = vmatpush1.msra.mxu0 %v1647
        %1796 = vmatprep.subr.mxu0 0.0
        %1797 = vmatpush1.msra.mxu0 %v1648
        %1798 = vmatprep.subr.mxu0 0.0
        %1799 = vmatpush1.msra.mxu0 %v1649
        %1800 = vmatprep.subr.mxu0 0.0
        %1801 = vmatpush1.msra.mxu0 %v1650
        %1802 = vmatprep.subr.mxu0 0.0
        %1803 = vmatpush1.msra.mxu0 %v1651
        %1804 = vmatprep.subr.mxu0 0.0
        %1805 = vmatpush1.msra.mxu0 %v1684
        %1806 = vmatprep.subr.mxu0 0.0
        %1807 = vmatpush1.msra.mxu0 %v1685
        %1808 = vmatprep.subr.mxu0 0.0
        %1809 = vmatpush1.msra.mxu0 %v1686
        %1810 = vmatprep.subr.mxu0 0.0
        %1811 = vmatpush1.msra.mxu0 %v1687
        %1812 = vmatprep.subr.mxu0 0.0
        %1813 = vmatpush1.msra.mxu0 %v1688
        %1814 = vmatprep.subr.mxu0 0.0
        %1815 = vmatpush1.msra.mxu0 %v1689
        %1816 = vmatprep.subr.mxu0 0.0
        %1817 = vmatpush1.msra.mxu0 %v1690
        %1818 = vmatprep.subr.mxu0 0.0
        %1819 = vmatpush1.msra.mxu0 %v1691
        %1820 = vmatprep.subr.mxu0 0.0
        %1821 = vmatpush1.msra.mxu0 %v1724
        %1822 = vmatprep.subr.mxu0 0.0
        %1823 = vmatpush1.msra.mxu0 %v1725
        %1824 = vmatprep.subr.mxu0 0.0
        %1825 = vmatpush1.msra.mxu0 %v1726
        %1826 = vmatprep.subr.mxu0 0.0
        %1827 = vmatpush1.msra.mxu0 %v1727
        %1828 = vmatprep.subr.mxu0 0.0
        %1829 = vmatpush1.msra.mxu0 %v1728
        %1830 = vmatprep.subr.mxu0 0.0
        %1831 = vmatpush1.msra.mxu0 %v1729
        %1832 = vmatprep.subr.mxu0 0.0
        %1833 = vmatpush1.msra.mxu0 %v1730
        %1834 = vmatprep.subr.mxu0 0.0
        %1835 = vmatpush1.msra.mxu0 %v1731
        %1836 = vmatprep.subr.mxu0 0.0
        %1837 = vmatpush1.msra.mxu0 %v1764
        %1838 = vmatprep.subr.mxu0 0.0
        %1839 = vmatpush1.msra.mxu0 %v1765
        %1840 = vmatprep.subr.mxu0 0.0
        %1841 = vmatpush1.msra.mxu0 %v1766
        %1842 = vmatprep.subr.mxu0 0.0
        %1843 = vmatpush1.msra.mxu0 %v1767
        %1844 = vmatprep.subr.mxu0 0.0
        %1845 = vmatpush1.msra.mxu0 %v1768
        %1846 = vmatprep.subr.mxu0 0.0
        %1847 = vmatpush1.msra.mxu0 %v1769
        %1848 = vmatprep.subr.mxu0 0.0
        %1849 = vmatpush1.msra.mxu0 %v1770
        %1850 = vmatprep.subr.mxu0 0.0
        %1851 = vmatpush1.msra.mxu0 %v1771
        %1852 = vmatprep.mubr.f32.mxu0 %v1773
        %1853 = vmatmul.mubr.f32.gmra.mrb[0].mxu0 %v1772
        %v1854 = vpop.f32.mrb[0].mxu0
        %v1855 = vadd.f32 1e-06, %v1854
        %v1856 = vpop.f32.mrb[0].mxu0
        %1857 = vmatprep.mubr.f32.mxu0 %v1775
        %1858 = vmatmul.mubr.f32.gmra.mrb[0].mxu0 %v1774
        %v1859 = vpop.f32.mrb[0].mxu0
        %v1860 = vadd.f32 1e-06, %v1859
        %v1861 = vpop.f32.mrb[0].mxu0
        %1862 = vmatprep.mubr.f32.mxu0 %v1777
        %1863 = vmatmul.mubr.f32.gmra.mrb[0].mxu0 %v1776
        %v1864 = vpop.f32.mrb[0].mxu0
        %v1865 = vadd.f32 1e-06, %v1864
        %v1866 = vpop.f32.mrb[0].mxu0
        %1867 = vmatprep.mubr.f32.mxu0 %v1779
        %1868 = vmatmul.mubr.f32.gmra.mrb[0].mxu0 %v1778
        %v1869 = vpop.f32.mrb[0].mxu0
        %v1870 = vadd.f32 1e-06, %v1869
        %v1871 = vpop.f32.mrb[0].mxu0
        %1872 = vmatprep.mubr.f32.mxu0 %v1781
        %1873 = vmatmul.mubr.f32.gmra.mrb[0].mxu0 %v1780
        %v1874 = vpop.f32.mrb[0].mxu0
        %v1875 = vadd.f32 1e-06, %v1874
        %v1876 = vpop.f32.mrb[0].mxu0
        %1877 = vmatprep.mubr.f32.mxu0 %v1783
        %1878 = vmatmul.mubr.f32.gmra.mrb[0].mxu0 %v1782
        %v1879 = vpop.f32.mrb[0].mxu0
        %v1880 = vadd.f32 1e-06, %v1879
        %v1881 = vpop.f32.mrb[0].mxu0
        %1882 = vmatprep.mubr.f32.mxu0 %v1785
        %1883 = vmatmul.mubr.f32.gmra.mrb[0].mxu0 %v1784
        %v1884 = vpop.f32.mrb[0].mxu0
        %v1885 = vadd.f32 1e-06, %v1884
        %v1886 = vpop.f32.mrb[0].mxu0
        %1887 = vmatprep.mubr.f32.mxu0 %v1787
        %1888 = vmatmul.mubr.f32.gmra.mrb[0].mxu0 %v1786
        %v1889 = vpop.f32.mrb[0].mxu0
        %v1890 = vadd.f32 1e-06, %v1889
        %v1891 = vpop.f32.mrb[0].mxu0
        %1892 = vdwg.mxu0
        %v1893 = vrcp.pop %v1855
        %v1894 = vmul.f32 1.0, %v1893
        %v1895 = vrcp.pop %v1860
        %v1896 = vmul.f32 1.0, %v1895
        %v1897 = vrcp.pop %v1865
        %v1898 = vmul.f32 1.0, %v1897
        %v1899 = vrcp.pop %v1870
        %v1900 = vmul.f32 1.0, %v1899
        %v1901 = vrcp.pop %v1875
        %v1902 = vmul.f32 1.0, %v1901
        %v1903 = vrcp.pop %v1880
        %v1904 = vmul.f32 1.0, %v1903
        %v1905 = vrcp.pop %v1885
        %v1906 = vmul.f32 1.0, %v1905
        %v1907 = vrcp.pop %v1890
        %v1908 = vmul.f32 1.0, %v1907
        %1917 = vrot.lane.b32.xlu0 %v879, 112
        %v1918 = vpop.permute.xlu0 %1917
        %1919 = vrot.lane.b32.xlu0 %v880, 112
        %v1920 = vpop.permute.xlu0 %1919
        %1921 = vrot.lane.b32.xlu0 %v881, 112
        %v1922 = vpop.permute.xlu0 %1921
        %1923 = vrot.lane.b32.xlu0 %v882, 112
        %v1924 = vpop.permute.xlu0 %1923
        %1925 = vrot.lane.b32.xlu0 %v883, 112
        %v1926 = vpop.permute.xlu0 %1925
        %1927 = vrot.lane.b32.xlu0 %v884, 112
        %v1928 = vpop.permute.xlu0 %1927
        %1929 = vrot.lane.b32.xlu0 %v885, 112
        %v1930 = vpop.permute.xlu0 %1929
        %1931 = vrot.lane.b32.xlu0 %v886, 112
        %v1932 = vpop.permute.xlu0 %1931
        %1941 = vxpose.xlu0.b32.start [1/16] %v1918, 128
        %1942 = vxpose.xlu0.b32.cont [2/16] %v1920, 128
        %1943 = vxpose.xlu0.b32.cont [3/16] %v1922, 128
        %1944 = vxpose.xlu0.b32.cont [4/16] %v1924, 128
        %1945 = vxpose.xlu0.b32.cont [5/16] %v1926, 128
        %1946 = vxpose.xlu0.b32.cont [6/16] %v1928, 128
        %1947 = vxpose.xlu0.b32.cont [7/16] %v1930, 128
        %1948 = vxpose.xlu0.b32.cont [8/16] %v1932, 128
        %1949 = vxpose.xlu0.b32.cont [9/16] 0.0, 128
        %1950 = vxpose.xlu0.b32.cont [10/16] 0.0, 128
        %1951 = vxpose.xlu0.b32.cont [11/16] 0.0, 128
        %1952 = vxpose.xlu0.b32.cont [12/16] 0.0, 128
        %1953 = vxpose.xlu0.b32.cont [13/16] 0.0, 128
        %1954 = vxpose.xlu0.b32.cont [14/16] 0.0, 128
        %1955 = vxpose.xlu0.b32.cont [15/16] 0.0, 128
        %1956 = vxpose.xlu0.b32.end [16/16] 0.0, 128
        %v1957 = vpop.trf.xlu0
        %v1958 = vpop.trf.xlu0
        %v1959 = vpop.trf.xlu0
        %v1960 = vpop.trf.xlu0
        %v1961 = vpop.trf.xlu0
        %v1962 = vpop.trf.xlu0
        %v1963 = vpop.trf.xlu0
        %v1964 = vpop.trf.xlu0
        %v1965 = vpop.trf.xlu0
        %v1966 = vpop.trf.xlu0
        %v1967 = vpop.trf.xlu0
        %v1968 = vpop.trf.xlu0
        %v1969 = vpop.trf.xlu0
        %v1970 = vpop.trf.xlu0
        %v1971 = vpop.trf.xlu0
        %v1972 = vpop.trf.xlu0
        %v1974 = vsel %vm1066, %v1957, 0
        %1976 = vmatprep.subr.mxu0 0.0
        %1977 = vmatpush1.msra.mxu0 %v494
        %1978 = vmatprep.subr.mxu0 0.0
        %1979 = vmatpush1.msra.mxu0 %v495
        %1980 = vmatprep.subr.mxu0 0.0
        %1981 = vmatpush1.msra.mxu0 %v496
        %1982 = vmatprep.subr.mxu0 0.0
        %1983 = vmatpush1.msra.mxu0 %v497
        %1984 = vmatprep.subr.mxu0 0.0
        %1985 = vmatpush1.msra.mxu0 %v498
        %1986 = vmatprep.subr.mxu0 0.0
        %1987 = vmatpush1.msra.mxu0 %v499
        %1988 = vmatprep.subr.mxu0 0.0
        %1989 = vmatpush1.msra.mxu0 %v500
        %1990 = vmatprep.subr.mxu0 0.0
        %1991 = vmatpush1.msra.mxu0 %v501
        %1992 = vmatprep.subr.mxu0 0.0
        %1993 = vmatpush1.msra.mxu0 0.0
        %1994 = vmatprep.subr.mxu0 0.0
        %1995 = vmatpush1.msra.mxu0 0.0
        %1996 = vmatprep.subr.mxu0 0.0
        %1997 = vmatpush1.msra.mxu0 0.0
        %1998 = vmatprep.subr.mxu0 0.0
        %1999 = vmatpush1.msra.mxu0 0.0
        %2000 = vmatprep.subr.mxu0 0.0
        %2001 = vmatpush1.msra.mxu0 0.0
        %2002 = vmatprep.subr.mxu0 0.0
        %2003 = vmatpush1.msra.mxu0 0.0
        %2004 = vmatprep.subr.mxu0 0.0
        %2005 = vmatpush1.msra.mxu0 0.0
        %2006 = vmatprep.subr.mxu0 0.0
        %2007 = vmatpush1.msra.mxu0 0.0
        %2008 = vmatprep.subr.mxu0 0.0
        %2009 = vmatpush1.msra.mxu0 0.0
        %2010 = vmatprep.subr.mxu0 0.0
        %2011 = vmatpush1.msra.mxu0 0.0
        %2012 = vmatprep.subr.mxu0 0.0
        %2013 = vmatpush1.msra.mxu0 0.0
        %2014 = vmatprep.subr.mxu0 0.0
        %2015 = vmatpush1.msra.mxu0 0.0
        %2016 = vmatprep.subr.mxu0 0.0
        %2017 = vmatpush1.msra.mxu0 0.0
        %2018 = vmatprep.subr.mxu0 0.0
        %2019 = vmatpush1.msra.mxu0 0.0
        %2020 = vmatprep.subr.mxu0 0.0
        %2021 = vmatpush1.msra.mxu0 0.0
        %2022 = vmatprep.subr.mxu0 0.0
        %2023 = vmatpush1.msra.mxu0 0.0
        %2024 = vmatprep.subr.mxu0 0.0
        %2025 = vmatpush1.msra.mxu0 0.0
        %2026 = vmatprep.subr.mxu0 0.0
        %2027 = vmatpush1.msra.mxu0 0.0
        %2028 = vmatprep.subr.mxu0 0.0
        %2029 = vmatpush1.msra.mxu0 0.0
        %2030 = vmatprep.subr.mxu0 0.0
        %2031 = vmatpush1.msra.mxu0 0.0
        %2032 = vmatprep.subr.mxu0 0.0
        %2033 = vmatpush1.msra.mxu0 0.0
        %2034 = vmatprep.subr.mxu0 0.0
        %2035 = vmatpush1.msra.mxu0 0.0
        %2036 = vmatprep.subr.mxu0 0.0
        %2037 = vmatpush1.msra.mxu0 0.0
        %2038 = vmatprep.subr.mxu0 0.0
        %2039 = vmatpush1.msra.mxu0 0.0
        %2040 = vmatprep.mubr.f32.mxu0 0.0
        %2041 = vmatmul.mubr.f32.gmra.mrb[0].mxu0 %v1974
        %v2042 = vpop.f32.mrb[0].mxu0
        %v2043 = vadd.f32 0.0, %v2042
        %v2044 = vpop.f32.mrb[0].mxu0
        %2045 = vdwg.mxu0
        %v2046 = vsel %vm1141, %v879, 0
        %v2048 = vsel %vm1141, %v880, 0
        %v2050 = vsel %vm1141, %v881, 0
        %v2052 = vsel %vm1141, %v882, 0
        %v2054 = vsel %vm1141, %v883, 0
        %v2056 = vsel %vm1141, %v884, 0
        %v2058 = vsel %vm1141, %v885, 0
        %v2060 = vsel %vm1141, %v886, 0
        %v2063 = vsel %vm1245, %v2043, 0
        %2065 = vmatprep.subr.mxu0 0.0
        %2066 = vmatpush1.msra.mxu0 %v2063
        %2067 = vmatprep.subr.mxu0 0.0
        %2068 = vmatpush1.msra.mxu0 0.0
        %2069 = vmatprep.subr.mxu0 0.0
        %2070 = vmatpush1.msra.mxu0 0.0
        %2071 = vmatprep.subr.mxu0 0.0
        %2072 = vmatpush1.msra.mxu0 0.0
        %2073 = vmatprep.subr.mxu0 0.0
        %2074 = vmatpush1.msra.mxu0 0.0
        %2075 = vmatprep.subr.mxu0 0.0
        %2076 = vmatpush1.msra.mxu0 0.0
        %2077 = vmatprep.subr.mxu0 0.0
        %2078 = vmatpush1.msra.mxu0 0.0
        %2079 = vmatprep.subr.mxu0 0.0
        %2080 = vmatpush1.msra.mxu0 0.0
        %2081 = vmatprep.subr.mxu0 0.0
        %2082 = vmatpush1.msra.mxu0 0.0
        %2083 = vmatprep.subr.mxu0 0.0
        %2084 = vmatpush1.msra.mxu0 0.0
        %2085 = vmatprep.subr.mxu0 0.0
        %2086 = vmatpush1.msra.mxu0 0.0
        %2087 = vmatprep.subr.mxu0 0.0
        %2088 = vmatpush1.msra.mxu0 0.0
        %2089 = vmatprep.subr.mxu0 0.0
        %2090 = vmatpush1.msra.mxu0 0.0
        %2091 = vmatprep.subr.mxu0 0.0
        %2092 = vmatpush1.msra.mxu0 0.0
        %2093 = vmatprep.subr.mxu0 0.0
        %2094 = vmatpush1.msra.mxu0 0.0
        %2095 = vmatprep.subr.mxu0 0.0
        %2096 = vmatpush1.msra.mxu0 0.0
        %2097 = vmatprep.subr.mxu0 0.0
        %2098 = vmatpush1.msra.mxu0 0.0
        %2099 = vmatprep.subr.mxu0 0.0
        %2100 = vmatpush1.msra.mxu0 0.0
        %2101 = vmatprep.subr.mxu0 0.0
        %2102 = vmatpush1.msra.mxu0 0.0
        %2103 = vmatprep.subr.mxu0 0.0
        %2104 = vmatpush1.msra.mxu0 0.0
        %2105 = vmatprep.subr.mxu0 0.0
        %2106 = vmatpush1.msra.mxu0 0.0
        %2107 = vmatprep.subr.mxu0 0.0
        %2108 = vmatpush1.msra.mxu0 0.0
        %2109 = vmatprep.subr.mxu0 0.0
        %2110 = vmatpush1.msra.mxu0 0.0
        %2111 = vmatprep.subr.mxu0 0.0
        %2112 = vmatpush1.msra.mxu0 0.0
        %2113 = vmatprep.subr.mxu0 0.0
        %2114 = vmatpush1.msra.mxu0 0.0
        %2115 = vmatprep.subr.mxu0 0.0
        %2116 = vmatpush1.msra.mxu0 0.0
        %2117 = vmatprep.subr.mxu0 0.0
        %2118 = vmatpush1.msra.mxu0 0.0
        %2119 = vmatprep.subr.mxu0 0.0
        %2120 = vmatpush1.msra.mxu0 0.0
        %2121 = vmatprep.subr.mxu0 0.0
        %2122 = vmatpush1.msra.mxu0 0.0
        %2123 = vmatprep.subr.mxu0 0.0
        %2124 = vmatpush1.msra.mxu0 0.0
        %2125 = vmatprep.subr.mxu0 0.0
        %2126 = vmatpush1.msra.mxu0 0.0
        %2127 = vmatprep.subr.mxu0 0.0
        %2128 = vmatpush1.msra.mxu0 0.0
        %2129 = vmatprep.mubr.f32.mxu0 0.0
        %2130 = vmatmul.mubr.f32.gmra.mrb[0].mxu0 %v2046
        %v2131 = vpop.f32.mrb[0].mxu0
        %v2132 = vadd.f32 0.0, %v2131
        %v2133 = vpop.f32.mrb[0].mxu0
        %2134 = vmatprep.mubr.f32.mxu0 0.0
        %2135 = vmatmul.mubr.f32.gmra.mrb[0].mxu0 %v2048
        %v2136 = vpop.f32.mrb[0].mxu0
        %v2137 = vadd.f32 0.0, %v2136
        %v2138 = vpop.f32.mrb[0].mxu0
        %2139 = vmatprep.mubr.f32.mxu0 0.0
        %2140 = vmatmul.mubr.f32.gmra.mrb[0].mxu0 %v2050
        %v2141 = vpop.f32.mrb[0].mxu0
        %v2142 = vadd.f32 0.0, %v2141
        %v2143 = vpop.f32.mrb[0].mxu0
        %2144 = vmatprep.mubr.f32.mxu0 0.0
        %2145 = vmatmul.mubr.f32.gmra.mrb[0].mxu0 %v2052
        %v2146 = vpop.f32.mrb[0].mxu0
        %v2147 = vadd.f32 0.0, %v2146
        %v2148 = vpop.f32.mrb[0].mxu0
        %2149 = vmatprep.mubr.f32.mxu0 0.0
        %2150 = vmatmul.mubr.f32.gmra.mrb[0].mxu0 %v2054
        %v2151 = vpop.f32.mrb[0].mxu0
        %v2152 = vadd.f32 0.0, %v2151
        %v2153 = vpop.f32.mrb[0].mxu0
        %2154 = vmatprep.mubr.f32.mxu0 0.0
        %2155 = vmatmul.mubr.f32.gmra.mrb[0].mxu0 %v2056
        %v2156 = vpop.f32.mrb[0].mxu0
        %v2157 = vadd.f32 0.0, %v2156
        %v2158 = vpop.f32.mrb[0].mxu0
        %2159 = vmatprep.mubr.f32.mxu0 0.0
        %2160 = vmatmul.mubr.f32.gmra.mrb[0].mxu0 %v2058
        %v2161 = vpop.f32.mrb[0].mxu0
        %v2162 = vadd.f32 0.0, %v2161
        %v2163 = vpop.f32.mrb[0].mxu0
        %2164 = vmatprep.mubr.f32.mxu0 0.0
        %2165 = vmatmul.mubr.f32.gmra.mrb[0].mxu0 %v2060
        %v2166 = vpop.f32.mrb[0].mxu0
        %v2167 = vadd.f32 0.0, %v2166
        %v2168 = vpop.f32.mrb[0].mxu0
        %2169 = vdwg.mxu0
        %v2170 = vmul.f32 %v2132, 0.015625
        %v2171 = vmul.f32 %v2137, 0.015625
        %v2172 = vmul.f32 %v2142, 0.015625
        %v2173 = vmul.f32 %v2147, 0.015625
        %v2174 = vmul.f32 %v2152, 0.015625
        %v2175 = vmul.f32 %v2157, 0.015625
        %v2176 = vmul.f32 %v2162, 0.015625
        %v2177 = vmul.f32 %v2167, 0.015625
        %2178 = vst.msk [vmem:[#allocation2] sm:$0xff] %vm1141, %v2170
        %2179 = vst.msk [vmem:[#allocation2 + $0x8] sm:$0xff] %vm1141, %v2171
        %2180 = vst.msk [vmem:[#allocation2 + $0x10] sm:$0xff] %vm1141, %v2172
        %2181 = vst.msk [vmem:[#allocation2 + $0x18] sm:$0xff] %vm1141, %v2173
        %2182 = vst.msk [vmem:[#allocation2 + $0x20] sm:$0xff] %vm1141, %v2174
        %2183 = vst.msk [vmem:[#allocation2 + $0x28] sm:$0xff] %vm1141, %v2175
        %2184 = vst.msk [vmem:[#allocation2 + $0x30] sm:$0xff] %vm1141, %v2176
        %2185 = vst.msk [vmem:[#allocation2 + $0x38] sm:$0xff] %vm1141, %v2177
        %2186 = vrot.lane.b32.xlu0 %v879, 108
        %v2187 = vpop.permute.xlu0 %2186
        %2188 = vrot.lane.b32.xlu0 %v880, 108
        %v2189 = vpop.permute.xlu0 %2188
        %2190 = vrot.lane.b32.xlu0 %v881, 108
        %v2191 = vpop.permute.xlu0 %2190
        %2192 = vrot.lane.b32.xlu0 %v882, 108
        %v2193 = vpop.permute.xlu0 %2192
        %2194 = vrot.lane.b32.xlu0 %v883, 108
        %v2195 = vpop.permute.xlu0 %2194
        %2196 = vrot.lane.b32.xlu0 %v884, 108
        %v2197 = vpop.permute.xlu0 %2196
        %2198 = vrot.lane.b32.xlu0 %v885, 108
        %v2199 = vpop.permute.xlu0 %2198
        %2200 = vrot.lane.b32.xlu0 %v886, 108
        %v2201 = vpop.permute.xlu0 %2200
        %2210 = vxpose.xlu0.b32.start [1/16] %v2187, 128
        %2211 = vxpose.xlu0.b32.cont [2/16] %v2189, 128
        %2212 = vxpose.xlu0.b32.cont [3/16] %v2191, 128
        %2213 = vxpose.xlu0.b32.cont [4/16] %v2193, 128
        %2214 = vxpose.xlu0.b32.cont [5/16] %v2195, 128
        %2215 = vxpose.xlu0.b32.cont [6/16] %v2197, 128
        %2216 = vxpose.xlu0.b32.cont [7/16] %v2199, 128
        %2217 = vxpose.xlu0.b32.cont [8/16] %v2201, 128
        %2218 = vxpose.xlu0.b32.cont [9/16] 0.0, 128
        %2219 = vxpose.xlu0.b32.cont [10/16] 0.0, 128
        %2220 = vxpose.xlu0.b32.cont [11/16] 0.0, 128
        %2221 = vxpose.xlu0.b32.cont [12/16] 0.0, 128
        %2222 = vxpose.xlu0.b32.cont [13/16] 0.0, 128
        %2223 = vxpose.xlu0.b32.cont [14/16] 0.0, 128
        %2224 = vxpose.xlu0.b32.cont [15/16] 0.0, 128
        %2225 = vxpose.xlu0.b32.end [16/16] 0.0, 128
        %v2226 = vpop.trf.xlu0
        %v2227 = vpop.trf.xlu0
        %v2228 = vpop.trf.xlu0
        %v2229 = vpop.trf.xlu0
        %v2230 = vpop.trf.xlu0
        %v2231 = vpop.trf.xlu0
        %v2232 = vpop.trf.xlu0
        %v2233 = vpop.trf.xlu0
        %v2234 = vpop.trf.xlu0
        %v2235 = vpop.trf.xlu0
        %v2236 = vpop.trf.xlu0
        %v2237 = vpop.trf.xlu0
        %v2238 = vpop.trf.xlu0
        %v2239 = vpop.trf.xlu0
        %v2240 = vpop.trf.xlu0
        %v2241 = vpop.trf.xlu0
        %v2243 = vsel %vm1066, %v2226, 0
        %2245 = vmatprep.subr.mxu0 0.0
        %2246 = vmatpush1.msra.mxu0 %v502
        %2247 = vmatprep.subr.mxu0 0.0
        %2248 = vmatpush1.msra.mxu0 %v503
        %2249 = vmatprep.subr.mxu0 0.0
        %2250 = vmatpush1.msra.mxu0 %v504
        %2251 = vmatprep.subr.mxu0 0.0
        %2252 = vmatpush1.msra.mxu0 %v505
        %2253 = vmatprep.subr.mxu0 0.0
        %2254 = vmatpush1.msra.mxu0 %v506
        %2255 = vmatprep.subr.mxu0 0.0
        %2256 = vmatpush1.msra.mxu0 %v507
        %2257 = vmatprep.subr.mxu0 0.0
        %2258 = vmatpush1.msra.mxu0 %v508
        %2259 = vmatprep.subr.mxu0 0.0
        %2260 = vmatpush1.msra.mxu0 %v509
        %2261 = vmatprep.subr.mxu0 0.0
        %2262 = vmatpush1.msra.mxu0 0.0
        %2263 = vmatprep.subr.mxu0 0.0
        %2264 = vmatpush1.msra.mxu0 0.0
        %2265 = vmatprep.subr.mxu0 0.0
        %2266 = vmatpush1.msra.mxu0 0.0
        %2267 = vmatprep.subr.mxu0 0.0
        %2268 = vmatpush1.msra.mxu0 0.0
        %2269 = vmatprep.subr.mxu0 0.0
        %2270 = vmatpush1.msra.mxu0 0.0
        %2271 = vmatprep.subr.mxu0 0.0
        %2272 = vmatpush1.msra.mxu0 0.0
        %2273 = vmatprep.subr.mxu0 0.0
        %2274 = vmatpush1.msra.mxu0 0.0
        %2275 = vmatprep.subr.mxu0 0.0
        %2276 = vmatpush1.msra.mxu0 0.0
        %2277 = vmatprep.subr.mxu0 0.0
        %2278 = vmatpush1.msra.mxu0 0.0
        %2279 = vmatprep.subr.mxu0 0.0
        %2280 = vmatpush1.msra.mxu0 0.0
        %2281 = vmatprep.subr.mxu0 0.0
        %2282 = vmatpush1.msra.mxu0 0.0
        %2283 = vmatprep.subr.mxu0 0.0
        %2284 = vmatpush1.msra.mxu0 0.0
        %2285 = vmatprep.subr.mxu0 0.0
        %2286 = vmatpush1.msra.mxu0 0.0
        %2287 = vmatprep.subr.mxu0 0.0
        %2288 = vmatpush1.msra.mxu0 0.0
        %2289 = vmatprep.subr.mxu0 0.0
        %2290 = vmatpush1.msra.mxu0 0.0
        %2291 = vmatprep.subr.mxu0 0.0
        %2292 = vmatpush1.msra.mxu0 0.0
        %2293 = vmatprep.subr.mxu0 0.0
        %2294 = vmatpush1.msra.mxu0 0.0
        %2295 = vmatprep.subr.mxu0 0.0
        %2296 = vmatpush1.msra.mxu0 0.0
        %2297 = vmatprep.subr.mxu0 0.0
        %2298 = vmatpush1.msra.mxu0 0.0
        %2299 = vmatprep.subr.mxu0 0.0
        %2300 = vmatpush1.msra.mxu0 0.0
        %2301 = vmatprep.subr.mxu0 0.0
        %2302 = vmatpush1.msra.mxu0 0.0
        %2303 = vmatprep.subr.mxu0 0.0
        %2304 = vmatpush1.msra.mxu0 0.0
        %2305 = vmatprep.subr.mxu0 0.0
        %2306 = vmatpush1.msra.mxu0 0.0
        %2307 = vmatprep.subr.mxu0 0.0
        %2308 = vmatpush1.msra.mxu0 0.0
        %2309 = vmatprep.mubr.f32.mxu0 0.0
        %2310 = vmatmul.mubr.f32.gmra.mrb[0].mxu0 %v2243
        %v2311 = vpop.f32.mrb[0].mxu0
        %v2312 = vadd.f32 0.0, %v2311
        %v2313 = vpop.f32.mrb[0].mxu0
        %2314 = vdwg.mxu0
        %2315 = vrot.lane.b32.xlu0 %v879, 124
        %v2316 = vpop.permute.xlu0 %2315
        %2317 = vrot.lane.b32.xlu0 %v880, 124
        %v2318 = vpop.permute.xlu0 %2317
        %2319 = vrot.lane.b32.xlu0 %v881, 124
        %v2320 = vpop.permute.xlu0 %2319
        %2321 = vrot.lane.b32.xlu0 %v882, 124
        %v2322 = vpop.permute.xlu0 %2321
        %2323 = vrot.lane.b32.xlu0 %v883, 124
        %v2324 = vpop.permute.xlu0 %2323
        %2325 = vrot.lane.b32.xlu0 %v884, 124
        %v2326 = vpop.permute.xlu0 %2325
        %2327 = vrot.lane.b32.xlu0 %v885, 124
        %v2328 = vpop.permute.xlu0 %2327
        %2329 = vrot.lane.b32.xlu0 %v886, 124
        %v2330 = vpop.permute.xlu0 %2329
        %v2331 = vsel %vm1141, %v2316, 0
        %v2333 = vsel %vm1141, %v2318, 0
        %v2335 = vsel %vm1141, %v2320, 0
        %v2337 = vsel %vm1141, %v2322, 0
        %v2339 = vsel %vm1141, %v2324, 0
        %v2341 = vsel %vm1141, %v2326, 0
        %v2343 = vsel %vm1141, %v2328, 0
        %v2345 = vsel %vm1141, %v2330, 0
        %v2348 = vsel %vm1245, %v2312, 0
        %2350 = vmatprep.subr.mxu0 0.0
        %2351 = vmatpush1.msra.mxu0 %v2348
        %2352 = vmatprep.subr.mxu0 0.0
        %2353 = vmatpush1.msra.mxu0 0.0
        %2354 = vmatprep.subr.mxu0 0.0
        %2355 = vmatpush1.msra.mxu0 0.0
        %2356 = vmatprep.subr.mxu0 0.0
        %2357 = vmatpush1.msra.mxu0 0.0
        %2358 = vmatprep.subr.mxu0 0.0
        %2359 = vmatpush1.msra.mxu0 0.0
        %2360 = vmatprep.subr.mxu0 0.0
        %2361 = vmatpush1.msra.mxu0 0.0
        %2362 = vmatprep.subr.mxu0 0.0
        %2363 = vmatpush1.msra.mxu0 0.0
        %2364 = vmatprep.subr.mxu0 0.0
        %2365 = vmatpush1.msra.mxu0 0.0
        %2366 = vmatprep.subr.mxu0 0.0
        %2367 = vmatpush1.msra.mxu0 0.0
        %2368 = vmatprep.subr.mxu0 0.0
        %2369 = vmatpush1.msra.mxu0 0.0
        %2370 = vmatprep.subr.mxu0 0.0
        %2371 = vmatpush1.msra.mxu0 0.0
        %2372 = vmatprep.subr.mxu0 0.0
        %2373 = vmatpush1.msra.mxu0 0.0
        %2374 = vmatprep.subr.mxu0 0.0
        %2375 = vmatpush1.msra.mxu0 0.0
        %2376 = vmatprep.subr.mxu0 0.0
        %2377 = vmatpush1.msra.mxu0 0.0
        %2378 = vmatprep.subr.mxu0 0.0
        %2379 = vmatpush1.msra.mxu0 0.0
        %2380 = vmatprep.subr.mxu0 0.0
        %2381 = vmatpush1.msra.mxu0 0.0
        %2382 = vmatprep.subr.mxu0 0.0
        %2383 = vmatpush1.msra.mxu0 0.0
        %2384 = vmatprep.subr.mxu0 0.0
        %2385 = vmatpush1.msra.mxu0 0.0
        %2386 = vmatprep.subr.mxu0 0.0
        %2387 = vmatpush1.msra.mxu0 0.0
        %2388 = vmatprep.subr.mxu0 0.0
        %2389 = vmatpush1.msra.mxu0 0.0
        %2390 = vmatprep.subr.mxu0 0.0
        %2391 = vmatpush1.msra.mxu0 0.0
        %2392 = vmatprep.subr.mxu0 0.0
        %2393 = vmatpush1.msra.mxu0 0.0
        %2394 = vmatprep.subr.mxu0 0.0
        %2395 = vmatpush1.msra.mxu0 0.0
        %2396 = vmatprep.subr.mxu0 0.0
        %2397 = vmatpush1.msra.mxu0 0.0
        %2398 = vmatprep.subr.mxu0 0.0
        %2399 = vmatpush1.msra.mxu0 0.0
        %2400 = vmatprep.subr.mxu0 0.0
        %2401 = vmatpush1.msra.mxu0 0.0
        %2402 = vmatprep.subr.mxu0 0.0
        %2403 = vmatpush1.msra.mxu0 0.0
        %2404 = vmatprep.subr.mxu0 0.0
        %2405 = vmatpush1.msra.mxu0 0.0
        %2406 = vmatprep.subr.mxu0 0.0
        %2407 = vmatpush1.msra.mxu0 0.0
        %2408 = vmatprep.subr.mxu0 0.0
        %2409 = vmatpush1.msra.mxu0 0.0
        %2410 = vmatprep.subr.mxu0 0.0
        %2411 = vmatpush1.msra.mxu0 0.0
        %2412 = vmatprep.subr.mxu0 0.0
        %2413 = vmatpush1.msra.mxu0 0.0
        %2414 = vmatprep.mubr.f32.mxu0 0.0
        %2415 = vmatmul.mubr.f32.gmra.mrb[0].mxu0 %v2331
        %v2416 = vpop.f32.mrb[0].mxu0
        %v2417 = vadd.f32 0.0, %v2416
        %v2418 = vpop.f32.mrb[0].mxu0
        %2419 = vmatprep.mubr.f32.mxu0 0.0
        %2420 = vmatmul.mubr.f32.gmra.mrb[0].mxu0 %v2333
        %v2421 = vpop.f32.mrb[0].mxu0
        %v2422 = vadd.f32 0.0, %v2421
        %v2423 = vpop.f32.mrb[0].mxu0
        %2424 = vmatprep.mubr.f32.mxu0 0.0
        %2425 = vmatmul.mubr.f32.gmra.mrb[0].mxu0 %v2335
        %v2426 = vpop.f32.mrb[0].mxu0
        %v2427 = vadd.f32 0.0, %v2426
        %v2428 = vpop.f32.mrb[0].mxu0
        %2429 = vmatprep.mubr.f32.mxu0 0.0
        %2430 = vmatmul.mubr.f32.gmra.mrb[0].mxu0 %v2337
        %v2431 = vpop.f32.mrb[0].mxu0
        %v2432 = vadd.f32 0.0, %v2431
        %v2433 = vpop.f32.mrb[0].mxu0
        %2434 = vmatprep.mubr.f32.mxu0 0.0
        %2435 = vmatmul.mubr.f32.gmra.mrb[0].mxu0 %v2339
        %v2436 = vpop.f32.mrb[0].mxu0
        %v2437 = vadd.f32 0.0, %v2436
        %v2438 = vpop.f32.mrb[0].mxu0
        %2439 = vmatprep.mubr.f32.mxu0 0.0
        %2440 = vmatmul.mubr.f32.gmra.mrb[0].mxu0 %v2341
        %v2441 = vpop.f32.mrb[0].mxu0
        %v2442 = vadd.f32 0.0, %v2441
        %v2443 = vpop.f32.mrb[0].mxu0
        %2444 = vmatprep.mubr.f32.mxu0 0.0
        %2445 = vmatmul.mubr.f32.gmra.mrb[0].mxu0 %v2343
        %v2446 = vpop.f32.mrb[0].mxu0
        %v2447 = vadd.f32 0.0, %v2446
        %v2448 = vpop.f32.mrb[0].mxu0
        %2449 = vmatprep.mubr.f32.mxu0 0.0
        %2450 = vmatmul.mubr.f32.gmra.mrb[0].mxu0 %v2345
        %v2451 = vpop.f32.mrb[0].mxu0
        %v2452 = vadd.f32 0.0, %v2451
        %v2453 = vpop.f32.mrb[0].mxu0
        %2454 = vdwg.mxu0
        %v2455 = vmul.f32 %v2417, 0.015625
        %v2456 = vmul.f32 %v2422, 0.015625
        %v2457 = vmul.f32 %v2427, 0.015625
        %v2458 = vmul.f32 %v2432, 0.015625
        %v2459 = vmul.f32 %v2437, 0.015625
        %v2460 = vmul.f32 %v2442, 0.015625
        %v2461 = vmul.f32 %v2447, 0.015625
        %v2462 = vmul.f32 %v2452, 0.015625
        %2471 = vrot.lane.b32.xlu0 %v2455, 4
        %v2472 = vpop.permute.xlu0 %2471
        %2473 = vrot.lane.b32.xlu0 %v2456, 4
        %v2474 = vpop.permute.xlu0 %2473
        %2475 = vrot.lane.b32.xlu0 %v2457, 4
        %v2476 = vpop.permute.xlu0 %2475
        %2477 = vrot.lane.b32.xlu0 %v2458, 4
        %v2478 = vpop.permute.xlu0 %2477
        %2479 = vrot.lane.b32.xlu0 %v2459, 4
        %v2480 = vpop.permute.xlu0 %2479
        %2481 = vrot.lane.b32.xlu0 %v2460, 4
        %v2482 = vpop.permute.xlu0 %2481
        %2483 = vrot.lane.b32.xlu0 %v2461, 4
        %v2484 = vpop.permute.xlu0 %2483
        %2485 = vrot.lane.b32.xlu0 %v2462, 4
        %v2486 = vpop.permute.xlu0 %2485
        %vm2495 = vcmask 64544
        %2496 = vst.msk [vmem:[#allocation2] sm:$0xff] %vm2495, %v2472
        %2497 = vst.msk [vmem:[#allocation2 + $0x8] sm:$0xff] %vm2495, %v2474
        %2498 = vst.msk [vmem:[#allocation2 + $0x10] sm:$0xff] %vm2495, %v2476
        %2499 = vst.msk [vmem:[#allocation2 + $0x18] sm:$0xff] %vm2495, %v2478
        %2500 = vst.msk [vmem:[#allocation2 + $0x20] sm:$0xff] %vm2495, %v2480
        %2501 = vst.msk [vmem:[#allocation2 + $0x28] sm:$0xff] %vm2495, %v2482
        %2502 = vst.msk [vmem:[#allocation2 + $0x30] sm:$0xff] %vm2495, %v2484
        %2503 = vst.msk [vmem:[#allocation2 + $0x38] sm:$0xff] %vm2495, %v2486
        %2504 = vrot.lane.b32.xlu0 %v879, 104
        %v2505 = vpop.permute.xlu0 %2504
        %2506 = vrot.lane.b32.xlu0 %v880, 104
        %v2507 = vpop.permute.xlu0 %2506
        %2508 = vrot.lane.b32.xlu0 %v881, 104
        %v2509 = vpop.permute.xlu0 %2508
        %2510 = vrot.lane.b32.xlu0 %v882, 104
        %v2511 = vpop.permute.xlu0 %2510
        %2512 = vrot.lane.b32.xlu0 %v883, 104
        %v2513 = vpop.permute.xlu0 %2512
        %2514 = vrot.lane.b32.xlu0 %v884, 104
        %v2515 = vpop.permute.xlu0 %2514
        %2516 = vrot.lane.b32.xlu0 %v885, 104
        %v2517 = vpop.permute.xlu0 %2516
        %2518 = vrot.lane.b32.xlu0 %v886, 104
        %v2519 = vpop.permute.xlu0 %2518
        %2528 = vxpose.xlu0.b32.start [1/16] %v2505, 128
        %2529 = vxpose.xlu0.b32.cont [2/16] %v2507, 128
        %2530 = vxpose.xlu0.b32.cont [3/16] %v2509, 128
        %2531 = vxpose.xlu0.b32.cont [4/16] %v2511, 128
        %2532 = vxpose.xlu0.b32.cont [5/16] %v2513, 128
        %2533 = vxpose.xlu0.b32.cont [6/16] %v2515, 128
        %2534 = vxpose.xlu0.b32.cont [7/16] %v2517, 128
        %2535 = vxpose.xlu0.b32.cont [8/16] %v2519, 128
        %2536 = vxpose.xlu0.b32.cont [9/16] 0.0, 128
        %2537 = vxpose.xlu0.b32.cont [10/16] 0.0, 128
        %2538 = vxpose.xlu0.b32.cont [11/16] 0.0, 128
        %2539 = vxpose.xlu0.b32.cont [12/16] 0.0, 128
        %2540 = vxpose.xlu0.b32.cont [13/16] 0.0, 128
        %2541 = vxpose.xlu0.b32.cont [14/16] 0.0, 128
        %2542 = vxpose.xlu0.b32.cont [15/16] 0.0, 128
        %2543 = vxpose.xlu0.b32.end [16/16] 0.0, 128
        %v2544 = vpop.trf.xlu0
        %v2545 = vpop.trf.xlu0
        %v2546 = vpop.trf.xlu0
        %v2547 = vpop.trf.xlu0
        %v2548 = vpop.trf.xlu0
        %v2549 = vpop.trf.xlu0
        %v2550 = vpop.trf.xlu0
        %v2551 = vpop.trf.xlu0
        %v2552 = vpop.trf.xlu0
        %v2553 = vpop.trf.xlu0
        %v2554 = vpop.trf.xlu0
        %v2555 = vpop.trf.xlu0
        %v2556 = vpop.trf.xlu0
        %v2557 = vpop.trf.xlu0
        %v2558 = vpop.trf.xlu0
        %v2559 = vpop.trf.xlu0
        %v2561 = vsel %vm1066, %v2544, 0
        %2563 = vmatprep.subr.mxu0 0.0
        %2564 = vmatpush1.msra.mxu0 %v510
        %2565 = vmatprep.subr.mxu0 0.0
        %2566 = vmatpush1.msra.mxu0 %v511
        %2567 = vmatprep.subr.mxu0 0.0
        %2568 = vmatpush1.msra.mxu0 %v512
        %2569 = vmatprep.subr.mxu0 0.0
        %2570 = vmatpush1.msra.mxu0 %v513
        %2571 = vmatprep.subr.mxu0 0.0
        %2572 = vmatpush1.msra.mxu0 %v514
        %2573 = vmatprep.subr.mxu0 0.0
        %2574 = vmatpush1.msra.mxu0 %v515
        %2575 = vmatprep.subr.mxu0 0.0
        %2576 = vmatpush1.msra.mxu0 %v516
        %2577 = vmatprep.subr.mxu0 0.0
        %2578 = vmatpush1.msra.mxu0 %v517
        %2579 = vmatprep.subr.mxu0 0.0
        %2580 = vmatpush1.msra.mxu0 0.0
        %2581 = vmatprep.subr.mxu0 0.0
        %2582 = vmatpush1.msra.mxu0 0.0
        %2583 = vmatprep.subr.mxu0 0.0
        %2584 = vmatpush1.msra.mxu0 0.0
        %2585 = vmatprep.subr.mxu0 0.0
        %2586 = vmatpush1.msra.mxu0 0.0
        %2587 = vmatprep.subr.mxu0 0.0
        %2588 = vmatpush1.msra.mxu0 0.0
        %2589 = vmatprep.subr.mxu0 0.0
        %2590 = vmatpush1.msra.mxu0 0.0
        %2591 = vmatprep.subr.mxu0 0.0
        %2592 = vmatpush1.msra.mxu0 0.0
        %2593 = vmatprep.subr.mxu0 0.0
        %2594 = vmatpush1.msra.mxu0 0.0
        %2595 = vmatprep.subr.mxu0 0.0
        %2596 = vmatpush1.msra.mxu0 0.0
        %2597 = vmatprep.subr.mxu0 0.0
        %2598 = vmatpush1.msra.mxu0 0.0
        %2599 = vmatprep.subr.mxu0 0.0
        %2600 = vmatpush1.msra.mxu0 0.0
        %2601 = vmatprep.subr.mxu0 0.0
        %2602 = vmatpush1.msra.mxu0 0.0
        %2603 = vmatprep.subr.mxu0 0.0
        %2604 = vmatpush1.msra.mxu0 0.0
        %2605 = vmatprep.subr.mxu0 0.0
        %2606 = vmatpush1.msra.mxu0 0.0
        %2607 = vmatprep.subr.mxu0 0.0
        %2608 = vmatpush1.msra.mxu0 0.0
        %2609 = vmatprep.subr.mxu0 0.0
        %2610 = vmatpush1.msra.mxu0 0.0
        %2611 = vmatprep.subr.mxu0 0.0
        %2612 = vmatpush1.msra.mxu0 0.0
        %2613 = vmatprep.subr.mxu0 0.0
        %2614 = vmatpush1.msra.mxu0 0.0
        %2615 = vmatprep.subr.mxu0 0.0
        %2616 = vmatpush1.msra.mxu0 0.0
        %2617 = vmatprep.subr.mxu0 0.0
        %2618 = vmatpush1.msra.mxu0 0.0
        %2619 = vmatprep.subr.mxu0 0.0
        %2620 = vmatpush1.msra.mxu0 0.0
        %2621 = vmatprep.subr.mxu0 0.0
        %2622 = vmatpush1.msra.mxu0 0.0
        %2623 = vmatprep.subr.mxu0 0.0
        %2624 = vmatpush1.msra.mxu0 0.0
        %2625 = vmatprep.subr.mxu0 0.0
        %2626 = vmatpush1.msra.mxu0 0.0
        %2627 = vmatprep.mubr.f32.mxu0 0.0
        %2628 = vmatmul.mubr.f32.gmra.mrb[0].mxu0 %v2561
        %v2629 = vpop.f32.mrb[0].mxu0
        %v2630 = vadd.f32 0.0, %v2629
        %v2631 = vpop.f32.mrb[0].mxu0
        %2632 = vdwg.mxu0
        %2633 = vrot.lane.b32.xlu0 %v879, 120
        %v2634 = vpop.permute.xlu0 %2633
        %2635 = vrot.lane.b32.xlu0 %v880, 120
        %v2636 = vpop.permute.xlu0 %2635
        %2637 = vrot.lane.b32.xlu0 %v881, 120
        %v2638 = vpop.permute.xlu0 %2637
        %2639 = vrot.lane.b32.xlu0 %v882, 120
        %v2640 = vpop.permute.xlu0 %2639
        %2641 = vrot.lane.b32.xlu0 %v883, 120
        %v2642 = vpop.permute.xlu0 %2641
        %2643 = vrot.lane.b32.xlu0 %v884, 120
        %v2644 = vpop.permute.xlu0 %2643
        %2645 = vrot.lane.b32.xlu0 %v885, 120
        %v2646 = vpop.permute.xlu0 %2645
        %2647 = vrot.lane.b32.xlu0 %v886, 120
        %v2648 = vpop.permute.xlu0 %2647
        %v2649 = vsel %vm1141, %v2634, 0
        %v2651 = vsel %vm1141, %v2636, 0
        %v2653 = vsel %vm1141, %v2638, 0
        %v2655 = vsel %vm1141, %v2640, 0
        %v2657 = vsel %vm1141, %v2642, 0
        %v2659 = vsel %vm1141, %v2644, 0
        %v2661 = vsel %vm1141, %v2646, 0
        %v2663 = vsel %vm1141, %v2648, 0
        %v2666 = vsel %vm1245, %v2630, 0
        %2668 = vmatprep.subr.mxu0 0.0
        %2669 = vmatpush1.msra.mxu0 %v2666
        %2670 = vmatprep.subr.mxu0 0.0
        %2671 = vmatpush1.msra.mxu0 0.0
        %2672 = vmatprep.subr.mxu0 0.0
        %2673 = vmatpush1.msra.mxu0 0.0
        %2674 = vmatprep.subr.mxu0 0.0
        %2675 = vmatpush1.msra.mxu0 0.0
        %2676 = vmatprep.subr.mxu0 0.0
        %2677 = vmatpush1.msra.mxu0 0.0
        %2678 = vmatprep.subr.mxu0 0.0
        %2679 = vmatpush1.msra.mxu0 0.0
        %2680 = vmatprep.subr.mxu0 0.0
        %2681 = vmatpush1.msra.mxu0 0.0
        %2682 = vmatprep.subr.mxu0 0.0
        %2683 = vmatpush1.msra.mxu0 0.0
        %2684 = vmatprep.subr.mxu0 0.0
        %2685 = vmatpush1.msra.mxu0 0.0
        %2686 = vmatprep.subr.mxu0 0.0
        %2687 = vmatpush1.msra.mxu0 0.0
        %2688 = vmatprep.subr.mxu0 0.0
        %2689 = vmatpush1.msra.mxu0 0.0
        %2690 = vmatprep.subr.mxu0 0.0
        %2691 = vmatpush1.msra.mxu0 0.0
        %2692 = vmatprep.subr.mxu0 0.0
        %2693 = vmatpush1.msra.mxu0 0.0
        %2694 = vmatprep.subr.mxu0 0.0
        %2695 = vmatpush1.msra.mxu0 0.0
        %2696 = vmatprep.subr.mxu0 0.0
        %2697 = vmatpush1.msra.mxu0 0.0
        %2698 = vmatprep.subr.mxu0 0.0
        %2699 = vmatpush1.msra.mxu0 0.0
        %2700 = vmatprep.subr.mxu0 0.0
        %2701 = vmatpush1.msra.mxu0 0.0
        %2702 = vmatprep.subr.mxu0 0.0
        %2703 = vmatpush1.msra.mxu0 0.0
        %2704 = vmatprep.subr.mxu0 0.0
        %2705 = vmatpush1.msra.mxu0 0.0
        %2706 = vmatprep.subr.mxu0 0.0
        %2707 = vmatpush1.msra.mxu0 0.0
        %2708 = vmatprep.subr.mxu0 0.0
        %2709 = vmatpush1.msra.mxu0 0.0
        %2710 = vmatprep.subr.mxu0 0.0
        %2711 = vmatpush1.msra.mxu0 0.0
        %2712 = vmatprep.subr.mxu0 0.0
        %2713 = vmatpush1.msra.mxu0 0.0
        %2714 = vmatprep.subr.mxu0 0.0
        %2715 = vmatpush1.msra.mxu0 0.0
        %2716 = vmatprep.subr.mxu0 0.0
        %2717 = vmatpush1.msra.mxu0 0.0
        %2718 = vmatprep.subr.mxu0 0.0
        %2719 = vmatpush1.msra.mxu0 0.0
        %2720 = vmatprep.subr.mxu0 0.0
        %2721 = vmatpush1.msra.mxu0 0.0
        %2722 = vmatprep.subr.mxu0 0.0
        %2723 = vmatpush1.msra.mxu0 0.0
        %2724 = vmatprep.subr.mxu0 0.0
        %2725 = vmatpush1.msra.mxu0 0.0
        %2726 = vmatprep.subr.mxu0 0.0
        %2727 = vmatpush1.msra.mxu0 0.0
        %2728 = vmatprep.subr.mxu0 0.0
        %2729 = vmatpush1.msra.mxu0 0.0
        %2730 = vmatprep.subr.mxu0 0.0
        %2731 = vmatpush1.msra.mxu0 0.0
        %2732 = vmatprep.mubr.f32.mxu0 0.0
        %2733 = vmatmul.mubr.f32.gmra.mrb[0].mxu0 %v2649
        %v2734 = vpop.f32.mrb[0].mxu0
        %v2735 = vadd.f32 0.0, %v2734
        %v2736 = vpop.f32.mrb[0].mxu0
        %2737 = vmatprep.mubr.f32.mxu0 0.0
        %2738 = vmatmul.mubr.f32.gmra.mrb[0].mxu0 %v2651
        %v2739 = vpop.f32.mrb[0].mxu0
        %v2740 = vadd.f32 0.0, %v2739
        %v2741 = vpop.f32.mrb[0].mxu0
        %2742 = vmatprep.mubr.f32.mxu0 0.0
        %2743 = vmatmul.mubr.f32.gmra.mrb[0].mxu0 %v2653
        %v2744 = vpop.f32.mrb[0].mxu0
        %v2745 = vadd.f32 0.0, %v2744
        %v2746 = vpop.f32.mrb[0].mxu0
        %2747 = vmatprep.mubr.f32.mxu0 0.0
        %2748 = vmatmul.mubr.f32.gmra.mrb[0].mxu0 %v2655
        %v2749 = vpop.f32.mrb[0].mxu0
        %v2750 = vadd.f32 0.0, %v2749
        %v2751 = vpop.f32.mrb[0].mxu0
        %2752 = vmatprep.mubr.f32.mxu0 0.0
        %2753 = vmatmul.mubr.f32.gmra.mrb[0].mxu0 %v2657
        %v2754 = vpop.f32.mrb[0].mxu0
        %v2755 = vadd.f32 0.0, %v2754
        %v2756 = vpop.f32.mrb[0].mxu0
        %2757 = vmatprep.mubr.f32.mxu0 0.0
        %2758 = vmatmul.mubr.f32.gmra.mrb[0].mxu0 %v2659
        %v2759 = vpop.f32.mrb[0].mxu0
        %v2760 = vadd.f32 0.0, %v2759
        %v2761 = vpop.f32.mrb[0].mxu0
        %2762 = vmatprep.mubr.f32.mxu0 0.0
        %2763 = vmatmul.mubr.f32.gmra.mrb[0].mxu0 %v2661
        %v2764 = vpop.f32.mrb[0].mxu0
        %v2765 = vadd.f32 0.0, %v2764
        %v2766 = vpop.f32.mrb[0].mxu0
        %2767 = vmatprep.mubr.f32.mxu0 0.0
        %2768 = vmatmul.mubr.f32.gmra.mrb[0].mxu0 %v2663
        %v2769 = vpop.f32.mrb[0].mxu0
        %v2770 = vadd.f32 0.0, %v2769
        %v2771 = vpop.f32.mrb[0].mxu0
        %2772 = vdwg.mxu0
        %v2773 = vmul.f32 %v2735, 0.015625
        %v2774 = vmul.f32 %v2740, 0.015625
        %v2775 = vmul.f32 %v2745, 0.015625
        %v2776 = vmul.f32 %v2750, 0.015625
        %v2777 = vmul.f32 %v2755, 0.015625
        %v2778 = vmul.f32 %v2760, 0.015625
        %v2779 = vmul.f32 %v2765, 0.015625
        %v2780 = vmul.f32 %v2770, 0.015625
        %2789 = vrot.lane.b32.xlu0 %v2773, 8
        %v2790 = vpop.permute.xlu0 %2789
        %2791 = vrot.lane.b32.xlu0 %v2774, 8
        %v2792 = vpop.permute.xlu0 %2791
        %2793 = vrot.lane.b32.xlu0 %v2775, 8
        %v2794 = vpop.permute.xlu0 %2793
        %2795 = vrot.lane.b32.xlu0 %v2776, 8
        %v2796 = vpop.permute.xlu0 %2795
        %2797 = vrot.lane.b32.xlu0 %v2777, 8
        %v2798 = vpop.permute.xlu0 %2797
        %2799 = vrot.lane.b32.xlu0 %v2778, 8
        %v2800 = vpop.permute.xlu0 %2799
        %2801 = vrot.lane.b32.xlu0 %v2779, 8
        %v2802 = vpop.permute.xlu0 %2801
        %2803 = vrot.lane.b32.xlu0 %v2780, 8
        %v2804 = vpop.permute.xlu0 %2803
        %vm2813 = vcmask 97344
        %2814 = vst.msk [vmem:[#allocation2] sm:$0xff] %vm2813, %v2790
        %2815 = vst.msk [vmem:[#allocation2 + $0x8] sm:$0xff] %vm2813, %v2792
        %2816 = vst.msk [vmem:[#allocation2 + $0x10] sm:$0xff] %vm2813, %v2794
        %2817 = vst.msk [vmem:[#allocation2 + $0x18] sm:$0xff] %vm2813, %v2796
        %2818 = vst.msk [vmem:[#allocation2 + $0x20] sm:$0xff] %vm2813, %v2798
        %2819 = vst.msk [vmem:[#allocation2 + $0x28] sm:$0xff] %vm2813, %v2800
        %2820 = vst.msk [vmem:[#allocation2 + $0x30] sm:$0xff] %vm2813, %v2802
        %2821 = vst.msk [vmem:[#allocation2 + $0x38] sm:$0xff] %vm2813, %v2804
        %2822 = vrot.lane.b32.xlu0 %v879, 100
        %v2823 = vpop.permute.xlu0 %2822
        %2824 = vrot.lane.b32.xlu0 %v880, 100
        %v2825 = vpop.permute.xlu0 %2824
        %2826 = vrot.lane.b32.xlu0 %v881, 100
        %v2827 = vpop.permute.xlu0 %2826
        %2828 = vrot.lane.b32.xlu0 %v882, 100
        %v2829 = vpop.permute.xlu0 %2828
        %2830 = vrot.lane.b32.xlu0 %v883, 100
        %v2831 = vpop.permute.xlu0 %2830
        %2832 = vrot.lane.b32.xlu0 %v884, 100
        %v2833 = vpop.permute.xlu0 %2832
        %2834 = vrot.lane.b32.xlu0 %v885, 100
        %v2835 = vpop.permute.xlu0 %2834
        %2836 = vrot.lane.b32.xlu0 %v886, 100
        %v2837 = vpop.permute.xlu0 %2836
        %2846 = vxpose.xlu0.b32.start [1/16] %v2823, 128
        %2847 = vxpose.xlu0.b32.cont [2/16] %v2825, 128
        %2848 = vxpose.xlu0.b32.cont [3/16] %v2827, 128
        %2849 = vxpose.xlu0.b32.cont [4/16] %v2829, 128
        %2850 = vxpose.xlu0.b32.cont [5/16] %v2831, 128
        %2851 = vxpose.xlu0.b32.cont [6/16] %v2833, 128
        %2852 = vxpose.xlu0.b32.cont [7/16] %v2835, 128
        %2853 = vxpose.xlu0.b32.cont [8/16] %v2837, 128
        %2854 = vxpose.xlu0.b32.cont [9/16] 0.0, 128
        %2855 = vxpose.xlu0.b32.cont [10/16] 0.0, 128
        %2856 = vxpose.xlu0.b32.cont [11/16] 0.0, 128
        %2857 = vxpose.xlu0.b32.cont [12/16] 0.0, 128
        %2858 = vxpose.xlu0.b32.cont [13/16] 0.0, 128
        %2859 = vxpose.xlu0.b32.cont [14/16] 0.0, 128
        %2860 = vxpose.xlu0.b32.cont [15/16] 0.0, 128
        %2861 = vxpose.xlu0.b32.end [16/16] 0.0, 128
        %v2862 = vpop.trf.xlu0
        %v2863 = vpop.trf.xlu0
        %v2864 = vpop.trf.xlu0
        %v2865 = vpop.trf.xlu0
        %v2866 = vpop.trf.xlu0
        %v2867 = vpop.trf.xlu0
        %v2868 = vpop.trf.xlu0
        %v2869 = vpop.trf.xlu0
        %v2870 = vpop.trf.xlu0
        %v2871 = vpop.trf.xlu0
        %v2872 = vpop.trf.xlu0
        %v2873 = vpop.trf.xlu0
        %v2874 = vpop.trf.xlu0
        %v2875 = vpop.trf.xlu0
        %v2876 = vpop.trf.xlu0
        %v2877 = vpop.trf.xlu0
        %v2879 = vsel %vm1066, %v2862, 0
        %2881 = vmatprep.subr.mxu0 0.0
        %2882 = vmatpush1.msra.mxu0 %v518
        %2883 = vmatprep.subr.mxu0 0.0
        %2884 = vmatpush1.msra.mxu0 %v519
        %2885 = vmatprep.subr.mxu0 0.0
        %2886 = vmatpush1.msra.mxu0 %v520
        %2887 = vmatprep.subr.mxu0 0.0
        %2888 = vmatpush1.msra.mxu0 %v521
        %2889 = vmatprep.subr.mxu0 0.0
        %2890 = vmatpush1.msra.mxu0 %v522
        %2891 = vmatprep.subr.mxu0 0.0
        %2892 = vmatpush1.msra.mxu0 %v523
        %2893 = vmatprep.subr.mxu0 0.0
        %2894 = vmatpush1.msra.mxu0 %v524
        %2895 = vmatprep.subr.mxu0 0.0
        %2896 = vmatpush1.msra.mxu0 %v525
        %2897 = vmatprep.subr.mxu0 0.0
        %2898 = vmatpush1.msra.mxu0 0.0
        %2899 = vmatprep.subr.mxu0 0.0
        %2900 = vmatpush1.msra.mxu0 0.0
        %2901 = vmatprep.subr.mxu0 0.0
        %2902 = vmatpush1.msra.mxu0 0.0
        %2903 = vmatprep.subr.mxu0 0.0
        %2904 = vmatpush1.msra.mxu0 0.0
        %2905 = vmatprep.subr.mxu0 0.0
        %2906 = vmatpush1.msra.mxu0 0.0
        %2907 = vmatprep.subr.mxu0 0.0
        %2908 = vmatpush1.msra.mxu0 0.0
        %2909 = vmatprep.subr.mxu0 0.0
        %2910 = vmatpush1.msra.mxu0 0.0
        %2911 = vmatprep.subr.mxu0 0.0
        %2912 = vmatpush1.msra.mxu0 0.0
        %2913 = vmatprep.subr.mxu0 0.0
        %2914 = vmatpush1.msra.mxu0 0.0
        %2915 = vmatprep.subr.mxu0 0.0
        %2916 = vmatpush1.msra.mxu0 0.0
        %2917 = vmatprep.subr.mxu0 0.0
        %2918 = vmatpush1.msra.mxu0 0.0
        %2919 = vmatprep.subr.mxu0 0.0
        %2920 = vmatpush1.msra.mxu0 0.0
        %2921 = vmatprep.subr.mxu0 0.0
        %2922 = vmatpush1.msra.mxu0 0.0
        %2923 = vmatprep.subr.mxu0 0.0
        %2924 = vmatpush1.msra.mxu0 0.0
        %2925 = vmatprep.subr.mxu0 0.0
        %2926 = vmatpush1.msra.mxu0 0.0
        %2927 = vmatprep.subr.mxu0 0.0
        %2928 = vmatpush1.msra.mxu0 0.0
        %2929 = vmatprep.subr.mxu0 0.0
        %2930 = vmatpush1.msra.mxu0 0.0
        %2931 = vmatprep.subr.mxu0 0.0
        %2932 = vmatpush1.msra.mxu0 0.0
        %2933 = vmatprep.subr.mxu0 0.0
        %2934 = vmatpush1.msra.mxu0 0.0
        %2935 = vmatprep.subr.mxu0 0.0
        %2936 = vmatpush1.msra.mxu0 0.0
        %2937 = vmatprep.subr.mxu0 0.0
        %2938 = vmatpush1.msra.mxu0 0.0
        %2939 = vmatprep.subr.mxu0 0.0
        %2940 = vmatpush1.msra.mxu0 0.0
        %2941 = vmatprep.subr.mxu0 0.0
        %2942 = vmatpush1.msra.mxu0 0.0
        %2943 = vmatprep.subr.mxu0 0.0
        %2944 = vmatpush1.msra.mxu0 0.0
        %2945 = vmatprep.mubr.f32.mxu0 0.0
        %2946 = vmatmul.mubr.f32.gmra.mrb[0].mxu0 %v2879
        %v2947 = vpop.f32.mrb[0].mxu0
        %v2948 = vadd.f32 0.0, %v2947
        %v2949 = vpop.f32.mrb[0].mxu0
        %2950 = vdwg.mxu0
        %2951 = vrot.lane.b32.xlu0 %v879, 116
        %v2952 = vpop.permute.xlu0 %2951
        %2953 = vrot.lane.b32.xlu0 %v880, 116
        %v2954 = vpop.permute.xlu0 %2953
        %2955 = vrot.lane.b32.xlu0 %v881, 116
        %v2956 = vpop.permute.xlu0 %2955
        %2957 = vrot.lane.b32.xlu0 %v882, 116
        %v2958 = vpop.permute.xlu0 %2957
        %2959 = vrot.lane.b32.xlu0 %v883, 116
        %v2960 = vpop.permute.xlu0 %2959
        %2961 = vrot.lane.b32.xlu0 %v884, 116
        %v2962 = vpop.permute.xlu0 %2961
        %2963 = vrot.lane.b32.xlu0 %v885, 116
        %v2964 = vpop.permute.xlu0 %2963
        %2965 = vrot.lane.b32.xlu0 %v886, 116
        %v2966 = vpop.permute.xlu0 %2965
        %v2967 = vsel %vm1141, %v2952, 0
        %v2969 = vsel %vm1141, %v2954, 0
        %v2971 = vsel %vm1141, %v2956, 0
        %v2973 = vsel %vm1141, %v2958, 0
        %v2975 = vsel %vm1141, %v2960, 0
        %v2977 = vsel %vm1141, %v2962, 0
        %v2979 = vsel %vm1141, %v2964, 0
        %v2981 = vsel %vm1141, %v2966, 0
        %v2984 = vsel %vm1245, %v2948, 0
        %2986 = vmatprep.subr.mxu0 0.0
        %2987 = vmatpush1.msra.mxu0 %v2984
        %2988 = vmatprep.subr.mxu0 0.0
        %2989 = vmatpush1.msra.mxu0 0.0
        %2990 = vmatprep.subr.mxu0 0.0
        %2991 = vmatpush1.msra.mxu0 0.0
        %2992 = vmatprep.subr.mxu0 0.0
        %2993 = vmatpush1.msra.mxu0 0.0
        %2994 = vmatprep.subr.mxu0 0.0
        %2995 = vmatpush1.msra.mxu0 0.0
        %2996 = vmatprep.subr.mxu0 0.0
        %2997 = vmatpush1.msra.mxu0 0.0
        %2998 = vmatprep.subr.mxu0 0.0
        %2999 = vmatpush1.msra.mxu0 0.0
        %3000 = vmatprep.subr.mxu0 0.0
        %3001 = vmatpush1.msra.mxu0 0.0
        %3002 = vmatprep.subr.mxu0 0.0
        %3003 = vmatpush1.msra.mxu0 0.0
        %3004 = vmatprep.subr.mxu0 0.0
        %3005 = vmatpush1.msra.mxu0 0.0
        %3006 = vmatprep.subr.mxu0 0.0
        %3007 = vmatpush1.msra.mxu0 0.0
        %3008 = vmatprep.subr.mxu0 0.0
        %3009 = vmatpush1.msra.mxu0 0.0
        %3010 = vmatprep.subr.mxu0 0.0
        %3011 = vmatpush1.msra.mxu0 0.0
        %3012 = vmatprep.subr.mxu0 0.0
        %3013 = vmatpush1.msra.mxu0 0.0
        %3014 = vmatprep.subr.mxu0 0.0
        %3015 = vmatpush1.msra.mxu0 0.0
        %3016 = vmatprep.subr.mxu0 0.0
        %3017 = vmatpush1.msra.mxu0 0.0
        %3018 = vmatprep.subr.mxu0 0.0
        %3019 = vmatpush1.msra.mxu0 0.0
        %3020 = vmatprep.subr.mxu0 0.0
        %3021 = vmatpush1.msra.mxu0 0.0
        %3022 = vmatprep.subr.mxu0 0.0
        %3023 = vmatpush1.msra.mxu0 0.0
        %3024 = vmatprep.subr.mxu0 0.0
        %3025 = vmatpush1.msra.mxu0 0.0
        %3026 = vmatprep.subr.mxu0 0.0
        %3027 = vmatpush1.msra.mxu0 0.0
        %3028 = vmatprep.subr.mxu0 0.0
        %3029 = vmatpush1.msra.mxu0 0.0
        %3030 = vmatprep.subr.mxu0 0.0
        %3031 = vmatpush1.msra.mxu0 0.0
        %3032 = vmatprep.subr.mxu0 0.0
        %3033 = vmatpush1.msra.mxu0 0.0
        %3034 = vmatprep.subr.mxu0 0.0
        %3035 = vmatpush1.msra.mxu0 0.0
        %3036 = vmatprep.subr.mxu0 0.0
        %3037 = vmatpush1.msra.mxu0 0.0
        %3038 = vmatprep.subr.mxu0 0.0
        %3039 = vmatpush1.msra.mxu0 0.0
        %3040 = vmatprep.subr.mxu0 0.0
        %3041 = vmatpush1.msra.mxu0 0.0
        %3042 = vmatprep.subr.mxu0 0.0
        %3043 = vmatpush1.msra.mxu0 0.0
        %3044 = vmatprep.subr.mxu0 0.0
        %3045 = vmatpush1.msra.mxu0 0.0
        %3046 = vmatprep.subr.mxu0 0.0
        %3047 = vmatpush1.msra.mxu0 0.0
        %3048 = vmatprep.subr.mxu0 0.0
        %3049 = vmatpush1.msra.mxu0 0.0
        %3050 = vmatprep.mubr.f32.mxu0 0.0
        %3051 = vmatmul.mubr.f32.gmra.mrb[0].mxu0 %v2967
        %v3052 = vpop.f32.mrb[0].mxu0
        %v3053 = vadd.f32 0.0, %v3052
        %v3054 = vpop.f32.mrb[0].mxu0
        %3055 = vmatprep.mubr.f32.mxu0 0.0
        %3056 = vmatmul.mubr.f32.gmra.mrb[0].mxu0 %v2969
        %v3057 = vpop.f32.mrb[0].mxu0
        %v3058 = vadd.f32 0.0, %v3057
        %v3059 = vpop.f32.mrb[0].mxu0
        %3060 = vmatprep.mubr.f32.mxu0 0.0
        %3061 = vmatmul.mubr.f32.gmra.mrb[0].mxu0 %v2971
        %v3062 = vpop.f32.mrb[0].mxu0
        %v3063 = vadd.f32 0.0, %v3062
        %v3064 = vpop.f32.mrb[0].mxu0
        %3065 = vmatprep.mubr.f32.mxu0 0.0
        %3066 = vmatmul.mubr.f32.gmra.mrb[0].mxu0 %v2973
        %v3067 = vpop.f32.mrb[0].mxu0
        %v3068 = vadd.f32 0.0, %v3067
        %v3069 = vpop.f32.mrb[0].mxu0
        %3070 = vmatprep.mubr.f32.mxu0 0.0
        %3071 = vmatmul.mubr.f32.gmra.mrb[0].mxu0 %v2975
        %v3072 = vpop.f32.mrb[0].mxu0
        %v3073 = vadd.f32 0.0, %v3072
        %v3074 = vpop.f32.mrb[0].mxu0
        %3075 = vmatprep.mubr.f32.mxu0 0.0
        %3076 = vmatmul.mubr.f32.gmra.mrb[0].mxu0 %v2977
        %v3077 = vpop.f32.mrb[0].mxu0
        %v3078 = vadd.f32 0.0, %v3077
        %v3079 = vpop.f32.mrb[0].mxu0
        %3080 = vmatprep.mubr.f32.mxu0 0.0
        %3081 = vmatmul.mubr.f32.gmra.mrb[0].mxu0 %v2979
        %v3082 = vpop.f32.mrb[0].mxu0
        %v3083 = vadd.f32 0.0, %v3082
        %v3084 = vpop.f32.mrb[0].mxu0
        %3085 = vmatprep.mubr.f32.mxu0 0.0
        %3086 = vmatmul.mubr.f32.gmra.mrb[0].mxu0 %v2981
        %v3087 = vpop.f32.mrb[0].mxu0
        %v3088 = vadd.f32 0.0, %v3087
        %v3089 = vpop.f32.mrb[0].mxu0
        %3090 = vdwg.mxu0
        %v3091 = vmul.f32 %v3053, 0.015625
        %v3092 = vmul.f32 %v3058, 0.015625
        %v3093 = vmul.f32 %v3063, 0.015625
        %v3094 = vmul.f32 %v3068, 0.015625
        %v3095 = vmul.f32 %v3073, 0.015625
        %v3096 = vmul.f32 %v3078, 0.015625
        %v3097 = vmul.f32 %v3083, 0.015625
        %v3098 = vmul.f32 %v3088, 0.015625
        %3107 = vrot.lane.b32.xlu0 %v3091, 12
        %v3108 = vpop.permute.xlu0 %3107
        %3109 = vrot.lane.b32.xlu0 %v3092, 12
        %v3110 = vpop.permute.xlu0 %3109
        %3111 = vrot.lane.b32.xlu0 %v3093, 12
        %v3112 = vpop.permute.xlu0 %3111
        %3113 = vrot.lane.b32.xlu0 %v3094, 12
        %v3114 = vpop.permute.xlu0 %3113
        %3115 = vrot.lane.b32.xlu0 %v3095, 12
        %v3116 = vpop.permute.xlu0 %3115
        %3117 = vrot.lane.b32.xlu0 %v3096, 12
        %v3118 = vpop.permute.xlu0 %3117
        %3119 = vrot.lane.b32.xlu0 %v3097, 12
        %v3120 = vpop.permute.xlu0 %3119
        %3121 = vrot.lane.b32.xlu0 %v3098, 12
        %v3122 = vpop.permute.xlu0 %3121
        %vm3131 = vcmask 130144
        %3132 = vst.msk [vmem:[#allocation2] sm:$0xff] %vm3131, %v3108
        %3133 = vst.msk [vmem:[#allocation2 + $0x8] sm:$0xff] %vm3131, %v3110
        %3134 = vst.msk [vmem:[#allocation2 + $0x10] sm:$0xff] %vm3131, %v3112
        %3135 = vst.msk [vmem:[#allocation2 + $0x18] sm:$0xff] %vm3131, %v3114
        %3136 = vst.msk [vmem:[#allocation2 + $0x20] sm:$0xff] %vm3131, %v3116
        %3137 = vst.msk [vmem:[#allocation2 + $0x28] sm:$0xff] %vm3131, %v3118
        %3138 = vst.msk [vmem:[#allocation2 + $0x30] sm:$0xff] %vm3131, %v3120
        %3139 = vst.msk [vmem:[#allocation2 + $0x38] sm:$0xff] %vm3131, %v3122
        %v3140 = vld [vmem:[#allocation2] sm:$0xff]
        %v3141 = vld [vmem:[#allocation2 + $0x8] sm:$0xff]
        %v3142 = vld [vmem:[#allocation2 + $0x10] sm:$0xff]
        %v3143 = vld [vmem:[#allocation2 + $0x18] sm:$0xff]
        %v3144 = vld [vmem:[#allocation2 + $0x20] sm:$0xff]
        %v3145 = vld [vmem:[#allocation2 + $0x28] sm:$0xff]
        %v3146 = vld [vmem:[#allocation2 + $0x30] sm:$0xff]
        %v3147 = vld [vmem:[#allocation2 + $0x38] sm:$0xff]
        %v3148 = vmul.f32 %v3140, %v1894
        %v3149 = vmul.f32 %v3141, %v1896
        %v3150 = vmul.f32 %v3142, %v1898
        %v3151 = vmul.f32 %v3143, %v1900
        %v3152 = vmul.f32 %v3144, %v1902
        %v3153 = vmul.f32 %v3145, %v1904
        %v3154 = vmul.f32 %v3146, %v1906
        %v3155 = vmul.f32 %v3147, %v1908
        %3156 = vst.msk [vmem:[#allocation2] sm:$0xff] %vm535, %v3148
        %3157 = vst.msk [vmem:[#allocation2 + $0x8] sm:$0xff] %vm535, %v3149
        %3158 = vst.msk [vmem:[#allocation2 + $0x10] sm:$0xff] %vm535, %v3150
        %3159 = vst.msk [vmem:[#allocation2 + $0x18] sm:$0xff] %vm535, %v3151
        %3160 = vst.msk [vmem:[#allocation2 + $0x20] sm:$0xff] %vm535, %v3152
        %3161 = vst.msk [vmem:[#allocation2 + $0x28] sm:$0xff] %vm535, %v3153
        %3162 = vst.msk [vmem:[#allocation2 + $0x30] sm:$0xff] %vm535, %v3154
        %3163 = vst.msk [vmem:[#allocation2 + $0x38] sm:$0xff] %vm535, %v3155
        %3164 = vst.msk [vmem:[#allocation3] sm:$0xff] %vm535, 0.0
        %vm3165 = vcmask 123904
        %3166 = vst.msk [vmem:[#allocation3 + $0x8] sm:$0x3] %vm3165, 0.0
        %s3167 = scalar_lea.vmem [#allocation3], 144
        %3168 = vst.msk [vmem:[%s3167] sm:$0xff] %vm535, 0.0
        %3169 = vst.msk [vmem:[%s3167 + $0x8] sm:$0x3] %vm3165, 0.0
        %vm3170 = vcmask 122880
        %3171 = vst.msk [vmem:[#allocation3] sm:$0x1] %vm3170, 0.0
        %3172 = vst.msk [vmem:[#allocation3 + $0x10] sm:$0x1] %vm3170, 0.0
        %3173 = vst.msk [vmem:[#allocation3 + $0x20] sm:$0x1] %vm3170, 0.0
        %3174 = vst.msk [vmem:[#allocation3 + $0x30] sm:$0x1] %vm3170, 0.0
        %3175 = vst.msk [vmem:[#allocation3 + $0x40] sm:$0x1] %vm3170, 0.0
        %3176 = vst.msk [vmem:[#allocation3 + $0x50] sm:$0x1] %vm3170, 0.0
        %3177 = vst.msk [vmem:[#allocation3 + $0x60] sm:$0x1] %vm3170, 0.0
        %3178 = vst.msk [vmem:[#allocation3 + $0x70] sm:$0x1] %vm3170, 0.0
        %3179 = vst.msk [vmem:[#allocation3 + $0x80] sm:$0x1] %vm3170, 0.0
        %3180 = vst.msk [vmem:[#allocation3 + $0x90] sm:$0x1] %vm3170, 0.0
        %3181 = vst.msk [vmem:[#allocation3 + $0x9] sm:$0x1] %vm3170, 0.0
        %3182 = vst.msk [vmem:[#allocation3 + $0x19] sm:$0x1] %vm3170, 0.0
        %3183 = vst.msk [vmem:[#allocation3 + $0x29] sm:$0x1] %vm3170, 0.0
        %3184 = vst.msk [vmem:[#allocation3 + $0x39] sm:$0x1] %vm3170, 0.0
        %3185 = vst.msk [vmem:[#allocation3 + $0x49] sm:$0x1] %vm3170, 0.0
        %3186 = vst.msk [vmem:[#allocation3 + $0x59] sm:$0x1] %vm3170, 0.0
        %3187 = vst.msk [vmem:[#allocation3 + $0x69] sm:$0x1] %vm3170, 0.0
        %3188 = vst.msk [vmem:[#allocation3 + $0x79] sm:$0x1] %vm3170, 0.0
        %3189 = vst.msk [vmem:[#allocation3 + $0x89] sm:$0x1] %vm3170, 0.0
        %3190 = vst.msk [vmem:[#allocation3 + $0x99] sm:$0x1] %vm3170, 0.0
        %s3191 = scalar_lea.vmem [#allocation3], 16
        %3192 = vst.msk [vmem:[%s3191 + $0x1] sm:$0xff] %vm535, %v486
        %s3193 = scalar_lea.vmem [#allocation3], 32
        %3194 = vst.msk [vmem:[%s3193 + $0x1] sm:$0xff] %vm535, %v487
        %s3195 = scalar_lea.vmem [#allocation3], 48
        %3196 = vst.msk [vmem:[%s3195 + $0x1] sm:$0xff] %vm535, %v488
        %s3197 = scalar_lea.vmem [#allocation3], 64
        %3198 = vst.msk [vmem:[%s3197 + $0x1] sm:$0xff] %vm535, %v489
        %s3199 = scalar_lea.vmem [#allocation3], 80
        %3200 = vst.msk [vmem:[%s3199 + $0x1] sm:$0xff] %vm535, %v490
        %s3201 = scalar_lea.vmem [#allocation3], 96
        %3202 = vst.msk [vmem:[%s3201 + $0x1] sm:$0xff] %vm535, %v491
        %s3203 = scalar_lea.vmem [#allocation3], 112
        %3204 = vst.msk [vmem:[%s3203 + $0x1] sm:$0xff] %vm535, %v492
        %s3205 = scalar_lea.vmem [#allocation3], 128
        %3206 = vst.msk [vmem:[%s3205 + $0x1] sm:$0xff] %vm535, %v493
        %v3207 = vld [vmem:[%s12] sm:$0x1]
        %v3208 = vld [vmem:[%s12 + $0x1] sm:$0x1]
        %v3209 = vld [vmem:[%s12 + $0x2] sm:$0x1]
        %v3210 = vld [vmem:[%s12 + $0x3] sm:$0x1]
        %v3211 = vld [vmem:[%s12 + $0x4] sm:$0x1]
        %v3212 = vld [vmem:[%s12 + $0x5] sm:$0x1]
        %v3213 = vld [vmem:[%s12 + $0x6] sm:$0x1]
        %v3214 = vld [vmem:[%s12 + $0x7] sm:$0x1]
        %v3215 = vld [vmem:[%s12 + $0x8] sm:$0x1]
        %v3216 = vld [vmem:[#allocation3] sm:$0xff]
        %v3217 = vld [vmem:[#allocation3 + $0x10] sm:$0xff]
        %v3218 = vld [vmem:[#allocation3 + $0x20] sm:$0xff]
        %v3219 = vld [vmem:[#allocation3 + $0x30] sm:$0xff]
        %v3220 = vld [vmem:[#allocation3 + $0x40] sm:$0xff]
        %v3221 = vld [vmem:[#allocation3 + $0x50] sm:$0xff]
        %v3222 = vld [vmem:[#allocation3 + $0x60] sm:$0xff]
        %v3223 = vld [vmem:[#allocation3 + $0x70] sm:$0xff]
        %v3224 = vld [vmem:[#allocation3 + $0x80] sm:$0xff]
        %v3225 = vld [vmem:[#allocation3 + $0x90] sm:$0xff]
        %v3227 = vlaneseq
        %v3228 = vshrl.u32 %v3227, 7
        %v3229 = vsub.s32 0, %v3228
        %v3230 = vrot.slane %v3207, %v3229
        %v3232 = vmul.f32 %v3216, %v3230
        %v3233 = vmul.f32 %v3217, %v3230
        %v3234 = vmul.f32 %v3218, %v3230
        %v3235 = vmul.f32 %v3219, %v3230
        %v3236 = vmul.f32 %v3220, %v3230
        %v3237 = vmul.f32 %v3221, %v3230
        %v3238 = vmul.f32 %v3222, %v3230
        %v3239 = vmul.f32 %v3223, %v3230
        %v3240 = vadd.f32 %v3232, 0.0
        %v3241 = vadd.f32 %v3233, 0.0
        %v3242 = vadd.f32 %v3234, 0.0
        %v3243 = vadd.f32 %v3235, 0.0
        %v3244 = vadd.f32 %v3236, 0.0
        %v3245 = vadd.f32 %v3237, 0.0
        %v3246 = vadd.f32 %v3238, 0.0
        %v3247 = vadd.f32 %v3239, 0.0
        %v3249 = vlaneseq
        %v3250 = vshrl.u32 %v3249, 7
        %v3251 = vsub.s32 0, %v3250
        %v3252 = vrot.slane %v3210, %v3251
        %v3254 = vmul.f32 %v3217, %v3252
        %v3255 = vmul.f32 %v3218, %v3252
        %v3256 = vmul.f32 %v3219, %v3252
        %v3257 = vmul.f32 %v3220, %v3252
        %v3258 = vmul.f32 %v3221, %v3252
        %v3259 = vmul.f32 %v3222, %v3252
        %v3260 = vmul.f32 %v3223, %v3252
        %v3261 = vmul.f32 %v3224, %v3252
        %v3262 = vadd.f32 %v3240, %v3254
        %v3263 = vadd.f32 %v3241, %v3255
        %v3264 = vadd.f32 %v3242, %v3256
        %v3265 = vadd.f32 %v3243, %v3257
        %v3266 = vadd.f32 %v3244, %v3258
        %v3267 = vadd.f32 %v3245, %v3259
        %v3268 = vadd.f32 %v3246, %v3260
        %v3269 = vadd.f32 %v3247, %v3261
        %v3271 = vlaneseq
        %v3272 = vshrl.u32 %v3271, 7
        %v3273 = vsub.s32 0, %v3272
        %v3274 = vrot.slane %v3213, %v3273
        %v3276 = vmul.f32 %v3218, %v3274
        %v3277 = vmul.f32 %v3219, %v3274
        %v3278 = vmul.f32 %v3220, %v3274
        %v3279 = vmul.f32 %v3221, %v3274
        %v3280 = vmul.f32 %v3222, %v3274
        %v3281 = vmul.f32 %v3223, %v3274
        %v3282 = vmul.f32 %v3224, %v3274
        %v3283 = vmul.f32 %v3225, %v3274
        %v3284 = vadd.f32 %v3262, %v3276
        %v3285 = vadd.f32 %v3263, %v3277
        %v3286 = vadd.f32 %v3264, %v3278
        %v3287 = vadd.f32 %v3265, %v3279
        %v3288 = vadd.f32 %v3266, %v3280
        %v3289 = vadd.f32 %v3267, %v3281
        %v3290 = vadd.f32 %v3268, %v3282
        %v3291 = vadd.f32 %v3269, %v3283
        %v3292 = vld [vmem:[#allocation3 + $0x1] sm:$0xff]
        %v3293 = vld [vmem:[#allocation3 + $0x11] sm:$0xff]
        %v3294 = vld [vmem:[#allocation3 + $0x21] sm:$0xff]
        %v3295 = vld [vmem:[#allocation3 + $0x31] sm:$0xff]
        %v3296 = vld [vmem:[#allocation3 + $0x41] sm:$0xff]
        %v3297 = vld [vmem:[#allocation3 + $0x51] sm:$0xff]
        %v3298 = vld [vmem:[#allocation3 + $0x61] sm:$0xff]
        %v3299 = vld [vmem:[#allocation3 + $0x71] sm:$0xff]
        %v3300 = vld [vmem:[#allocation3 + $0x81] sm:$0xff]
        %v3301 = vld [vmem:[#allocation3 + $0x91] sm:$0xff]
        %v3303 = vlaneseq
        %v3304 = vshrl.u32 %v3303, 7
        %v3305 = vsub.s32 0, %v3304
        %v3306 = vrot.slane %v3208, %v3305
        %v3308 = vmul.f32 %v3292, %v3306
        %v3309 = vmul.f32 %v3293, %v3306
        %v3310 = vmul.f32 %v3294, %v3306
        %v3311 = vmul.f32 %v3295, %v3306
        %v3312 = vmul.f32 %v3296, %v3306
        %v3313 = vmul.f32 %v3297, %v3306
        %v3314 = vmul.f32 %v3298, %v3306
        %v3315 = vmul.f32 %v3299, %v3306
        %v3316 = vadd.f32 %v3284, %v3308
        %v3317 = vadd.f32 %v3285, %v3309
        %v3318 = vadd.f32 %v3286, %v3310
        %v3319 = vadd.f32 %v3287, %v3311
        %v3320 = vadd.f32 %v3288, %v3312
        %v3321 = vadd.f32 %v3289, %v3313
        %v3322 = vadd.f32 %v3290, %v3314
        %v3323 = vadd.f32 %v3291, %v3315
        %v3325 = vlaneseq
        %v3326 = vshrl.u32 %v3325, 7
        %v3327 = vsub.s32 0, %v3326
        %v3328 = vrot.slane %v3211, %v3327
        %v3330 = vmul.f32 %v3293, %v3328
        %v3331 = vmul.f32 %v3294, %v3328
        %v3332 = vmul.f32 %v3295, %v3328
        %v3333 = vmul.f32 %v3296, %v3328
        %v3334 = vmul.f32 %v3297, %v3328
        %v3335 = vmul.f32 %v3298, %v3328
        %v3336 = vmul.f32 %v3299, %v3328
        %v3337 = vmul.f32 %v3300, %v3328
        %v3338 = vadd.f32 %v3316, %v3330
        %v3339 = vadd.f32 %v3317, %v3331
        %v3340 = vadd.f32 %v3318, %v3332
        %v3341 = vadd.f32 %v3319, %v3333
        %v3342 = vadd.f32 %v3320, %v3334
        %v3343 = vadd.f32 %v3321, %v3335
        %v3344 = vadd.f32 %v3322, %v3336
        %v3345 = vadd.f32 %v3323, %v3337
        %v3347 = vlaneseq
        %v3348 = vshrl.u32 %v3347, 7
        %v3349 = vsub.s32 0, %v3348
        %v3350 = vrot.slane %v3214, %v3349
        %v3352 = vmul.f32 %v3294, %v3350
        %v3353 = vmul.f32 %v3295, %v3350
        %v3354 = vmul.f32 %v3296, %v3350
        %v3355 = vmul.f32 %v3297, %v3350
        %v3356 = vmul.f32 %v3298, %v3350
        %v3357 = vmul.f32 %v3299, %v3350
        %v3358 = vmul.f32 %v3300, %v3350
        %v3359 = vmul.f32 %v3301, %v3350
        %v3360 = vadd.f32 %v3338, %v3352
        %v3361 = vadd.f32 %v3339, %v3353
        %v3362 = vadd.f32 %v3340, %v3354
        %v3363 = vadd.f32 %v3341, %v3355
        %v3364 = vadd.f32 %v3342, %v3356
        %v3365 = vadd.f32 %v3343, %v3357
        %v3366 = vadd.f32 %v3344, %v3358
        %v3367 = vadd.f32 %v3345, %v3359
        %v3368 = vld [vmem:[#allocation3 + $0x2] sm:$0xff]
        %v3369 = vld [vmem:[#allocation3 + $0x12] sm:$0xff]
        %v3370 = vld [vmem:[#allocation3 + $0x22] sm:$0xff]
        %v3371 = vld [vmem:[#allocation3 + $0x32] sm:$0xff]
        %v3372 = vld [vmem:[#allocation3 + $0x42] sm:$0xff]
        %v3373 = vld [vmem:[#allocation3 + $0x52] sm:$0xff]
        %v3374 = vld [vmem:[#allocation3 + $0x62] sm:$0xff]
        %v3375 = vld [vmem:[#allocation3 + $0x72] sm:$0xff]
        %v3376 = vld [vmem:[#allocation3 + $0x82] sm:$0xff]
        %v3377 = vld [vmem:[#allocation3 + $0x92] sm:$0xff]
        %v3379 = vlaneseq
        %v3380 = vshrl.u32 %v3379, 7
        %v3381 = vsub.s32 0, %v3380
        %v3382 = vrot.slane %v3209, %v3381
        %v3384 = vmul.f32 %v3368, %v3382
        %v3385 = vmul.f32 %v3369, %v3382
        %v3386 = vmul.f32 %v3370, %v3382
        %v3387 = vmul.f32 %v3371, %v3382
        %v3388 = vmul.f32 %v3372, %v3382
        %v3389 = vmul.f32 %v3373, %v3382
        %v3390 = vmul.f32 %v3374, %v3382
        %v3391 = vmul.f32 %v3375, %v3382
        %v3392 = vadd.f32 %v3360, %v3384
        %v3393 = vadd.f32 %v3361, %v3385
        %v3394 = vadd.f32 %v3362, %v3386
        %v3395 = vadd.f32 %v3363, %v3387
        %v3396 = vadd.f32 %v3364, %v3388
        %v3397 = vadd.f32 %v3365, %v3389
        %v3398 = vadd.f32 %v3366, %v3390
        %v3399 = vadd.f32 %v3367, %v3391
        %v3401 = vlaneseq
        %v3402 = vshrl.u32 %v3401, 7
        %v3403 = vsub.s32 0, %v3402
        %v3404 = vrot.slane %v3212, %v3403
        %v3406 = vmul.f32 %v3369, %v3404
        %v3407 = vmul.f32 %v3370, %v3404
        %v3408 = vmul.f32 %v3371, %v3404
        %v3409 = vmul.f32 %v3372, %v3404
        %v3410 = vmul.f32 %v3373, %v3404
        %v3411 = vmul.f32 %v3374, %v3404
        %v3412 = vmul.f32 %v3375, %v3404
        %v3413 = vmul.f32 %v3376, %v3404
        %v3414 = vadd.f32 %v3392, %v3406
        %v3415 = vadd.f32 %v3393, %v3407
        %v3416 = vadd.f32 %v3394, %v3408
        %v3417 = vadd.f32 %v3395, %v3409
        %v3418 = vadd.f32 %v3396, %v3410
        %v3419 = vadd.f32 %v3397, %v3411
        %v3420 = vadd.f32 %v3398, %v3412
        %v3421 = vadd.f32 %v3399, %v3413
        %v3423 = vlaneseq
        %v3424 = vshrl.u32 %v3423, 7
        %v3425 = vsub.s32 0, %v3424
        %v3426 = vrot.slane %v3215, %v3425
        %v3428 = vmul.f32 %v3370, %v3426
        %v3429 = vmul.f32 %v3371, %v3426
        %v3430 = vmul.f32 %v3372, %v3426
        %v3431 = vmul.f32 %v3373, %v3426
        %v3432 = vmul.f32 %v3374, %v3426
        %v3433 = vmul.f32 %v3375, %v3426
        %v3434 = vmul.f32 %v3376, %v3426
        %v3435 = vmul.f32 %v3377, %v3426
        %v3436 = vadd.f32 %v3414, %v3428
        %v3437 = vadd.f32 %v3415, %v3429
        %v3438 = vadd.f32 %v3416, %v3430
        %v3439 = vadd.f32 %v3417, %v3431
        %v3440 = vadd.f32 %v3418, %v3432
        %v3441 = vadd.f32 %v3419, %v3433
        %v3442 = vadd.f32 %v3420, %v3434
        %v3443 = vadd.f32 %v3421, %v3435
        %v3444 = vld [vmem:[%s13] sm:$0x1]
        %v3446 = vlaneseq
        %v3447 = vshrl.u32 %v3446, 7
        %v3448 = vsub.s32 0, %v3447
        %v3449 = vrot.slane %v3444, %v3448
        %v3451 = vadd.f32 %v3436, %v3449
        %v3452 = vadd.f32 %v3437, %v3449
        %v3453 = vadd.f32 %v3438, %v3449
        %v3454 = vadd.f32 %v3439, %v3449
        %v3455 = vadd.f32 %v3440, %v3449
        %v3456 = vadd.f32 %v3441, %v3449
        %v3457 = vadd.f32 %v3442, %v3449
        %v3458 = vadd.f32 %v3443, %v3449
        %v3459 = vld [vmem:[#allocation2] sm:$0xff]
        %v3460 = vadd.f32 %v3459, %v3451
        %3461 = vst.msk [vmem:[#allocation2] sm:$0xff] %vm535, %v3460
        %v3462 = vld [vmem:[#allocation2 + $0x8] sm:$0xff]
        %v3463 = vadd.f32 %v3462, %v3452
        %3464 = vst.msk [vmem:[#allocation2 + $0x8] sm:$0xff] %vm535, %v3463
        %v3465 = vld [vmem:[#allocation2 + $0x10] sm:$0xff]
        %v3466 = vadd.f32 %v3465, %v3453
        %3467 = vst.msk [vmem:[#allocation2 + $0x10] sm:$0xff] %vm535, %v3466
        %v3468 = vld [vmem:[#allocation2 + $0x18] sm:$0xff]
        %v3469 = vadd.f32 %v3468, %v3454
        %3470 = vst.msk [vmem:[#allocation2 + $0x18] sm:$0xff] %vm535, %v3469
        %v3471 = vld [vmem:[#allocation2 + $0x20] sm:$0xff]
        %v3472 = vadd.f32 %v3471, %v3455
        %3473 = vst.msk [vmem:[#allocation2 + $0x20] sm:$0xff] %vm535, %v3472
        %v3474 = vld [vmem:[#allocation2 + $0x28] sm:$0xff]
        %v3475 = vadd.f32 %v3474, %v3456
        %3476 = vst.msk [vmem:[#allocation2 + $0x28] sm:$0xff] %vm535, %v3475
        %v3477 = vld [vmem:[#allocation2 + $0x30] sm:$0xff]
        %v3478 = vadd.f32 %v3477, %v3457
        %3479 = vst.msk [vmem:[#allocation2 + $0x30] sm:$0xff] %vm535, %v3478
        %v3480 = vld [vmem:[#allocation2 + $0x38] sm:$0xff]
        %v3481 = vadd.f32 %v3480, %v3458
        %3482 = vst.msk [vmem:[#allocation2 + $0x38] sm:$0xff] %vm535, %v3481
        %v3483 = vld [vmem:[%s11] sm:$0xff]
        %v3484 = vld [vmem:[%s11 + $0x8] sm:$0xff]
        %v3485 = vld [vmem:[#allocation2] sm:$0xff]
        %v3486 = vld [vmem:[#allocation2 + $0x8] sm:$0xff]
        %v3487 = vld [vmem:[#allocation2 + $0x10] sm:$0xff]
        %v3488 = vld [vmem:[#allocation2 + $0x18] sm:$0xff]
        %v3489 = vld [vmem:[#allocation2 + $0x20] sm:$0xff]
        %v3490 = vld [vmem:[#allocation2 + $0x28] sm:$0xff]
        %v3491 = vld [vmem:[#allocation2 + $0x30] sm:$0xff]
        %v3492 = vld [vmem:[#allocation2 + $0x38] sm:$0xff]
        %v3494 = vsel %vm535, %v3483, 0
        %v3497 = vsel %vm535, %v3484, 0
        %v3500 = vsel %vm535, %v3485, 0
        %v3503 = vsel %vm535, %v3486, 0
        %v3506 = vsel %vm535, %v3487, 0
        %v3509 = vsel %vm535, %v3488, 0
        %v3512 = vsel %vm535, %v3489, 0
        %v3515 = vsel %vm535, %v3490, 0
        %v3518 = vsel %vm535, %v3491, 0
        %v3521 = vsel %vm535, %v3492, 0
        %3523 = vmatprep.subr.mxu0 0.0
        %3524 = vmatpush1.xpose.msra.mxu0 %v3500
        %3525 = vmatprep.subr.mxu0 0.0
        %3526 = vmatpush1.xpose.msra.mxu0 %v3503
        %3527 = vmatprep.subr.mxu0 0.0
        %3528 = vmatpush1.xpose.msra.mxu0 %v3506
        %3529 = vmatprep.subr.mxu0 0.0
        %3530 = vmatpush1.xpose.msra.mxu0 %v3509
        %3531 = vmatprep.subr.mxu0 0.0
        %3532 = vmatpush1.xpose.msra.mxu0 %v3512
        %3533 = vmatprep.subr.mxu0 0.0
        %3534 = vmatpush1.xpose.msra.mxu0 %v3515
        %3535 = vmatprep.subr.mxu0 0.0
        %3536 = vmatpush1.xpose.msra.mxu0 %v3518
        %3537 = vmatprep.subr.mxu0 0.0
        %3538 = vmatpush1.xpose.msra.mxu0 %v3521
        %3539 = vmatprep.subr.mxu0 0.0
        %3540 = vmatpush1.xpose.msra.mxu0 0.0
        %3541 = vmatprep.subr.mxu0 0.0
        %3542 = vmatpush1.xpose.msra.mxu0 0.0
        %3543 = vmatprep.subr.mxu0 0.0
        %3544 = vmatpush1.xpose.msra.mxu0 0.0
        %3545 = vmatprep.subr.mxu0 0.0
        %3546 = vmatpush1.xpose.msra.mxu0 0.0
        %3547 = vmatprep.subr.mxu0 0.0
        %3548 = vmatpush1.xpose.msra.mxu0 0.0
        %3549 = vmatprep.subr.mxu0 0.0
        %3550 = vmatpush1.xpose.msra.mxu0 0.0
        %3551 = vmatprep.subr.mxu0 0.0
        %3552 = vmatpush1.xpose.msra.mxu0 0.0
        %3553 = vmatprep.subr.mxu0 0.0
        %3554 = vmatpush1.xpose.msra.mxu0 0.0
        %3555 = vmatprep.subr.mxu0 0.0
        %3556 = vmatpush1.xpose.msra.mxu0 0.0
        %3557 = vmatprep.subr.mxu0 0.0
        %3558 = vmatpush1.xpose.msra.mxu0 0.0
        %3559 = vmatprep.subr.mxu0 0.0
        %3560 = vmatpush1.xpose.msra.mxu0 0.0
        %3561 = vmatprep.subr.mxu0 0.0
        %3562 = vmatpush1.xpose.msra.mxu0 0.0
        %3563 = vmatprep.subr.mxu0 0.0
        %3564 = vmatpush1.xpose.msra.mxu0 0.0
        %3565 = vmatprep.subr.mxu0 0.0
        %3566 = vmatpush1.xpose.msra.mxu0 0.0
        %3567 = vmatprep.subr.mxu0 0.0
        %3568 = vmatpush1.xpose.msra.mxu0 0.0
        %3569 = vmatprep.subr.mxu0 0.0
        %3570 = vmatpush1.xpose.msra.mxu0 0.0
        %3571 = vmatprep.subr.mxu0 0.0
        %3572 = vmatpush1.xpose.msra.mxu0 0.0
        %3573 = vmatprep.subr.mxu0 0.0
        %3574 = vmatpush1.xpose.msra.mxu0 0.0
        %3575 = vmatprep.subr.mxu0 0.0
        %3576 = vmatpush1.xpose.msra.mxu0 0.0
        %3577 = vmatprep.subr.mxu0 0.0
        %3578 = vmatpush1.xpose.msra.mxu0 0.0
        %3579 = vmatprep.subr.mxu0 0.0
        %3580 = vmatpush1.xpose.msra.mxu0 0.0
        %3581 = vmatprep.subr.mxu0 0.0
        %3582 = vmatpush1.xpose.msra.mxu0 0.0
        %3583 = vmatprep.subr.mxu0 0.0
        %3584 = vmatpush1.xpose.msra.mxu0 0.0
        %3585 = vmatprep.subr.mxu0 0.0
        %3586 = vmatpush1.xpose.msra.mxu0 0.0
        %3587 = vmatprep.mubr.f32.mxu0 0.0
        %3588 = vmatmul.mubr.f32.gmra.mrb[0].mxu0 %v3494
        %v3589 = vpop.f32.mrb[0].mxu0
        %v3590 = vadd.f32 0.0, %v3589
        %v3591 = vpop.f32.mrb[0].mxu0
        %3592 = vmatprep.mubr.f32.mxu0 0.0
        %3593 = vmatmul.mubr.f32.gmra.mrb[0].mxu0 %v3497
        %v3594 = vpop.f32.mrb[0].mxu0
        %v3595 = vadd.f32 0.0, %v3594
        %v3596 = vpop.f32.mrb[0].mxu0
        %3597 = vdwg.mxu0
        %3598 = vst.msk [vmem:[%s475] sm:$0xff] %vm1066, %v3590
        %3599 = vst.msk [vmem:[%s475 + $0x8] sm:$0xff] %vm1066, %v3595
        %s3600 = sand.u32 %s340, 1
        %s3601 = scalar_lea.sflag [#allocation5], %s3600
        %s3602 = sand.u32 %s340, 1
        %s3603 = smul.addr %s3602, 16
        %s3604 = scalar_lea.vmem [#allocation4], %s3603
        // Predicated region
        $region77: #{tpu_custom_call.1} parent=75 // pred_check
          %p3605 = pneg %p350
        $region78: #{tpu_custom_call.1} parent=75 // pred_check_branch
          %3607 = sbr.rel (%p3605) target = $region80
        $region79: #{tpu_custom_call.1} parent=75 // pred_region
          %s3609 = ssub.s32 256, 256
          %3610 = vsyncadd %s3601, %s3609
          %s3611 = smul.addr %s28, 2
          %s3612 = smul.addr %s3611, 128
          %s3613 = scalar_lea.hbm %s14, %s3612
          %s3614 = sshll.u32 %s3604, 4
          %s3615 = int_to_ptr.vmem [resolvable:$true] %s3614
          %3620 = dma.vmem_to_hbm [thread:$0]  %s3615, 256, %s3613, %s3601, 128, 128, 8
        $region80: #{tpu_custom_call.1} parent=75 // pred_fallthru
          _
      $region76: #{tpu_custom_call.1} parent=5 // pred_fallthru
        _
      %p3621 = scmp.le.s32.totalorder 2, %s23
      // Predicated region
      $region81: #{tpu_custom_call.1} parent=5 // pred_check
        %p3622 = pneg %p3621
      $region82: #{tpu_custom_call.1} parent=5 // pred_check_branch
        %3624 = sbr.rel (%p3622) target = $region84
      $region83: #{tpu_custom_call.1} parent=5 // pred_region
        %s3625 = ssub.s32 %s23, 2
        // Predicated region
        $region85: #{tpu_custom_call.1} parent=83 // pred_check
          %p3626 = pneg %p356
        $region86: #{tpu_custom_call.1} parent=83 // pred_check_branch
          %3628 = sbr.rel (%p3626) target = $region88
        $region87: #{tpu_custom_call.1} parent=83 // pred_region
          %s3629 = sand.u32 %s341, 1
          %s3630 = scalar_lea.sflag [#allocation5], %s3629
          %s3631 = sand.u32 %s341, 1
          %s3632 = smul.addr %s3631, 16
          %s3633 = scalar_lea.vmem [#allocation4], %s3632
          %3634 = dma.done %s3630, 256
        $region88: #{tpu_custom_call.1} parent=83 // pred_fallthru
          _
      $region84: #{tpu_custom_call.1} parent=5 // pred_fallthru
        _
    $region6: #{tpu_custom_call.1} parent=1 // loop_footer
      %s27 = sadd.s32 1, %s23
    $region7: #{tpu_custom_call.1} parent=1 // loop_footer_branch
      %22 = sbr.rel target = $region3
    $region8: #{tpu_custom_call.1} parent=1 // loop_exit
      _
    %3635 = vsyncpa [#allocation5], 1
    %s3636 = scalar_lea.sflag [#allocation5], 1
    %3637 = vsyncpa %s3636, 1

</llo_original>
